<compile_context>
chip_gen: v6e
topology: v6e:2x2x1
jax: 0.10.0
libtpu: 0.0.40
codegen_flags: <defaults>
</compile_context>

<pallas_src>
import jax
import jax.numpy as jnp
from jax import lax
from jax.experimental import pallas as pl
from jax.experimental.pallas import tpu as pltpu


def group_kernel(xt_ref, nbr_ref, ctr_ref):
    # xt_ref : (1, 3, N)    points, transposed (lane-dense over N)
    # nbr_ref: (1, G, 3*M)  output, layout [g, m*3 + d]  (centered neighbours)
    # ctr_ref: (1, G, 3)    output group centers
    xt = xt_ref[0, :, :]                                  # (3, N)
    N = xt.shape[1]
    G = ctr_ref.shape[1]
    M = nbr_ref.shape[2] // 3

    x0 = xt[0:1, :]                                       # (1, N) per-coordinate rows
    x1 = xt[1:2, :]
    x2 = xt[2:3, :]
    iota_1n = lax.broadcasted_iota(jnp.int32, (1, N), 1)
    iota_gn = lax.broadcasted_iota(jnp.int32, (G, N), 1)

    def gather_rows(onehot):
        # Exact f32 gather of the single selected point per row of `onehot` -> (rows, 3).
        # One true per row, so the masked lane-reduce returns the coordinate bit-exactly.
        return jnp.concatenate(
            [jnp.sum(jnp.where(onehot, xk, 0.0), axis=1, keepdims=True)
             for xk in (x0, x1, x2)], axis=1)

    # ---------------- farthest point sampling (seeded at point 0) ----------------
    min_d = jnp.full((1, N), jnp.inf, jnp.float32)        # lane-dense running min-distance
    c_row = jnp.concatenate([x0[:, 0:1], x1[:, 0:1], x2[:, 0:1]], axis=1)   # (1, 3) seed
    rows = []
    for g in range(G):                                    # fully unrolled serial FPS
        rows.append(c_row)
        d = ((x0 - c_row[:, 0:1]) ** 2
             + (x1 - c_row[:, 1:2]) ** 2
             + (x2 - c_row[:, 2:3]) ** 2)                 # (1, N) sq. dist to current center
        min_d = jnp.minimum(min_d, d)
        maxv = jnp.max(min_d, axis=1, keepdims=True)      # (1, 1) lane reduce
        idx = jnp.min(jnp.where(min_d >= maxv, iota_1n, N),
                      axis=1, keepdims=True)              # first-argmax (matches jnp.argmax)
        c_row = gather_rows(iota_1n == idx)               # (1, 3) next farthest point
    centers = jnp.concatenate(rows, axis=0)               # (G, 3)

    # ---------------- kNN squared distances, lane-dense (G, N) ----------------
    xn = x0 * x0 + x1 * x1 + x2 * x2                                          # (1, N)
    cn = centers[:, 0:1] ** 2 + centers[:, 1:2] ** 2 + centers[:, 2:3] ** 2   # (G, 1)
    cx = centers[:, 0:1] * x0 + centers[:, 1:2] * x1 + centers[:, 2:3] * x2   # (G, N)
    d2 = cn + xn - 2.0 * cx                                                   # (G, N)

    # -------- iterative M-nearest selection + direct indexed stores --------
    for m in range(M):                                    # fully unrolled
        minv = jnp.min(d2, axis=1, keepdims=True)                             # (G, 1)
        sel_idx = jnp.min(jnp.where(d2 <= minv, iota_gn, N),
                          axis=1, keepdims=True)                              # first-argmin
        onehot = iota_gn == sel_idx                                           # (G, N)
        pts = gather_rows(onehot)                                             # (G, 3) exact
        nbr_ref[0, :, 3 * m:3 * m + 3] = pts - centers    # write column m (static slice)
        d2 = jnp.where(onehot, jnp.inf, d2)               # exclude the chosen point

    ctr_ref[0, :, :] = centers


def group_pallas(xyz, num_group, group_size):
    """xyz: (B, N, 3) f32  ->  (neighborhood (B, G, M, 3), center (B, G, 3))."""
    B, N, C = xyz.shape
    assert C == 3
    G, M = num_group, group_size
    xt = jnp.swapaxes(xyz, 1, 2).astype(jnp.float32)      # (B, 3, N) -- the only kernel input

    flops = B * (G * N * 10 + G * N * 8 + M * G * N * 9)
    bytes_accessed = 4 * (B * 3 * N + B * G * 3 * M + B * G * 3)

    nbr_flat, center = pl.pallas_call(
        group_kernel,
        out_shape=(jax.ShapeDtypeStruct((B, G, 3 * M), jnp.float32),
                   jax.ShapeDtypeStruct((B, G, 3), jnp.float32)),
        grid=(B,),
        in_specs=[pl.BlockSpec((1, 3, N), lambda b: (b, 0, 0))],
        out_specs=(pl.BlockSpec((1, G, 3 * M), lambda b: (b, 0, 0)),
                   pl.BlockSpec((1, G, 3), lambda b: (b, 0, 0))),
        compiler_params=pltpu.CompilerParams(dimension_semantics=("parallel",)),
        cost_estimate=pl.CostEstimate(flops=flops, transcendentals=0,
                                      bytes_accessed=bytes_accessed),
    )(xt)

    # Pure layout plumbing: [g, m*3 + d] -> (B, G, M, 3).
    neighborhood = nbr_flat.reshape(B, G, M, 3)
    return neighborhood, center


# ----------------------- pure-JAX reference -----------------------
def group_reference(xyz, num_group, group_size):
    B, N, _ = xyz.shape

    def fps_single(pts):                                  # pts: (N, 3)
        def body(g, carry):
            min_d, last_idx, centers = carry
            c = pts[last_idx]                             # (3,)
            centers = centers.at[g].set(c)
            d = jnp.sum((pts - c[None, :]) ** 2, axis=1)  # (N,)
            min_d = jnp.minimum(min_d, d)
            nxt = jnp.argmax(min_d).astype(jnp.int32)
            return min_d, nxt, centers
        init = (jnp.full((N,), jnp.inf, jnp.float32), jnp.int32(0),
                jnp.zeros((num_group, 3), jnp.float32))
        return lax.fori_loop(0, num_group, body, init)[2]

    centers = jax.vmap(fps_single)(xyz)                   # (B, G, 3)

    # Same |c|^2 + |x|^2 - 2*c.x decomposition as knn_point / the kernel.
    cn = jnp.sum(centers * centers, axis=-1)[:, :, None]  # (B, G, 1)
    xn = jnp.sum(xyz * xyz, axis=-1)[:, None, :]          # (B, 1, N)
    cx = jnp.zeros((B, num_group, N), jnp.float32)
    for d in range(3):
        cx = cx + centers[:, :, d][:, :, None] * xyz[:, :, d][:, None, :]
    d2 = cn + xn - 2.0 * cx                               # (B, G, N)

    _, idx = lax.top_k(-d2, group_size)                   # (B, G, M), ascending distance

    def gather_single(pts, idx_b):                        # (N, 3), (G, M)
        return pts[idx_b]                                 # (G, M, 3)
    nbh = jax.vmap(gather_single)(xyz, idx)
    nbh = nbh - centers[:, :, None, :]
    return nbh, centers


if __name__ == "__main__":
    B, N = 2, 128
    num_group, group_size = 16, 8

    key = jax.random.PRNGKey(0)
    xyz = jax.random.normal(key, (B, N, 3), dtype=jnp.float32)

    nbh, ctr = group_pallas(xyz, num_group, group_size)
    nbh = jax.block_until_ready(nbh)
    ctr = jax.block_until_ready(ctr)

    nbh_ref, ctr_ref = group_reference(xyz, num_group, group_size)

    assert nbh.shape == (B, num_group, group_size, 3)
    assert ctr.shape == (B, num_group, 3)
    assert jnp.allclose(ctr, ctr_ref, atol=1e-4, rtol=1e-4), "center mismatch vs reference"
    assert jnp.allclose(nbh, nbh_ref, atol=1e-4, rtol=1e-4), "neighborhood mismatch vs reference"

    print("KERNEL_OK")
</pallas_src>

<mosaic_0001>
module attributes {stable_mosaic.version = 11 : i64} {
  func.func @group_kernel(%arg0: i32, %arg1: memref<1x3x128xf32, #tpu.memory_space<vmem>>, %arg2: memref<1x16x24xf32, #tpu.memory_space<vmem>>, %arg3: memref<1x16x3xf32, #tpu.memory_space<vmem>>) attributes {dimension_semantics = [#tpu.dimension_semantics<parallel>], iteration_bounds = array<i64: 2>, scalar_prefetch = 0 : i64, scratch_operands = 0 : i64, tpu.core_type = #tpu.core_type<tc>, window_params = [{transform_indices = @transform_0, window_bounds = array<i64: 1, 3, 128>}, {transform_indices = @transform_1, window_bounds = array<i64: 1, 16, 24>}, {transform_indices = @transform_2, window_bounds = array<i64: 1, 16, 3>}]} {
    %c0 = arith.constant 0 : index
    %c0_0 = arith.constant 0 : index
    %c0_1 = arith.constant 0 : index
    %0 = vector.load %arg1[%c0, %c0_0, %c0_1] : memref<1x3x128xf32, #tpu.memory_space<vmem>>, vector<1x3x128xf32>
    %1 = vector.shape_cast %0 : vector<1x3x128xf32> to vector<3x128xf32>
    %2 = vector.extract_strided_slice %1 {offsets = [0, 0], sizes = [1, 128], strides = [1, 1]} : vector<3x128xf32> to vector<1x128xf32>
    %3 = vector.extract_strided_slice %1 {offsets = [1, 0], sizes = [1, 128], strides = [1, 1]} : vector<3x128xf32> to vector<1x128xf32>
    %4 = vector.extract_strided_slice %1 {offsets = [2, 0], sizes = [1, 128], strides = [1, 1]} : vector<3x128xf32> to vector<1x128xf32>
    %5 = tpu.iota {dimensions = array<i32: 1>} : vector<1x128xi32>
    %6 = tpu.iota {dimensions = array<i32: 1>} : vector<16x128xi32>
    %cst = arith.constant 0x7F800000 : f32
    %7 = vector.broadcast %cst : f32 to vector<1x128xf32>
    %8 = vector.extract_strided_slice %2 {offsets = [0, 0], sizes = [1, 1], strides = [1, 1]} : vector<1x128xf32> to vector<1x1xf32>
    %9 = vector.extract_strided_slice %3 {offsets = [0, 0], sizes = [1, 1], strides = [1, 1]} : vector<1x128xf32> to vector<1x1xf32>
    %10 = vector.extract_strided_slice %4 {offsets = [0, 0], sizes = [1, 1], strides = [1, 1]} : vector<1x128xf32> to vector<1x1xf32>
    %11 = tpu.concatenate %8, %9, %10 in 1 : vector<1x1xf32>, vector<1x1xf32>, vector<1x1xf32> -> vector<1x3xf32>
    %12 = vector.extract_strided_slice %11 {offsets = [0, 0], sizes = [1, 1], strides = [1, 1]} : vector<1x3xf32> to vector<1x1xf32>
    %13 = vector.broadcast %12 : vector<1x1xf32> to vector<1x128xf32>
    %14 = arith.subf %2, %13 : vector<1x128xf32>
    %15 = arith.mulf %14, %14 : vector<1x128xf32>
    %16 = vector.extract_strided_slice %11 {offsets = [0, 1], sizes = [1, 1], strides = [1, 1]} : vector<1x3xf32> to vector<1x1xf32>
    %17 = vector.broadcast %16 : vector<1x1xf32> to vector<1x128xf32>
    %18 = arith.subf %3, %17 : vector<1x128xf32>
    %19 = arith.mulf %18, %18 : vector<1x128xf32>
    %20 = arith.addf %15, %19 : vector<1x128xf32>
    %21 = vector.extract_strided_slice %11 {offsets = [0, 2], sizes = [1, 1], strides = [1, 1]} : vector<1x3xf32> to vector<1x1xf32>
    %22 = vector.broadcast %21 : vector<1x1xf32> to vector<1x128xf32>
    %23 = arith.subf %4, %22 : vector<1x128xf32>
    %24 = arith.mulf %23, %23 : vector<1x128xf32>
    %25 = arith.addf %20, %24 : vector<1x128xf32>
    %26 = arith.minimumf %7, %25 : vector<1x128xf32>
    %cst_2 = arith.constant dense<0xFF800000> : vector<1xf32>
    %27 = vector.multi_reduction <maximumf>, %26, %cst_2 [1] : vector<1x128xf32> to vector<1xf32>
    %28 = vector.shape_cast %27 : vector<1xf32> to vector<1x1xf32>
    %29 = vector.broadcast %28 : vector<1x1xf32> to vector<1x128xf32>
    %30 = arith.cmpf oge, %26, %29 : vector<1x128xf32>
    %c128_i32 = arith.constant 128 : i32
    %31 = vector.broadcast %c128_i32 : i32 to vector<1x128xi32>
    %32 = arith.select %30, %5, %31 : vector<1x128xi1>, vector<1x128xi32>
    %cst_3 = arith.constant dense<2147483647> : vector<1xi32>
    %33 = vector.multi_reduction <minsi>, %32, %cst_3 [1] : vector<1x128xi32> to vector<1xi32>
    %34 = vector.shape_cast %33 : vector<1xi32> to vector<1x1xi32>
    %35 = vector.broadcast %34 : vector<1x1xi32> to vector<1x128xi32>
    %36 = arith.cmpi eq, %5, %35 : vector<1x128xi32>
    %cst_4 = arith.constant 0.000000e+00 : f32
    %37 = vector.broadcast %cst_4 : f32 to vector<1x128xf32>
    %38 = arith.select %36, %2, %37 : vector<1x128xi1>, vector<1x128xf32>
    %cst_5 = arith.constant dense<0.000000e+00> : vector<1xf32>
    %39 = vector.multi_reduction <add>, %38, %cst_5 [1] : vector<1x128xf32> to vector<1xf32>
    %40 = vector.shape_cast %39 : vector<1xf32> to vector<1x1xf32>
    %cst_6 = arith.constant 0.000000e+00 : f32
    %41 = vector.broadcast %cst_6 : f32 to vector<1x128xf32>
    %42 = arith.select %36, %3, %41 : vector<1x128xi1>, vector<1x128xf32>
    %cst_7 = arith.constant dense<0.000000e+00> : vector<1xf32>
    %43 = vector.multi_reduction <add>, %42, %cst_7 [1] : vector<1x128xf32> to vector<1xf32>
    %44 = vector.shape_cast %43 : vector<1xf32> to vector<1x1xf32>
    %cst_8 = arith.constant 0.000000e+00 : f32
    %45 = vector.broadcast %cst_8 : f32 to vector<1x128xf32>
    %46 = arith.select %36, %4, %45 : vector<1x128xi1>, vector<1x128xf32>
    %cst_9 = arith.constant dense<0.000000e+00> : vector<1xf32>
    %47 = vector.multi_reduction <add>, %46, %cst_9 [1] : vector<1x128xf32> to vector<1xf32>
    %48 = vector.shape_cast %47 : vector<1xf32> to vector<1x1xf32>
    %49 = tpu.concatenate %40, %44, %48 in 1 : vector<1x1xf32>, vector<1x1xf32>, vector<1x1xf32> -> vector<1x3xf32>
    %50 = vector.extract_strided_slice %49 {offsets = [0, 0], sizes = [1, 1], strides = [1, 1]} : vector<1x3xf32> to vector<1x1xf32>
    %51 = vector.broadcast %50 : vector<1x1xf32> to vector<1x128xf32>
    %52 = arith.subf %2, %51 : vector<1x128xf32>
    %53 = arith.mulf %52, %52 : vector<1x128xf32>
    %54 = vector.extract_strided_slice %49 {offsets = [0, 1], sizes = [1, 1], strides = [1, 1]} : vector<1x3xf32> to vector<1x1xf32>
    %55 = vector.broadcast %54 : vector<1x1xf32> to vector<1x128xf32>
    %56 = arith.subf %3, %55 : vector<1x128xf32>
    %57 = arith.mulf %56, %56 : vector<1x128xf32>
    %58 = arith.addf %53, %57 : vector<1x128xf32>
    %59 = vector.extract_strided_slice %49 {offsets = [0, 2], sizes = [1, 1], strides = [1, 1]} : vector<1x3xf32> to vector<1x1xf32>
    %60 = vector.broadcast %59 : vector<1x1xf32> to vector<1x128xf32>
    %61 = arith.subf %4, %60 : vector<1x128xf32>
    %62 = arith.mulf %61, %61 : vector<1x128xf32>
    %63 = arith.addf %58, %62 : vector<1x128xf32>
    %64 = arith.minimumf %26, %63 : vector<1x128xf32>
    %cst_10 = arith.constant dense<0xFF800000> : vector<1xf32>
    %65 = vector.multi_reduction <maximumf>, %64, %cst_10 [1] : vector<1x128xf32> to vector<1xf32>
    %66 = vector.shape_cast %65 : vector<1xf32> to vector<1x1xf32>
    %67 = vector.broadcast %66 : vector<1x1xf32> to vector<1x128xf32>
    %68 = arith.cmpf oge, %64, %67 : vector<1x128xf32>
    %c128_i32_11 = arith.constant 128 : i32
    %69 = vector.broadcast %c128_i32_11 : i32 to vector<1x128xi32>
    %70 = arith.select %68, %5, %69 : vector<1x128xi1>, vector<1x128xi32>
    %cst_12 = arith.constant dense<2147483647> : vector<1xi32>
    %71 = vector.multi_reduction <minsi>, %70, %cst_12 [1] : vector<1x128xi32> to vector<1xi32>
    %72 = vector.shape_cast %71 : vector<1xi32> to vector<1x1xi32>
    %73 = vector.broadcast %72 : vector<1x1xi32> to vector<1x128xi32>
    %74 = arith.cmpi eq, %5, %73 : vector<1x128xi32>
    %cst_13 = arith.constant 0.000000e+00 : f32
    %75 = vector.broadcast %cst_13 : f32 to vector<1x128xf32>
    %76 = arith.select %74, %2, %75 : vector<1x128xi1>, vector<1x128xf32>
    %cst_14 = arith.constant dense<0.000000e+00> : vector<1xf32>
    %77 = vector.multi_reduction <add>, %76, %cst_14 [1] : vector<1x128xf32> to vector<1xf32>
    %78 = vector.shape_cast %77 : vector<1xf32> to vector<1x1xf32>
    %cst_15 = arith.constant 0.000000e+00 : f32
    %79 = vector.broadcast %cst_15 : f32 to vector<1x128xf32>
    %80 = arith.select %74, %3, %79 : vector<1x128xi1>, vector<1x128xf32>
    %cst_16 = arith.constant dense<0.000000e+00> : vector<1xf32>
    %81 = vector.multi_reduction <add>, %80, %cst_16 [1] : vector<1x128xf32> to vector<1xf32>
    %82 = vector.shape_cast %81 : vector<1xf32> to vector<1x1xf32>
    %cst_17 = arith.constant 0.000000e+00 : f32
    %83 = vector.broadcast %cst_17 : f32 to vector<1x128xf32>
    %84 = arith.select %74, %4, %83 : vector<1x128xi1>, vector<1x128xf32>
    %cst_18 = arith.constant dense<0.000000e+00> : vector<1xf32>
    %85 = vector.multi_reduction <add>, %84, %cst_18 [1] : vector<1x128xf32> to vector<1xf32>
    %86 = vector.shape_cast %85 : vector<1xf32> to vector<1x1xf32>
    %87 = tpu.concatenate %78, %82, %86 in 1 : vector<1x1xf32>, vector<1x1xf32>, vector<1x1xf32> -> vector<1x3xf32>
    %88 = vector.extract_strided_slice %87 {offsets = [0, 0], sizes = [1, 1], strides = [1, 1]} : vector<1x3xf32> to vector<1x1xf32>
    %89 = vector.broadcast %88 : vector<1x1xf32> to vector<1x128xf32>
    %90 = arith.subf %2, %89 : vector<1x128xf32>
    %91 = arith.mulf %90, %90 : vector<1x128xf32>
    %92 = vector.extract_strided_slice %87 {offsets = [0, 1], sizes = [1, 1], strides = [1, 1]} : vector<1x3xf32> to vector<1x1xf32>
    %93 = vector.broadcast %92 : vector<1x1xf32> to vector<1x128xf32>
    %94 = arith.subf %3, %93 : vector<1x128xf32>
    %95 = arith.mulf %94, %94 : vector<1x128xf32>
    %96 = arith.addf %91, %95 : vector<1x128xf32>
    %97 = vector.extract_strided_slice %87 {offsets = [0, 2], sizes = [1, 1], strides = [1, 1]} : vector<1x3xf32> to vector<1x1xf32>
    %98 = vector.broadcast %97 : vector<1x1xf32> to vector<1x128xf32>
    %99 = arith.subf %4, %98 : vector<1x128xf32>
    %100 = arith.mulf %99, %99 : vector<1x128xf32>
    %101 = arith.addf %96, %100 : vector<1x128xf32>
    %102 = arith.minimumf %64, %101 : vector<1x128xf32>
    %cst_19 = arith.constant dense<0xFF800000> : vector<1xf32>
    %103 = vector.multi_reduction <maximumf>, %102, %cst_19 [1] : vector<1x128xf32> to vector<1xf32>
    %104 = vector.shape_cast %103 : vector<1xf32> to vector<1x1xf32>
    %105 = vector.broadcast %104 : vector<1x1xf32> to vector<1x128xf32>
    %106 = arith.cmpf oge, %102, %105 : vector<1x128xf32>
    %c128_i32_20 = arith.constant 128 : i32
    %107 = vector.broadcast %c128_i32_20 : i32 to vector<1x128xi32>
    %108 = arith.select %106, %5, %107 : vector<1x128xi1>, vector<1x128xi32>
    %cst_21 = arith.constant dense<2147483647> : vector<1xi32>
    %109 = vector.multi_reduction <minsi>, %108, %cst_21 [1] : vector<1x128xi32> to vector<1xi32>
    %110 = vector.shape_cast %109 : vector<1xi32> to vector<1x1xi32>
    %111 = vector.broadcast %110 : vector<1x1xi32> to vector<1x128xi32>
    %112 = arith.cmpi eq, %5, %111 : vector<1x128xi32>
    %cst_22 = arith.constant 0.000000e+00 : f32
    %113 = vector.broadcast %cst_22 : f32 to vector<1x128xf32>
    %114 = arith.select %112, %2, %113 : vector<1x128xi1>, vector<1x128xf32>
    %cst_23 = arith.constant dense<0.000000e+00> : vector<1xf32>
    %115 = vector.multi_reduction <add>, %114, %cst_23 [1] : vector<1x128xf32> to vector<1xf32>
    %116 = vector.shape_cast %115 : vector<1xf32> to vector<1x1xf32>
    %cst_24 = arith.constant 0.000000e+00 : f32
    %117 = vector.broadcast %cst_24 : f32 to vector<1x128xf32>
    %118 = arith.select %112, %3, %117 : vector<1x128xi1>, vector<1x128xf32>
    %cst_25 = arith.constant dense<0.000000e+00> : vector<1xf32>
    %119 = vector.multi_reduction <add>, %118, %cst_25 [1] : vector<1x128xf32> to vector<1xf32>
    %120 = vector.shape_cast %119 : vector<1xf32> to vector<1x1xf32>
    %cst_26 = arith.constant 0.000000e+00 : f32
    %121 = vector.broadcast %cst_26 : f32 to vector<1x128xf32>
    %122 = arith.select %112, %4, %121 : vector<1x128xi1>, vector<1x128xf32>
    %cst_27 = arith.constant dense<0.000000e+00> : vector<1xf32>
    %123 = vector.multi_reduction <add>, %122, %cst_27 [1] : vector<1x128xf32> to vector<1xf32>
    %124 = vector.shape_cast %123 : vector<1xf32> to vector<1x1xf32>
    %125 = tpu.concatenate %116, %120, %124 in 1 : vector<1x1xf32>, vector<1x1xf32>, vector<1x1xf32> -> vector<1x3xf32>
    %126 = vector.extract_strided_slice %125 {offsets = [0, 0], sizes = [1, 1], strides = [1, 1]} : vector<1x3xf32> to vector<1x1xf32>
    %127 = vector.broadcast %126 : vector<1x1xf32> to vector<1x128xf32>
    %128 = arith.subf %2, %127 : vector<1x128xf32>
    %129 = arith.mulf %128, %128 : vector<1x128xf32>
    %130 = vector.extract_strided_slice %125 {offsets = [0, 1], sizes = [1, 1], strides = [1, 1]} : vector<1x3xf32> to vector<1x1xf32>
    %131 = vector.broadcast %130 : vector<1x1xf32> to vector<1x128xf32>
    %132 = arith.subf %3, %131 : vector<1x128xf32>
    %133 = arith.mulf %132, %132 : vector<1x128xf32>
    %134 = arith.addf %129, %133 : vector<1x128xf32>
    %135 = vector.extract_strided_slice %125 {offsets = [0, 2], sizes = [1, 1], strides = [1, 1]} : vector<1x3xf32> to vector<1x1xf32>
    %136 = vector.broadcast %135 : vector<1x1xf32> to vector<1x128xf32>
    %137 = arith.subf %4, %136 : vector<1x128xf32>
    %138 = arith.mulf %137, %137 : vector<1x128xf32>
    %139 = arith.addf %134, %138 : vector<1x128xf32>
    %140 = arith.minimumf %102, %139 : vector<1x128xf32>
    %cst_28 = arith.constant dense<0xFF800000> : vector<1xf32>
    %141 = vector.multi_reduction <maximumf>, %140, %cst_28 [1] : vector<1x128xf32> to vector<1xf32>
    %142 = vector.shape_cast %141 : vector<1xf32> to vector<1x1xf32>
    %143 = vector.broadcast %142 : vector<1x1xf32> to vector<1x128xf32>
    %144 = arith.cmpf oge, %140, %143 : vector<1x128xf32>
    %c128_i32_29 = arith.constant 128 : i32
    %145 = vector.broadcast %c128_i32_29 : i32 to vector<1x128xi32>
    %146 = arith.select %144, %5, %145 : vector<1x128xi1>, vector<1x128xi32>
    %cst_30 = arith.constant dense<2147483647> : vector<1xi32>
    %147 = vector.multi_reduction <minsi>, %146, %cst_30 [1] : vector<1x128xi32> to vector<1xi32>
    %148 = vector.shape_cast %147 : vector<1xi32> to vector<1x1xi32>
    %149 = vector.broadcast %148 : vector<1x1xi32> to vector<1x128xi32>
    %150 = arith.cmpi eq, %5, %149 : vector<1x128xi32>
    %cst_31 = arith.constant 0.000000e+00 : f32
    %151 = vector.broadcast %cst_31 : f32 to vector<1x128xf32>
    %152 = arith.select %150, %2, %151 : vector<1x128xi1>, vector<1x128xf32>
    %cst_32 = arith.constant dense<0.000000e+00> : vector<1xf32>
    %153 = vector.multi_reduction <add>, %152, %cst_32 [1] : vector<1x128xf32> to vector<1xf32>
    %154 = vector.shape_cast %153 : vector<1xf32> to vector<1x1xf32>
    %cst_33 = arith.constant 0.000000e+00 : f32
    %155 = vector.broadcast %cst_33 : f32 to vector<1x128xf32>
    %156 = arith.select %150, %3, %155 : vector<1x128xi1>, vector<1x128xf32>
    %cst_34 = arith.constant dense<0.000000e+00> : vector<1xf32>
    %157 = vector.multi_reduction <add>, %156, %cst_34 [1] : vector<1x128xf32> to vector<1xf32>
    %158 = vector.shape_cast %157 : vector<1xf32> to vector<1x1xf32>
    %cst_35 = arith.constant 0.000000e+00 : f32
    %159 = vector.broadcast %cst_35 : f32 to vector<1x128xf32>
    %160 = arith.select %150, %4, %159 : vector<1x128xi1>, vector<1x128xf32>
    %cst_36 = arith.constant dense<0.000000e+00> : vector<1xf32>
    %161 = vector.multi_reduction <add>, %160, %cst_36 [1] : vector<1x128xf32> to vector<1xf32>
    %162 = vector.shape_cast %161 : vector<1xf32> to vector<1x1xf32>
    %163 = tpu.concatenate %154, %158, %162 in 1 : vector<1x1xf32>, vector<1x1xf32>, vector<1x1xf32> -> vector<1x3xf32>
    %164 = vector.extract_strided_slice %163 {offsets = [0, 0], sizes = [1, 1], strides = [1, 1]} : vector<1x3xf32> to vector<1x1xf32>
    %165 = vector.broadcast %164 : vector<1x1xf32> to vector<1x128xf32>
    %166 = arith.subf %2, %165 : vector<1x128xf32>
    %167 = arith.mulf %166, %166 : vector<1x128xf32>
    %168 = vector.extract_strided_slice %163 {offsets = [0, 1], sizes = [1, 1], strides = [1, 1]} : vector<1x3xf32> to vector<1x1xf32>
    %169 = vector.broadcast %168 : vector<1x1xf32> to vector<1x128xf32>
    %170 = arith.subf %3, %169 : vector<1x128xf32>
    %171 = arith.mulf %170, %170 : vector<1x128xf32>
    %172 = arith.addf %167, %171 : vector<1x128xf32>
    %173 = vector.extract_strided_slice %163 {offsets = [0, 2], sizes = [1, 1], strides = [1, 1]} : vector<1x3xf32> to vector<1x1xf32>
    %174 = vector.broadcast %173 : vector<1x1xf32> to vector<1x128xf32>
    %175 = arith.subf %4, %174 : vector<1x128xf32>
    %176 = arith.mulf %175, %175 : vector<1x128xf32>
    %177 = arith.addf %172, %176 : vector<1x128xf32>
    %178 = arith.minimumf %140, %177 : vector<1x128xf32>
    %cst_37 = arith.constant dense<0xFF800000> : vector<1xf32>
    %179 = vector.multi_reduction <maximumf>, %178, %cst_37 [1] : vector<1x128xf32> to vector<1xf32>
    %180 = vector.shape_cast %179 : vector<1xf32> to vector<1x1xf32>
    %181 = vector.broadcast %180 : vector<1x1xf32> to vector<1x128xf32>
    %182 = arith.cmpf oge, %178, %181 : vector<1x128xf32>
    %c128_i32_38 = arith.constant 128 : i32
    %183 = vector.broadcast %c128_i32_38 : i32 to vector<1x128xi32>
    %184 = arith.select %182, %5, %183 : vector<1x128xi1>, vector<1x128xi32>
    %cst_39 = arith.constant dense<2147483647> : vector<1xi32>
    %185 = vector.multi_reduction <minsi>, %184, %cst_39 [1] : vector<1x128xi32> to vector<1xi32>
    %186 = vector.shape_cast %185 : vector<1xi32> to vector<1x1xi32>
    %187 = vector.broadcast %186 : vector<1x1xi32> to vector<1x128xi32>
    %188 = arith.cmpi eq, %5, %187 : vector<1x128xi32>
    %cst_40 = arith.constant 0.000000e+00 : f32
    %189 = vector.broadcast %cst_40 : f32 to vector<1x128xf32>
    %190 = arith.select %188, %2, %189 : vector<1x128xi1>, vector<1x128xf32>
    %cst_41 = arith.constant dense<0.000000e+00> : vector<1xf32>
    %191 = vector.multi_reduction <add>, %190, %cst_41 [1] : vector<1x128xf32> to vector<1xf32>
    %192 = vector.shape_cast %191 : vector<1xf32> to vector<1x1xf32>
    %cst_42 = arith.constant 0.000000e+00 : f32
    %193 = vector.broadcast %cst_42 : f32 to vector<1x128xf32>
    %194 = arith.select %188, %3, %193 : vector<1x128xi1>, vector<1x128xf32>
    %cst_43 = arith.constant dense<0.000000e+00> : vector<1xf32>
    %195 = vector.multi_reduction <add>, %194, %cst_43 [1] : vector<1x128xf32> to vector<1xf32>
    %196 = vector.shape_cast %195 : vector<1xf32> to vector<1x1xf32>
    %cst_44 = arith.constant 0.000000e+00 : f32
    %197 = vector.broadcast %cst_44 : f32 to vector<1x128xf32>
    %198 = arith.select %188, %4, %197 : vector<1x128xi1>, vector<1x128xf32>
    %cst_45 = arith.constant dense<0.000000e+00> : vector<1xf32>
    %199 = vector.multi_reduction <add>, %198, %cst_45 [1] : vector<1x128xf32> to vector<1xf32>
    %200 = vector.shape_cast %199 : vector<1xf32> to vector<1x1xf32>
    %201 = tpu.concatenate %192, %196, %200 in 1 : vector<1x1xf32>, vector<1x1xf32>, vector<1x1xf32> -> vector<1x3xf32>
    %202 = vector.extract_strided_slice %201 {offsets = [0, 0], sizes = [1, 1], strides = [1, 1]} : vector<1x3xf32> to vector<1x1xf32>
    %203 = vector.broadcast %202 : vector<1x1xf32> to vector<1x128xf32>
    %204 = arith.subf %2, %203 : vector<1x128xf32>
    %205 = arith.mulf %204, %204 : vector<1x128xf32>
    %206 = vector.extract_strided_slice %201 {offsets = [0, 1], sizes = [1, 1], strides = [1, 1]} : vector<1x3xf32> to vector<1x1xf32>
    %207 = vector.broadcast %206 : vector<1x1xf32> to vector<1x128xf32>
    %208 = arith.subf %3, %207 : vector<1x128xf32>
    %209 = arith.mulf %208, %208 : vector<1x128xf32>
    %210 = arith.addf %205, %209 : vector<1x128xf32>
    %211 = vector.extract_strided_slice %201 {offsets = [0, 2], sizes = [1, 1], strides = [1, 1]} : vector<1x3xf32> to vector<1x1xf32>
    %212 = vector.broadcast %211 : vector<1x1xf32> to vector<1x128xf32>
    %213 = arith.subf %4, %212 : vector<1x128xf32>
    %214 = arith.mulf %213, %213 : vector<1x128xf32>
    %215 = arith.addf %210, %214 : vector<1x128xf32>
    %216 = arith.minimumf %178, %215 : vector<1x128xf32>
    %cst_46 = arith.constant dense<0xFF800000> : vector<1xf32>
    %217 = vector.multi_reduction <maximumf>, %216, %cst_46 [1] : vector<1x128xf32> to vector<1xf32>
    %218 = vector.shape_cast %217 : vector<1xf32> to vector<1x1xf32>
    %219 = vector.broadcast %218 : vector<1x1xf32> to vector<1x128xf32>
    %220 = arith.cmpf oge, %216, %219 : vector<1x128xf32>
    %c128_i32_47 = arith.constant 128 : i32
    %221 = vector.broadcast %c128_i32_47 : i32 to vector<1x128xi32>
    %222 = arith.select %220, %5, %221 : vector<1x128xi1>, vector<1x128xi32>
    %cst_48 = arith.constant dense<2147483647> : vector<1xi32>
    %223 = vector.multi_reduction <minsi>, %222, %cst_48 [1] : vector<1x128xi32> to vector<1xi32>
    %224 = vector.shape_cast %223 : vector<1xi32> to vector<1x1xi32>
    %225 = vector.broadcast %224 : vector<1x1xi32> to vector<1x128xi32>
    %226 = arith.cmpi eq, %5, %225 : vector<1x128xi32>
    %cst_49 = arith.constant 0.000000e+00 : f32
    %227 = vector.broadcast %cst_49 : f32 to vector<1x128xf32>
    %228 = arith.select %226, %2, %227 : vector<1x128xi1>, vector<1x128xf32>
    %cst_50 = arith.constant dense<0.000000e+00> : vector<1xf32>
    %229 = vector.multi_reduction <add>, %228, %cst_50 [1] : vector<1x128xf32> to vector<1xf32>
    %230 = vector.shape_cast %229 : vector<1xf32> to vector<1x1xf32>
    %cst_51 = arith.constant 0.000000e+00 : f32
    %231 = vector.broadcast %cst_51 : f32 to vector<1x128xf32>
    %232 = arith.select %226, %3, %231 : vector<1x128xi1>, vector<1x128xf32>
    %cst_52 = arith.constant dense<0.000000e+00> : vector<1xf32>
    %233 = vector.multi_reduction <add>, %232, %cst_52 [1] : vector<1x128xf32> to vector<1xf32>
    %234 = vector.shape_cast %233 : vector<1xf32> to vector<1x1xf32>
    %cst_53 = arith.constant 0.000000e+00 : f32
    %235 = vector.broadcast %cst_53 : f32 to vector<1x128xf32>
    %236 = arith.select %226, %4, %235 : vector<1x128xi1>, vector<1x128xf32>
    %cst_54 = arith.constant dense<0.000000e+00> : vector<1xf32>
    %237 = vector.multi_reduction <add>, %236, %cst_54 [1] : vector<1x128xf32> to vector<1xf32>
    %238 = vector.shape_cast %237 : vector<1xf32> to vector<1x1xf32>
    %239 = tpu.concatenate %230, %234, %238 in 1 : vector<1x1xf32>, vector<1x1xf32>, vector<1x1xf32> -> vector<1x3xf32>
    %240 = vector.extract_strided_slice %239 {offsets = [0, 0], sizes = [1, 1], strides = [1, 1]} : vector<1x3xf32> to vector<1x1xf32>
    %241 = vector.broadcast %240 : vector<1x1xf32> to vector<1x128xf32>
    %242 = arith.subf %2, %241 : vector<1x128xf32>
    %243 = arith.mulf %242, %242 : vector<1x128xf32>
    %244 = vector.extract_strided_slice %239 {offsets = [0, 1], sizes = [1, 1], strides = [1, 1]} : vector<1x3xf32> to vector<1x1xf32>
    %245 = vector.broadcast %244 : vector<1x1xf32> to vector<1x128xf32>
    %246 = arith.subf %3, %245 : vector<1x128xf32>
    %247 = arith.mulf %246, %246 : vector<1x128xf32>
    %248 = arith.addf %243, %247 : vector<1x128xf32>
    %249 = vector.extract_strided_slice %239 {offsets = [0, 2], sizes = [1, 1], strides = [1, 1]} : vector<1x3xf32> to vector<1x1xf32>
    %250 = vector.broadcast %249 : vector<1x1xf32> to vector<1x128xf32>
    %251 = arith.subf %4, %250 : vector<1x128xf32>
    %252 = arith.mulf %251, %251 : vector<1x128xf32>
    %253 = arith.addf %248, %252 : vector<1x128xf32>
    %254 = arith.minimumf %216, %253 : vector<1x128xf32>
    %cst_55 = arith.constant dense<0xFF800000> : vector<1xf32>
    %255 = vector.multi_reduction <maximumf>, %254, %cst_55 [1] : vector<1x128xf32> to vector<1xf32>
    %256 = vector.shape_cast %255 : vector<1xf32> to vector<1x1xf32>
    %257 = vector.broadcast %256 : vector<1x1xf32> to vector<1x128xf32>
    %258 = arith.cmpf oge, %254, %257 : vector<1x128xf32>
    %c128_i32_56 = arith.constant 128 : i32
    %259 = vector.broadcast %c128_i32_56 : i32 to vector<1x128xi32>
    %260 = arith.select %258, %5, %259 : vector<1x128xi1>, vector<1x128xi32>
    %cst_57 = arith.constant dense<2147483647> : vector<1xi32>
    %261 = vector.multi_reduction <minsi>, %260, %cst_57 [1] : vector<1x128xi32> to vector<1xi32>
    %262 = vector.shape_cast %261 : vector<1xi32> to vector<1x1xi32>
    %263 = vector.broadcast %262 : vector<1x1xi32> to vector<1x128xi32>
    %264 = arith.cmpi eq, %5, %263 : vector<1x128xi32>
    %cst_58 = arith.constant 0.000000e+00 : f32
    %265 = vector.broadcast %cst_58 : f32 to vector<1x128xf32>
    %266 = arith.select %264, %2, %265 : vector<1x128xi1>, vector<1x128xf32>
    %cst_59 = arith.constant dense<0.000000e+00> : vector<1xf32>
    %267 = vector.multi_reduction <add>, %266, %cst_59 [1] : vector<1x128xf32> to vector<1xf32>
    %268 = vector.shape_cast %267 : vector<1xf32> to vector<1x1xf32>
    %cst_60 = arith.constant 0.000000e+00 : f32
    %269 = vector.broadcast %cst_60 : f32 to vector<1x128xf32>
    %270 = arith.select %264, %3, %269 : vector<1x128xi1>, vector<1x128xf32>
    %cst_61 = arith.constant dense<0.000000e+00> : vector<1xf32>
    %271 = vector.multi_reduction <add>, %270, %cst_61 [1] : vector<1x128xf32> to vector<1xf32>
    %272 = vector.shape_cast %271 : vector<1xf32> to vector<1x1xf32>
    %cst_62 = arith.constant 0.000000e+00 : f32
    %273 = vector.broadcast %cst_62 : f32 to vector<1x128xf32>
    %274 = arith.select %264, %4, %273 : vector<1x128xi1>, vector<1x128xf32>
    %cst_63 = arith.constant dense<0.000000e+00> : vector<1xf32>
    %275 = vector.multi_reduction <add>, %274, %cst_63 [1] : vector<1x128xf32> to vector<1xf32>
    %276 = vector.shape_cast %275 : vector<1xf32> to vector<1x1xf32>
    %277 = tpu.concatenate %268, %272, %276 in 1 : vector<1x1xf32>, vector<1x1xf32>, vector<1x1xf32> -> vector<1x3xf32>
    %278 = vector.extract_strided_slice %277 {offsets = [0, 0], sizes = [1, 1], strides = [1, 1]} : vector<1x3xf32> to vector<1x1xf32>
    %279 = vector.broadcast %278 : vector<1x1xf32> to vector<1x128xf32>
    %280 = arith.subf %2, %279 : vector<1x128xf32>
    %281 = arith.mulf %280, %280 : vector<1x128xf32>
    %282 = vector.extract_strided_slice %277 {offsets = [0, 1], sizes = [1, 1], strides = [1, 1]} : vector<1x3xf32> to vector<1x1xf32>
    %283 = vector.broadcast %282 : vector<1x1xf32> to vector<1x128xf32>
    %284 = arith.subf %3, %283 : vector<1x128xf32>
    %285 = arith.mulf %284, %284 : vector<1x128xf32>
    %286 = arith.addf %281, %285 : vector<1x128xf32>
    %287 = vector.extract_strided_slice %277 {offsets = [0, 2], sizes = [1, 1], strides = [1, 1]} : vector<1x3xf32> to vector<1x1xf32>
    %288 = vector.broadcast %287 : vector<1x1xf32> to vector<1x128xf32>
    %289 = arith.subf %4, %288 : vector<1x128xf32>
    %290 = arith.mulf %289, %289 : vector<1x128xf32>
    %291 = arith.addf %286, %290 : vector<1x128xf32>
    %292 = arith.minimumf %254, %291 : vector<1x128xf32>
    %cst_64 = arith.constant dense<0xFF800000> : vector<1xf32>
    %293 = vector.multi_reduction <maximumf>, %292, %cst_64 [1] : vector<1x128xf32> to vector<1xf32>
    %294 = vector.shape_cast %293 : vector<1xf32> to vector<1x1xf32>
    %295 = vector.broadcast %294 : vector<1x1xf32> to vector<1x128xf32>
    %296 = arith.cmpf oge, %292, %295 : vector<1x128xf32>
    %c128_i32_65 = arith.constant 128 : i32
    %297 = vector.broadcast %c128_i32_65 : i32 to vector<1x128xi32>
    %298 = arith.select %296, %5, %297 : vector<1x128xi1>, vector<1x128xi32>
    %cst_66 = arith.constant dense<2147483647> : vector<1xi32>
    %299 = vector.multi_reduction <minsi>, %298, %cst_66 [1] : vector<1x128xi32> to vector<1xi32>
    %300 = vector.shape_cast %299 : vector<1xi32> to vector<1x1xi32>
    %301 = vector.broadcast %300 : vector<1x1xi32> to vector<1x128xi32>
    %302 = arith.cmpi eq, %5, %301 : vector<1x128xi32>
    %cst_67 = arith.constant 0.000000e+00 : f32
    %303 = vector.broadcast %cst_67 : f32 to vector<1x128xf32>
    %304 = arith.select %302, %2, %303 : vector<1x128xi1>, vector<1x128xf32>
    %cst_68 = arith.constant dense<0.000000e+00> : vector<1xf32>
    %305 = vector.multi_reduction <add>, %304, %cst_68 [1] : vector<1x128xf32> to vector<1xf32>
    %306 = vector.shape_cast %305 : vector<1xf32> to vector<1x1xf32>
    %cst_69 = arith.constant 0.000000e+00 : f32
    %307 = vector.broadcast %cst_69 : f32 to vector<1x128xf32>
    %308 = arith.select %302, %3, %307 : vector<1x128xi1>, vector<1x128xf32>
    %cst_70 = arith.constant dense<0.000000e+00> : vector<1xf32>
    %309 = vector.multi_reduction <add>, %308, %cst_70 [1] : vector<1x128xf32> to vector<1xf32>
    %310 = vector.shape_cast %309 : vector<1xf32> to vector<1x1xf32>
    %cst_71 = arith.constant 0.000000e+00 : f32
    %311 = vector.broadcast %cst_71 : f32 to vector<1x128xf32>
    %312 = arith.select %302, %4, %311 : vector<1x128xi1>, vector<1x128xf32>
    %cst_72 = arith.constant dense<0.000000e+00> : vector<1xf32>
    %313 = vector.multi_reduction <add>, %312, %cst_72 [1] : vector<1x128xf32> to vector<1xf32>
    %314 = vector.shape_cast %313 : vector<1xf32> to vector<1x1xf32>
    %315 = tpu.concatenate %306, %310, %314 in 1 : vector<1x1xf32>, vector<1x1xf32>, vector<1x1xf32> -> vector<1x3xf32>
    %316 = vector.extract_strided_slice %315 {offsets = [0, 0], sizes = [1, 1], strides = [1, 1]} : vector<1x3xf32> to vector<1x1xf32>
    %317 = vector.broadcast %316 : vector<1x1xf32> to vector<1x128xf32>
    %318 = arith.subf %2, %317 : vector<1x128xf32>
    %319 = arith.mulf %318, %318 : vector<1x128xf32>
    %320 = vector.extract_strided_slice %315 {offsets = [0, 1], sizes = [1, 1], strides = [1, 1]} : vector<1x3xf32> to vector<1x1xf32>
    %321 = vector.broadcast %320 : vector<1x1xf32> to vector<1x128xf32>
    %322 = arith.subf %3, %321 : vector<1x128xf32>
    %323 = arith.mulf %322, %322 : vector<1x128xf32>
    %324 = arith.addf %319, %323 : vector<1x128xf32>
    %325 = vector.extract_strided_slice %315 {offsets = [0, 2], sizes = [1, 1], strides = [1, 1]} : vector<1x3xf32> to vector<1x1xf32>
    %326 = vector.broadcast %325 : vector<1x1xf32> to vector<1x128xf32>
    %327 = arith.subf %4, %326 : vector<1x128xf32>
    %328 = arith.mulf %327, %327 : vector<1x128xf32>
    %329 = arith.addf %324, %328 : vector<1x128xf32>
    %330 = arith.minimumf %292, %329 : vector<1x128xf32>
    %cst_73 = arith.constant dense<0xFF800000> : vector<1xf32>
    %331 = vector.multi_reduction <maximumf>, %330, %cst_73 [1] : vector<1x128xf32> to vector<1xf32>
    %332 = vector.shape_cast %331 : vector<1xf32> to vector<1x1xf32>
    %333 = vector.broadcast %332 : vector<1x1xf32> to vector<1x128xf32>
    %334 = arith.cmpf oge, %330, %333 : vector<1x128xf32>
    %c128_i32_74 = arith.constant 128 : i32
    %335 = vector.broadcast %c128_i32_74 : i32 to vector<1x128xi32>
    %336 = arith.select %334, %5, %335 : vector<1x128xi1>, vector<1x128xi32>
    %cst_75 = arith.constant dense<2147483647> : vector<1xi32>
    %337 = vector.multi_reduction <minsi>, %336, %cst_75 [1] : vector<1x128xi32> to vector<1xi32>
    %338 = vector.shape_cast %337 : vector<1xi32> to vector<1x1xi32>
    %339 = vector.broadcast %338 : vector<1x1xi32> to vector<1x128xi32>
    %340 = arith.cmpi eq, %5, %339 : vector<1x128xi32>
    %cst_76 = arith.constant 0.000000e+00 : f32
    %341 = vector.broadcast %cst_76 : f32 to vector<1x128xf32>
    %342 = arith.select %340, %2, %341 : vector<1x128xi1>, vector<1x128xf32>
    %cst_77 = arith.constant dense<0.000000e+00> : vector<1xf32>
    %343 = vector.multi_reduction <add>, %342, %cst_77 [1] : vector<1x128xf32> to vector<1xf32>
    %344 = vector.shape_cast %343 : vector<1xf32> to vector<1x1xf32>
    %cst_78 = arith.constant 0.000000e+00 : f32
    %345 = vector.broadcast %cst_78 : f32 to vector<1x128xf32>
    %346 = arith.select %340, %3, %345 : vector<1x128xi1>, vector<1x128xf32>
    %cst_79 = arith.constant dense<0.000000e+00> : vector<1xf32>
    %347 = vector.multi_reduction <add>, %346, %cst_79 [1] : vector<1x128xf32> to vector<1xf32>
    %348 = vector.shape_cast %347 : vector<1xf32> to vector<1x1xf32>
    %cst_80 = arith.constant 0.000000e+00 : f32
    %349 = vector.broadcast %cst_80 : f32 to vector<1x128xf32>
    %350 = arith.select %340, %4, %349 : vector<1x128xi1>, vector<1x128xf32>
    %cst_81 = arith.constant dense<0.000000e+00> : vector<1xf32>
    %351 = vector.multi_reduction <add>, %350, %cst_81 [1] : vector<1x128xf32> to vector<1xf32>
    %352 = vector.shape_cast %351 : vector<1xf32> to vector<1x1xf32>
    %353 = tpu.concatenate %344, %348, %352 in 1 : vector<1x1xf32>, vector<1x1xf32>, vector<1x1xf32> -> vector<1x3xf32>
    %354 = vector.extract_strided_slice %353 {offsets = [0, 0], sizes = [1, 1], strides = [1, 1]} : vector<1x3xf32> to vector<1x1xf32>
    %355 = vector.broadcast %354 : vector<1x1xf32> to vector<1x128xf32>
    %356 = arith.subf %2, %355 : vector<1x128xf32>
    %357 = arith.mulf %356, %356 : vector<1x128xf32>
    %358 = vector.extract_strided_slice %353 {offsets = [0, 1], sizes = [1, 1], strides = [1, 1]} : vector<1x3xf32> to vector<1x1xf32>
    %359 = vector.broadcast %358 : vector<1x1xf32> to vector<1x128xf32>
    %360 = arith.subf %3, %359 : vector<1x128xf32>
    %361 = arith.mulf %360, %360 : vector<1x128xf32>
    %362 = arith.addf %357, %361 : vector<1x128xf32>
    %363 = vector.extract_strided_slice %353 {offsets = [0, 2], sizes = [1, 1], strides = [1, 1]} : vector<1x3xf32> to vector<1x1xf32>
    %364 = vector.broadcast %363 : vector<1x1xf32> to vector<1x128xf32>
    %365 = arith.subf %4, %364 : vector<1x128xf32>
    %366 = arith.mulf %365, %365 : vector<1x128xf32>
    %367 = arith.addf %362, %366 : vector<1x128xf32>
    %368 = arith.minimumf %330, %367 : vector<1x128xf32>
    %cst_82 = arith.constant dense<0xFF800000> : vector<1xf32>
    %369 = vector.multi_reduction <maximumf>, %368, %cst_82 [1] : vector<1x128xf32> to vector<1xf32>
    %370 = vector.shape_cast %369 : vector<1xf32> to vector<1x1xf32>
    %371 = vector.broadcast %370 : vector<1x1xf32> to vector<1x128xf32>
    %372 = arith.cmpf oge, %368, %371 : vector<1x128xf32>
    %c128_i32_83 = arith.constant 128 : i32
    %373 = vector.broadcast %c128_i32_83 : i32 to vector<1x128xi32>
    %374 = arith.select %372, %5, %373 : vector<1x128xi1>, vector<1x128xi32>
    %cst_84 = arith.constant dense<2147483647> : vector<1xi32>
    %375 = vector.multi_reduction <minsi>, %374, %cst_84 [1] : vector<1x128xi32> to vector<1xi32>
    %376 = vector.shape_cast %375 : vector<1xi32> to vector<1x1xi32>
    %377 = vector.broadcast %376 : vector<1x1xi32> to vector<1x128xi32>
    %378 = arith.cmpi eq, %5, %377 : vector<1x128xi32>
    %cst_85 = arith.constant 0.000000e+00 : f32
    %379 = vector.broadcast %cst_85 : f32 to vector<1x128xf32>
    %380 = arith.select %378, %2, %379 : vector<1x128xi1>, vector<1x128xf32>
    %cst_86 = arith.constant dense<0.000000e+00> : vector<1xf32>
    %381 = vector.multi_reduction <add>, %380, %cst_86 [1] : vector<1x128xf32> to vector<1xf32>
    %382 = vector.shape_cast %381 : vector<1xf32> to vector<1x1xf32>
    %cst_87 = arith.constant 0.000000e+00 : f32
    %383 = vector.broadcast %cst_87 : f32 to vector<1x128xf32>
    %384 = arith.select %378, %3, %383 : vector<1x128xi1>, vector<1x128xf32>
    %cst_88 = arith.constant dense<0.000000e+00> : vector<1xf32>
    %385 = vector.multi_reduction <add>, %384, %cst_88 [1] : vector<1x128xf32> to vector<1xf32>
    %386 = vector.shape_cast %385 : vector<1xf32> to vector<1x1xf32>
    %cst_89 = arith.constant 0.000000e+00 : f32
    %387 = vector.broadcast %cst_89 : f32 to vector<1x128xf32>
    %388 = arith.select %378, %4, %387 : vector<1x128xi1>, vector<1x128xf32>
    %cst_90 = arith.constant dense<0.000000e+00> : vector<1xf32>
    %389 = vector.multi_reduction <add>, %388, %cst_90 [1] : vector<1x128xf32> to vector<1xf32>
    %390 = vector.shape_cast %389 : vector<1xf32> to vector<1x1xf32>
    %391 = tpu.concatenate %382, %386, %390 in 1 : vector<1x1xf32>, vector<1x1xf32>, vector<1x1xf32> -> vector<1x3xf32>
    %392 = vector.extract_strided_slice %391 {offsets = [0, 0], sizes = [1, 1], strides = [1, 1]} : vector<1x3xf32> to vector<1x1xf32>
    %393 = vector.broadcast %392 : vector<1x1xf32> to vector<1x128xf32>
    %394 = arith.subf %2, %393 : vector<1x128xf32>
    %395 = arith.mulf %394, %394 : vector<1x128xf32>
    %396 = vector.extract_strided_slice %391 {offsets = [0, 1], sizes = [1, 1], strides = [1, 1]} : vector<1x3xf32> to vector<1x1xf32>
    %397 = vector.broadcast %396 : vector<1x1xf32> to vector<1x128xf32>
    %398 = arith.subf %3, %397 : vector<1x128xf32>
    %399 = arith.mulf %398, %398 : vector<1x128xf32>
    %400 = arith.addf %395, %399 : vector<1x128xf32>
    %401 = vector.extract_strided_slice %391 {offsets = [0, 2], sizes = [1, 1], strides = [1, 1]} : vector<1x3xf32> to vector<1x1xf32>
    %402 = vector.broadcast %401 : vector<1x1xf32> to vector<1x128xf32>
    %403 = arith.subf %4, %402 : vector<1x128xf32>
    %404 = arith.mulf %403, %403 : vector<1x128xf32>
    %405 = arith.addf %400, %404 : vector<1x128xf32>
    %406 = arith.minimumf %368, %405 : vector<1x128xf32>
    %cst_91 = arith.constant dense<0xFF800000> : vector<1xf32>
    %407 = vector.multi_reduction <maximumf>, %406, %cst_91 [1] : vector<1x128xf32> to vector<1xf32>
    %408 = vector.shape_cast %407 : vector<1xf32> to vector<1x1xf32>
    %409 = vector.broadcast %408 : vector<1x1xf32> to vector<1x128xf32>
    %410 = arith.cmpf oge, %406, %409 : vector<1x128xf32>
    %c128_i32_92 = arith.constant 128 : i32
    %411 = vector.broadcast %c128_i32_92 : i32 to vector<1x128xi32>
    %412 = arith.select %410, %5, %411 : vector<1x128xi1>, vector<1x128xi32>
    %cst_93 = arith.constant dense<2147483647> : vector<1xi32>
    %413 = vector.multi_reduction <minsi>, %412, %cst_93 [1] : vector<1x128xi32> to vector<1xi32>
    %414 = vector.shape_cast %413 : vector<1xi32> to vector<1x1xi32>
    %415 = vector.broadcast %414 : vector<1x1xi32> to vector<1x128xi32>
    %416 = arith.cmpi eq, %5, %415 : vector<1x128xi32>
    %cst_94 = arith.constant 0.000000e+00 : f32
    %417 = vector.broadcast %cst_94 : f32 to vector<1x128xf32>
    %418 = arith.select %416, %2, %417 : vector<1x128xi1>, vector<1x128xf32>
    %cst_95 = arith.constant dense<0.000000e+00> : vector<1xf32>
    %419 = vector.multi_reduction <add>, %418, %cst_95 [1] : vector<1x128xf32> to vector<1xf32>
    %420 = vector.shape_cast %419 : vector<1xf32> to vector<1x1xf32>
    %cst_96 = arith.constant 0.000000e+00 : f32
    %421 = vector.broadcast %cst_96 : f32 to vector<1x128xf32>
    %422 = arith.select %416, %3, %421 : vector<1x128xi1>, vector<1x128xf32>
    %cst_97 = arith.constant dense<0.000000e+00> : vector<1xf32>
    %423 = vector.multi_reduction <add>, %422, %cst_97 [1] : vector<1x128xf32> to vector<1xf32>
    %424 = vector.shape_cast %423 : vector<1xf32> to vector<1x1xf32>
    %cst_98 = arith.constant 0.000000e+00 : f32
    %425 = vector.broadcast %cst_98 : f32 to vector<1x128xf32>
    %426 = arith.select %416, %4, %425 : vector<1x128xi1>, vector<1x128xf32>
    %cst_99 = arith.constant dense<0.000000e+00> : vector<1xf32>
    %427 = vector.multi_reduction <add>, %426, %cst_99 [1] : vector<1x128xf32> to vector<1xf32>
    %428 = vector.shape_cast %427 : vector<1xf32> to vector<1x1xf32>
    %429 = tpu.concatenate %420, %424, %428 in 1 : vector<1x1xf32>, vector<1x1xf32>, vector<1x1xf32> -> vector<1x3xf32>
    %430 = vector.extract_strided_slice %429 {offsets = [0, 0], sizes = [1, 1], strides = [1, 1]} : vector<1x3xf32> to vector<1x1xf32>
    %431 = vector.broadcast %430 : vector<1x1xf32> to vector<1x128xf32>
    %432 = arith.subf %2, %431 : vector<1x128xf32>
    %433 = arith.mulf %432, %432 : vector<1x128xf32>
    %434 = vector.extract_strided_slice %429 {offsets = [0, 1], sizes = [1, 1], strides = [1, 1]} : vector<1x3xf32> to vector<1x1xf32>
    %435 = vector.broadcast %434 : vector<1x1xf32> to vector<1x128xf32>
    %436 = arith.subf %3, %435 : vector<1x128xf32>
    %437 = arith.mulf %436, %436 : vector<1x128xf32>
    %438 = arith.addf %433, %437 : vector<1x128xf32>
    %439 = vector.extract_strided_slice %429 {offsets = [0, 2], sizes = [1, 1], strides = [1, 1]} : vector<1x3xf32> to vector<1x1xf32>
    %440 = vector.broadcast %439 : vector<1x1xf32> to vector<1x128xf32>
    %441 = arith.subf %4, %440 : vector<1x128xf32>
    %442 = arith.mulf %441, %441 : vector<1x128xf32>
    %443 = arith.addf %438, %442 : vector<1x128xf32>
    %444 = arith.minimumf %406, %443 : vector<1x128xf32>
    %cst_100 = arith.constant dense<0xFF800000> : vector<1xf32>
    %445 = vector.multi_reduction <maximumf>, %444, %cst_100 [1] : vector<1x128xf32> to vector<1xf32>
    %446 = vector.shape_cast %445 : vector<1xf32> to vector<1x1xf32>
    %447 = vector.broadcast %446 : vector<1x1xf32> to vector<1x128xf32>
    %448 = arith.cmpf oge, %444, %447 : vector<1x128xf32>
    %c128_i32_101 = arith.constant 128 : i32
    %449 = vector.broadcast %c128_i32_101 : i32 to vector<1x128xi32>
    %450 = arith.select %448, %5, %449 : vector<1x128xi1>, vector<1x128xi32>
    %cst_102 = arith.constant dense<2147483647> : vector<1xi32>
    %451 = vector.multi_reduction <minsi>, %450, %cst_102 [1] : vector<1x128xi32> to vector<1xi32>
    %452 = vector.shape_cast %451 : vector<1xi32> to vector<1x1xi32>
    %453 = vector.broadcast %452 : vector<1x1xi32> to vector<1x128xi32>
    %454 = arith.cmpi eq, %5, %453 : vector<1x128xi32>
    %cst_103 = arith.constant 0.000000e+00 : f32
    %455 = vector.broadcast %cst_103 : f32 to vector<1x128xf32>
    %456 = arith.select %454, %2, %455 : vector<1x128xi1>, vector<1x128xf32>
    %cst_104 = arith.constant dense<0.000000e+00> : vector<1xf32>
    %457 = vector.multi_reduction <add>, %456, %cst_104 [1] : vector<1x128xf32> to vector<1xf32>
    %458 = vector.shape_cast %457 : vector<1xf32> to vector<1x1xf32>
    %cst_105 = arith.constant 0.000000e+00 : f32
    %459 = vector.broadcast %cst_105 : f32 to vector<1x128xf32>
    %460 = arith.select %454, %3, %459 : vector<1x128xi1>, vector<1x128xf32>
    %cst_106 = arith.constant dense<0.000000e+00> : vector<1xf32>
    %461 = vector.multi_reduction <add>, %460, %cst_106 [1] : vector<1x128xf32> to vector<1xf32>
    %462 = vector.shape_cast %461 : vector<1xf32> to vector<1x1xf32>
    %cst_107 = arith.constant 0.000000e+00 : f32
    %463 = vector.broadcast %cst_107 : f32 to vector<1x128xf32>
    %464 = arith.select %454, %4, %463 : vector<1x128xi1>, vector<1x128xf32>
    %cst_108 = arith.constant dense<0.000000e+00> : vector<1xf32>
    %465 = vector.multi_reduction <add>, %464, %cst_108 [1] : vector<1x128xf32> to vector<1xf32>
    %466 = vector.shape_cast %465 : vector<1xf32> to vector<1x1xf32>
    %467 = tpu.concatenate %458, %462, %466 in 1 : vector<1x1xf32>, vector<1x1xf32>, vector<1x1xf32> -> vector<1x3xf32>
    %468 = vector.extract_strided_slice %467 {offsets = [0, 0], sizes = [1, 1], strides = [1, 1]} : vector<1x3xf32> to vector<1x1xf32>
    %469 = vector.broadcast %468 : vector<1x1xf32> to vector<1x128xf32>
    %470 = arith.subf %2, %469 : vector<1x128xf32>
    %471 = arith.mulf %470, %470 : vector<1x128xf32>
    %472 = vector.extract_strided_slice %467 {offsets = [0, 1], sizes = [1, 1], strides = [1, 1]} : vector<1x3xf32> to vector<1x1xf32>
    %473 = vector.broadcast %472 : vector<1x1xf32> to vector<1x128xf32>
    %474 = arith.subf %3, %473 : vector<1x128xf32>
    %475 = arith.mulf %474, %474 : vector<1x128xf32>
    %476 = arith.addf %471, %475 : vector<1x128xf32>
    %477 = vector.extract_strided_slice %467 {offsets = [0, 2], sizes = [1, 1], strides = [1, 1]} : vector<1x3xf32> to vector<1x1xf32>
    %478 = vector.broadcast %477 : vector<1x1xf32> to vector<1x128xf32>
    %479 = arith.subf %4, %478 : vector<1x128xf32>
    %480 = arith.mulf %479, %479 : vector<1x128xf32>
    %481 = arith.addf %476, %480 : vector<1x128xf32>
    %482 = arith.minimumf %444, %481 : vector<1x128xf32>
    %cst_109 = arith.constant dense<0xFF800000> : vector<1xf32>
    %483 = vector.multi_reduction <maximumf>, %482, %cst_109 [1] : vector<1x128xf32> to vector<1xf32>
    %484 = vector.shape_cast %483 : vector<1xf32> to vector<1x1xf32>
    %485 = vector.broadcast %484 : vector<1x1xf32> to vector<1x128xf32>
    %486 = arith.cmpf oge, %482, %485 : vector<1x128xf32>
    %c128_i32_110 = arith.constant 128 : i32
    %487 = vector.broadcast %c128_i32_110 : i32 to vector<1x128xi32>
    %488 = arith.select %486, %5, %487 : vector<1x128xi1>, vector<1x128xi32>
    %cst_111 = arith.constant dense<2147483647> : vector<1xi32>
    %489 = vector.multi_reduction <minsi>, %488, %cst_111 [1] : vector<1x128xi32> to vector<1xi32>
    %490 = vector.shape_cast %489 : vector<1xi32> to vector<1x1xi32>
    %491 = vector.broadcast %490 : vector<1x1xi32> to vector<1x128xi32>
    %492 = arith.cmpi eq, %5, %491 : vector<1x128xi32>
    %cst_112 = arith.constant 0.000000e+00 : f32
    %493 = vector.broadcast %cst_112 : f32 to vector<1x128xf32>
    %494 = arith.select %492, %2, %493 : vector<1x128xi1>, vector<1x128xf32>
    %cst_113 = arith.constant dense<0.000000e+00> : vector<1xf32>
    %495 = vector.multi_reduction <add>, %494, %cst_113 [1] : vector<1x128xf32> to vector<1xf32>
    %496 = vector.shape_cast %495 : vector<1xf32> to vector<1x1xf32>
    %cst_114 = arith.constant 0.000000e+00 : f32
    %497 = vector.broadcast %cst_114 : f32 to vector<1x128xf32>
    %498 = arith.select %492, %3, %497 : vector<1x128xi1>, vector<1x128xf32>
    %cst_115 = arith.constant dense<0.000000e+00> : vector<1xf32>
    %499 = vector.multi_reduction <add>, %498, %cst_115 [1] : vector<1x128xf32> to vector<1xf32>
    %500 = vector.shape_cast %499 : vector<1xf32> to vector<1x1xf32>
    %cst_116 = arith.constant 0.000000e+00 : f32
    %501 = vector.broadcast %cst_116 : f32 to vector<1x128xf32>
    %502 = arith.select %492, %4, %501 : vector<1x128xi1>, vector<1x128xf32>
    %cst_117 = arith.constant dense<0.000000e+00> : vector<1xf32>
    %503 = vector.multi_reduction <add>, %502, %cst_117 [1] : vector<1x128xf32> to vector<1xf32>
    %504 = vector.shape_cast %503 : vector<1xf32> to vector<1x1xf32>
    %505 = tpu.concatenate %496, %500, %504 in 1 : vector<1x1xf32>, vector<1x1xf32>, vector<1x1xf32> -> vector<1x3xf32>
    %506 = vector.extract_strided_slice %505 {offsets = [0, 0], sizes = [1, 1], strides = [1, 1]} : vector<1x3xf32> to vector<1x1xf32>
    %507 = vector.broadcast %506 : vector<1x1xf32> to vector<1x128xf32>
    %508 = arith.subf %2, %507 : vector<1x128xf32>
    %509 = arith.mulf %508, %508 : vector<1x128xf32>
    %510 = vector.extract_strided_slice %505 {offsets = [0, 1], sizes = [1, 1], strides = [1, 1]} : vector<1x3xf32> to vector<1x1xf32>
    %511 = vector.broadcast %510 : vector<1x1xf32> to vector<1x128xf32>
    %512 = arith.subf %3, %511 : vector<1x128xf32>
    %513 = arith.mulf %512, %512 : vector<1x128xf32>
    %514 = arith.addf %509, %513 : vector<1x128xf32>
    %515 = vector.extract_strided_slice %505 {offsets = [0, 2], sizes = [1, 1], strides = [1, 1]} : vector<1x3xf32> to vector<1x1xf32>
    %516 = vector.broadcast %515 : vector<1x1xf32> to vector<1x128xf32>
    %517 = arith.subf %4, %516 : vector<1x128xf32>
    %518 = arith.mulf %517, %517 : vector<1x128xf32>
    %519 = arith.addf %514, %518 : vector<1x128xf32>
    %520 = arith.minimumf %482, %519 : vector<1x128xf32>
    %cst_118 = arith.constant dense<0xFF800000> : vector<1xf32>
    %521 = vector.multi_reduction <maximumf>, %520, %cst_118 [1] : vector<1x128xf32> to vector<1xf32>
    %522 = vector.shape_cast %521 : vector<1xf32> to vector<1x1xf32>
    %523 = vector.broadcast %522 : vector<1x1xf32> to vector<1x128xf32>
    %524 = arith.cmpf oge, %520, %523 : vector<1x128xf32>
    %c128_i32_119 = arith.constant 128 : i32
    %525 = vector.broadcast %c128_i32_119 : i32 to vector<1x128xi32>
    %526 = arith.select %524, %5, %525 : vector<1x128xi1>, vector<1x128xi32>
    %cst_120 = arith.constant dense<2147483647> : vector<1xi32>
    %527 = vector.multi_reduction <minsi>, %526, %cst_120 [1] : vector<1x128xi32> to vector<1xi32>
    %528 = vector.shape_cast %527 : vector<1xi32> to vector<1x1xi32>
    %529 = vector.broadcast %528 : vector<1x1xi32> to vector<1x128xi32>
    %530 = arith.cmpi eq, %5, %529 : vector<1x128xi32>
    %cst_121 = arith.constant 0.000000e+00 : f32
    %531 = vector.broadcast %cst_121 : f32 to vector<1x128xf32>
    %532 = arith.select %530, %2, %531 : vector<1x128xi1>, vector<1x128xf32>
    %cst_122 = arith.constant dense<0.000000e+00> : vector<1xf32>
    %533 = vector.multi_reduction <add>, %532, %cst_122 [1] : vector<1x128xf32> to vector<1xf32>
    %534 = vector.shape_cast %533 : vector<1xf32> to vector<1x1xf32>
    %cst_123 = arith.constant 0.000000e+00 : f32
    %535 = vector.broadcast %cst_123 : f32 to vector<1x128xf32>
    %536 = arith.select %530, %3, %535 : vector<1x128xi1>, vector<1x128xf32>
    %cst_124 = arith.constant dense<0.000000e+00> : vector<1xf32>
    %537 = vector.multi_reduction <add>, %536, %cst_124 [1] : vector<1x128xf32> to vector<1xf32>
    %538 = vector.shape_cast %537 : vector<1xf32> to vector<1x1xf32>
    %cst_125 = arith.constant 0.000000e+00 : f32
    %539 = vector.broadcast %cst_125 : f32 to vector<1x128xf32>
    %540 = arith.select %530, %4, %539 : vector<1x128xi1>, vector<1x128xf32>
    %cst_126 = arith.constant dense<0.000000e+00> : vector<1xf32>
    %541 = vector.multi_reduction <add>, %540, %cst_126 [1] : vector<1x128xf32> to vector<1xf32>
    %542 = vector.shape_cast %541 : vector<1xf32> to vector<1x1xf32>
    %543 = tpu.concatenate %534, %538, %542 in 1 : vector<1x1xf32>, vector<1x1xf32>, vector<1x1xf32> -> vector<1x3xf32>
    %544 = vector.extract_strided_slice %543 {offsets = [0, 0], sizes = [1, 1], strides = [1, 1]} : vector<1x3xf32> to vector<1x1xf32>
    %545 = vector.broadcast %544 : vector<1x1xf32> to vector<1x128xf32>
    %546 = arith.subf %2, %545 : vector<1x128xf32>
    %547 = arith.mulf %546, %546 : vector<1x128xf32>
    %548 = vector.extract_strided_slice %543 {offsets = [0, 1], sizes = [1, 1], strides = [1, 1]} : vector<1x3xf32> to vector<1x1xf32>
    %549 = vector.broadcast %548 : vector<1x1xf32> to vector<1x128xf32>
    %550 = arith.subf %3, %549 : vector<1x128xf32>
    %551 = arith.mulf %550, %550 : vector<1x128xf32>
    %552 = arith.addf %547, %551 : vector<1x128xf32>
    %553 = vector.extract_strided_slice %543 {offsets = [0, 2], sizes = [1, 1], strides = [1, 1]} : vector<1x3xf32> to vector<1x1xf32>
    %554 = vector.broadcast %553 : vector<1x1xf32> to vector<1x128xf32>
    %555 = arith.subf %4, %554 : vector<1x128xf32>
    %556 = arith.mulf %555, %555 : vector<1x128xf32>
    %557 = arith.addf %552, %556 : vector<1x128xf32>
    %558 = arith.minimumf %520, %557 : vector<1x128xf32>
    %cst_127 = arith.constant dense<0xFF800000> : vector<1xf32>
    %559 = vector.multi_reduction <maximumf>, %558, %cst_127 [1] : vector<1x128xf32> to vector<1xf32>
    %560 = vector.shape_cast %559 : vector<1xf32> to vector<1x1xf32>
    %561 = vector.broadcast %560 : vector<1x1xf32> to vector<1x128xf32>
    %562 = arith.cmpf oge, %558, %561 : vector<1x128xf32>
    %c128_i32_128 = arith.constant 128 : i32
    %563 = vector.broadcast %c128_i32_128 : i32 to vector<1x128xi32>
    %564 = arith.select %562, %5, %563 : vector<1x128xi1>, vector<1x128xi32>
    %cst_129 = arith.constant dense<2147483647> : vector<1xi32>
    %565 = vector.multi_reduction <minsi>, %564, %cst_129 [1] : vector<1x128xi32> to vector<1xi32>
    %566 = vector.shape_cast %565 : vector<1xi32> to vector<1x1xi32>
    %567 = vector.broadcast %566 : vector<1x1xi32> to vector<1x128xi32>
    %568 = arith.cmpi eq, %5, %567 : vector<1x128xi32>
    %cst_130 = arith.constant 0.000000e+00 : f32
    %569 = vector.broadcast %cst_130 : f32 to vector<1x128xf32>
    %570 = arith.select %568, %2, %569 : vector<1x128xi1>, vector<1x128xf32>
    %cst_131 = arith.constant dense<0.000000e+00> : vector<1xf32>
    %571 = vector.multi_reduction <add>, %570, %cst_131 [1] : vector<1x128xf32> to vector<1xf32>
    %572 = vector.shape_cast %571 : vector<1xf32> to vector<1x1xf32>
    %cst_132 = arith.constant 0.000000e+00 : f32
    %573 = vector.broadcast %cst_132 : f32 to vector<1x128xf32>
    %574 = arith.select %568, %3, %573 : vector<1x128xi1>, vector<1x128xf32>
    %cst_133 = arith.constant dense<0.000000e+00> : vector<1xf32>
    %575 = vector.multi_reduction <add>, %574, %cst_133 [1] : vector<1x128xf32> to vector<1xf32>
    %576 = vector.shape_cast %575 : vector<1xf32> to vector<1x1xf32>
    %cst_134 = arith.constant 0.000000e+00 : f32
    %577 = vector.broadcast %cst_134 : f32 to vector<1x128xf32>
    %578 = arith.select %568, %4, %577 : vector<1x128xi1>, vector<1x128xf32>
    %cst_135 = arith.constant dense<0.000000e+00> : vector<1xf32>
    %579 = vector.multi_reduction <add>, %578, %cst_135 [1] : vector<1x128xf32> to vector<1xf32>
    %580 = vector.shape_cast %579 : vector<1xf32> to vector<1x1xf32>
    %581 = tpu.concatenate %572, %576, %580 in 1 : vector<1x1xf32>, vector<1x1xf32>, vector<1x1xf32> -> vector<1x3xf32>
    %582 = tpu.concatenate %11, %49, %87, %125, %163, %201, %239, %277, %315, %353, %391, %429, %467, %505, %543, %581 in 0 : vector<1x3xf32>, vector<1x3xf32>, vector<1x3xf32>, vector<1x3xf32>, vector<1x3xf32>, vector<1x3xf32>, vector<1x3xf32>, vector<1x3xf32>, vector<1x3xf32>, vector<1x3xf32>, vector<1x3xf32>, vector<1x3xf32>, vector<1x3xf32>, vector<1x3xf32>, vector<1x3xf32>, vector<1x3xf32> -> vector<16x3xf32>
    %583 = arith.mulf %2, %2 : vector<1x128xf32>
    %584 = arith.mulf %3, %3 : vector<1x128xf32>
    %585 = arith.addf %583, %584 : vector<1x128xf32>
    %586 = arith.mulf %4, %4 : vector<1x128xf32>
    %587 = arith.addf %585, %586 : vector<1x128xf32>
    %588 = vector.extract_strided_slice %582 {offsets = [0, 0], sizes = [16, 1], strides = [1, 1]} : vector<16x3xf32> to vector<16x1xf32>
    %589 = arith.mulf %588, %588 : vector<16x1xf32>
    %590 = vector.extract_strided_slice %582 {offsets = [0, 1], sizes = [16, 1], strides = [1, 1]} : vector<16x3xf32> to vector<16x1xf32>
    %591 = arith.mulf %590, %590 : vector<16x1xf32>
    %592 = arith.addf %589, %591 : vector<16x1xf32>
    %593 = vector.extract_strided_slice %582 {offsets = [0, 2], sizes = [16, 1], strides = [1, 1]} : vector<16x3xf32> to vector<16x1xf32>
    %594 = arith.mulf %593, %593 : vector<16x1xf32>
    %595 = arith.addf %592, %594 : vector<16x1xf32>
    %596 = vector.extract_strided_slice %582 {offsets = [0, 0], sizes = [16, 1], strides = [1, 1]} : vector<16x3xf32> to vector<16x1xf32>
    %597 = vector.broadcast %596 : vector<16x1xf32> to vector<16x128xf32>
    %598 = vector.broadcast %2 : vector<1x128xf32> to vector<16x128xf32>
    %599 = arith.mulf %597, %598 : vector<16x128xf32>
    %600 = vector.extract_strided_slice %582 {offsets = [0, 1], sizes = [16, 1], strides = [1, 1]} : vector<16x3xf32> to vector<16x1xf32>
    %601 = vector.broadcast %600 : vector<16x1xf32> to vector<16x128xf32>
    %602 = vector.broadcast %3 : vector<1x128xf32> to vector<16x128xf32>
    %603 = arith.mulf %601, %602 : vector<16x128xf32>
    %604 = arith.addf %599, %603 : vector<16x128xf32>
    %605 = vector.extract_strided_slice %582 {offsets = [0, 2], sizes = [16, 1], strides = [1, 1]} : vector<16x3xf32> to vector<16x1xf32>
    %606 = vector.broadcast %605 : vector<16x1xf32> to vector<16x128xf32>
    %607 = vector.broadcast %4 : vector<1x128xf32> to vector<16x128xf32>
    %608 = arith.mulf %606, %607 : vector<16x128xf32>
    %609 = arith.addf %604, %608 : vector<16x128xf32>
    %610 = vector.broadcast %595 : vector<16x1xf32> to vector<16x128xf32>
    %611 = vector.broadcast %587 : vector<1x128xf32> to vector<16x128xf32>
    %612 = arith.addf %610, %611 : vector<16x128xf32>
    %cst_136 = arith.constant 2.000000e+00 : f32
    %613 = vector.broadcast %cst_136 : f32 to vector<16x128xf32>
    %614 = arith.mulf %613, %609 : vector<16x128xf32>
    %615 = arith.subf %612, %614 : vector<16x128xf32>
    %cst_137 = arith.constant dense<0x7F800000> : vector<16xf32>
    %616 = vector.multi_reduction <minimumf>, %615, %cst_137 [1] : vector<16x128xf32> to vector<16xf32>
    %617 = vector.shape_cast %616 : vector<16xf32> to vector<16x1xf32>
    %618 = vector.broadcast %617 : vector<16x1xf32> to vector<16x128xf32>
    %619 = arith.cmpf ole, %615, %618 : vector<16x128xf32>
    %c128_i32_138 = arith.constant 128 : i32
    %620 = vector.broadcast %c128_i32_138 : i32 to vector<16x128xi32>
    %621 = arith.select %619, %6, %620 : vector<16x128xi1>, vector<16x128xi32>
    %cst_139 = arith.constant dense<2147483647> : vector<16xi32>
    %622 = vector.multi_reduction <minsi>, %621, %cst_139 [1] : vector<16x128xi32> to vector<16xi32>
    %623 = vector.shape_cast %622 : vector<16xi32> to vector<16x1xi32>
    %624 = vector.broadcast %623 : vector<16x1xi32> to vector<16x128xi32>
    %625 = arith.cmpi eq, %6, %624 : vector<16x128xi32>
    %cst_140 = arith.constant 0.000000e+00 : f32
    %626 = vector.shape_cast %2 : vector<1x128xf32> to vector<1x128xf32>
    %627 = vector.broadcast %626 : vector<1x128xf32> to vector<16x128xf32>
    %628 = vector.broadcast %cst_140 : f32 to vector<16x128xf32>
    %629 = arith.select %625, %627, %628 : vector<16x128xi1>, vector<16x128xf32>
    %cst_141 = arith.constant dense<0.000000e+00> : vector<16xf32>
    %630 = vector.multi_reduction <add>, %629, %cst_141 [1] : vector<16x128xf32> to vector<16xf32>
    %631 = vector.shape_cast %630 : vector<16xf32> to vector<16x1xf32>
    %cst_142 = arith.constant 0.000000e+00 : f32
    %632 = vector.shape_cast %3 : vector<1x128xf32> to vector<1x128xf32>
    %633 = vector.broadcast %632 : vector<1x128xf32> to vector<16x128xf32>
    %634 = vector.broadcast %cst_142 : f32 to vector<16x128xf32>
    %635 = arith.select %625, %633, %634 : vector<16x128xi1>, vector<16x128xf32>
    %cst_143 = arith.constant dense<0.000000e+00> : vector<16xf32>
    %636 = vector.multi_reduction <add>, %635, %cst_143 [1] : vector<16x128xf32> to vector<16xf32>
    %637 = vector.shape_cast %636 : vector<16xf32> to vector<16x1xf32>
    %cst_144 = arith.constant 0.000000e+00 : f32
    %638 = vector.shape_cast %4 : vector<1x128xf32> to vector<1x128xf32>
    %639 = vector.broadcast %638 : vector<1x128xf32> to vector<16x128xf32>
    %640 = vector.broadcast %cst_144 : f32 to vector<16x128xf32>
    %641 = arith.select %625, %639, %640 : vector<16x128xi1>, vector<16x128xf32>
    %cst_145 = arith.constant dense<0.000000e+00> : vector<16xf32>
    %642 = vector.multi_reduction <add>, %641, %cst_145 [1] : vector<16x128xf32> to vector<16xf32>
    %643 = vector.shape_cast %642 : vector<16xf32> to vector<16x1xf32>
    %644 = tpu.concatenate %631, %637, %643 in 1 : vector<16x1xf32>, vector<16x1xf32>, vector<16x1xf32> -> vector<16x3xf32>
    %645 = arith.subf %644, %582 : vector<16x3xf32>
    %c0_146 = arith.constant 0 : index
    %c0_147 = arith.constant 0 : index
    %c0_148 = arith.constant 0 : index
    %646 = vector.load %arg2[%c0_146, %c0_147, %c0_148] : memref<1x16x24xf32, #tpu.memory_space<vmem>>, vector<1x16x3xf32>
    %647 = vector.shape_cast %646 : vector<1x16x3xf32> to vector<16x3xf32>
    %648 = vector.shape_cast %645 : vector<16x3xf32> to vector<1x16x3xf32>
    tpu.vector_store %arg2[%c0_146, %c0_147, %c0_148], %648 {strides = array<i32>} : memref<1x16x24xf32, #tpu.memory_space<vmem>>, vector<1x16x3xf32>,
    %cst_149 = arith.constant 0x7F800000 : f32
    %649 = vector.broadcast %cst_149 : f32 to vector<16x128xf32>
    %650 = arith.select %625, %649, %615 : vector<16x128xi1>, vector<16x128xf32>
    %cst_150 = arith.constant dense<0x7F800000> : vector<16xf32>
    %651 = vector.multi_reduction <minimumf>, %650, %cst_150 [1] : vector<16x128xf32> to vector<16xf32>
    %652 = vector.shape_cast %651 : vector<16xf32> to vector<16x1xf32>
    %653 = vector.broadcast %652 : vector<16x1xf32> to vector<16x128xf32>
    %654 = arith.cmpf ole, %650, %653 : vector<16x128xf32>
    %c128_i32_151 = arith.constant 128 : i32
    %655 = vector.broadcast %c128_i32_151 : i32 to vector<16x128xi32>
    %656 = arith.select %654, %6, %655 : vector<16x128xi1>, vector<16x128xi32>
    %cst_152 = arith.constant dense<2147483647> : vector<16xi32>
    %657 = vector.multi_reduction <minsi>, %656, %cst_152 [1] : vector<16x128xi32> to vector<16xi32>
    %658 = vector.shape_cast %657 : vector<16xi32> to vector<16x1xi32>
    %659 = vector.broadcast %658 : vector<16x1xi32> to vector<16x128xi32>
    %660 = arith.cmpi eq, %6, %659 : vector<16x128xi32>
    %cst_153 = arith.constant 0.000000e+00 : f32
    %661 = vector.shape_cast %2 : vector<1x128xf32> to vector<1x128xf32>
    %662 = vector.broadcast %661 : vector<1x128xf32> to vector<16x128xf32>
    %663 = vector.broadcast %cst_153 : f32 to vector<16x128xf32>
    %664 = arith.select %660, %662, %663 : vector<16x128xi1>, vector<16x128xf32>
    %cst_154 = arith.constant dense<0.000000e+00> : vector<16xf32>
    %665 = vector.multi_reduction <add>, %664, %cst_154 [1] : vector<16x128xf32> to vector<16xf32>
    %666 = vector.shape_cast %665 : vector<16xf32> to vector<16x1xf32>
    %cst_155 = arith.constant 0.000000e+00 : f32
    %667 = vector.shape_cast %3 : vector<1x128xf32> to vector<1x128xf32>
    %668 = vector.broadcast %667 : vector<1x128xf32> to vector<16x128xf32>
    %669 = vector.broadcast %cst_155 : f32 to vector<16x128xf32>
    %670 = arith.select %660, %668, %669 : vector<16x128xi1>, vector<16x128xf32>
    %cst_156 = arith.constant dense<0.000000e+00> : vector<16xf32>
    %671 = vector.multi_reduction <add>, %670, %cst_156 [1] : vector<16x128xf32> to vector<16xf32>
    %672 = vector.shape_cast %671 : vector<16xf32> to vector<16x1xf32>
    %cst_157 = arith.constant 0.000000e+00 : f32
    %673 = vector.shape_cast %4 : vector<1x128xf32> to vector<1x128xf32>
    %674 = vector.broadcast %673 : vector<1x128xf32> to vector<16x128xf32>
    %675 = vector.broadcast %cst_157 : f32 to vector<16x128xf32>
    %676 = arith.select %660, %674, %675 : vector<16x128xi1>, vector<16x128xf32>
    %cst_158 = arith.constant dense<0.000000e+00> : vector<16xf32>
    %677 = vector.multi_reduction <add>, %676, %cst_158 [1] : vector<16x128xf32> to vector<16xf32>
    %678 = vector.shape_cast %677 : vector<16xf32> to vector<16x1xf32>
    %679 = tpu.concatenate %666, %672, %678 in 1 : vector<16x1xf32>, vector<16x1xf32>, vector<16x1xf32> -> vector<16x3xf32>
    %680 = arith.subf %679, %582 : vector<16x3xf32>
    %c0_159 = arith.constant 0 : index
    %c0_160 = arith.constant 0 : index
    %c3 = arith.constant 3 : index
    %681 = vector.load %arg2[%c0_159, %c0_160, %c3] : memref<1x16x24xf32, #tpu.memory_space<vmem>>, vector<1x16x3xf32>
    %682 = vector.shape_cast %681 : vector<1x16x3xf32> to vector<16x3xf32>
    %683 = vector.shape_cast %680 : vector<16x3xf32> to vector<1x16x3xf32>
    tpu.vector_store %arg2[%c0_159, %c0_160, %c3], %683 {strides = array<i32>} : memref<1x16x24xf32, #tpu.memory_space<vmem>>, vector<1x16x3xf32>,
    %cst_161 = arith.constant 0x7F800000 : f32
    %684 = vector.broadcast %cst_161 : f32 to vector<16x128xf32>
    %685 = arith.select %660, %684, %650 : vector<16x128xi1>, vector<16x128xf32>
    %cst_162 = arith.constant dense<0x7F800000> : vector<16xf32>
    %686 = vector.multi_reduction <minimumf>, %685, %cst_162 [1] : vector<16x128xf32> to vector<16xf32>
    %687 = vector.shape_cast %686 : vector<16xf32> to vector<16x1xf32>
    %688 = vector.broadcast %687 : vector<16x1xf32> to vector<16x128xf32>
    %689 = arith.cmpf ole, %685, %688 : vector<16x128xf32>
    %c128_i32_163 = arith.constant 128 : i32
    %690 = vector.broadcast %c128_i32_163 : i32 to vector<16x128xi32>
    %691 = arith.select %689, %6, %690 : vector<16x128xi1>, vector<16x128xi32>
    %cst_164 = arith.constant dense<2147483647> : vector<16xi32>
    %692 = vector.multi_reduction <minsi>, %691, %cst_164 [1] : vector<16x128xi32> to vector<16xi32>
    %693 = vector.shape_cast %692 : vector<16xi32> to vector<16x1xi32>
    %694 = vector.broadcast %693 : vector<16x1xi32> to vector<16x128xi32>
    %695 = arith.cmpi eq, %6, %694 : vector<16x128xi32>
    %cst_165 = arith.constant 0.000000e+00 : f32
    %696 = vector.shape_cast %2 : vector<1x128xf32> to vector<1x128xf32>
    %697 = vector.broadcast %696 : vector<1x128xf32> to vector<16x128xf32>
    %698 = vector.broadcast %cst_165 : f32 to vector<16x128xf32>
    %699 = arith.select %695, %697, %698 : vector<16x128xi1>, vector<16x128xf32>
    %cst_166 = arith.constant dense<0.000000e+00> : vector<16xf32>
    %700 = vector.multi_reduction <add>, %699, %cst_166 [1] : vector<16x128xf32> to vector<16xf32>
    %701 = vector.shape_cast %700 : vector<16xf32> to vector<16x1xf32>
    %cst_167 = arith.constant 0.000000e+00 : f32
    %702 = vector.shape_cast %3 : vector<1x128xf32> to vector<1x128xf32>
    %703 = vector.broadcast %702 : vector<1x128xf32> to vector<16x128xf32>
    %704 = vector.broadcast %cst_167 : f32 to vector<16x128xf32>
    %705 = arith.select %695, %703, %704 : vector<16x128xi1>, vector<16x128xf32>
    %cst_168 = arith.constant dense<0.000000e+00> : vector<16xf32>
    %706 = vector.multi_reduction <add>, %705, %cst_168 [1] : vector<16x128xf32> to vector<16xf32>
    %707 = vector.shape_cast %706 : vector<16xf32> to vector<16x1xf32>
    %cst_169 = arith.constant 0.000000e+00 : f32
    %708 = vector.shape_cast %4 : vector<1x128xf32> to vector<1x128xf32>
    %709 = vector.broadcast %708 : vector<1x128xf32> to vector<16x128xf32>
    %710 = vector.broadcast %cst_169 : f32 to vector<16x128xf32>
    %711 = arith.select %695, %709, %710 : vector<16x128xi1>, vector<16x128xf32>
    %cst_170 = arith.constant dense<0.000000e+00> : vector<16xf32>
    %712 = vector.multi_reduction <add>, %711, %cst_170 [1] : vector<16x128xf32> to vector<16xf32>
    %713 = vector.shape_cast %712 : vector<16xf32> to vector<16x1xf32>
    %714 = tpu.concatenate %701, %707, %713 in 1 : vector<16x1xf32>, vector<16x1xf32>, vector<16x1xf32> -> vector<16x3xf32>
    %715 = arith.subf %714, %582 : vector<16x3xf32>
    %c0_171 = arith.constant 0 : index
    %c0_172 = arith.constant 0 : index
    %c6 = arith.constant 6 : index
    %716 = vector.load %arg2[%c0_171, %c0_172, %c6] : memref<1x16x24xf32, #tpu.memory_space<vmem>>, vector<1x16x3xf32>
    %717 = vector.shape_cast %716 : vector<1x16x3xf32> to vector<16x3xf32>
    %718 = vector.shape_cast %715 : vector<16x3xf32> to vector<1x16x3xf32>
    tpu.vector_store %arg2[%c0_171, %c0_172, %c6], %718 {strides = array<i32>} : memref<1x16x24xf32, #tpu.memory_space<vmem>>, vector<1x16x3xf32>,
    %cst_173 = arith.constant 0x7F800000 : f32
    %719 = vector.broadcast %cst_173 : f32 to vector<16x128xf32>
    %720 = arith.select %695, %719, %685 : vector<16x128xi1>, vector<16x128xf32>
    %cst_174 = arith.constant dense<0x7F800000> : vector<16xf32>
    %721 = vector.multi_reduction <minimumf>, %720, %cst_174 [1] : vector<16x128xf32> to vector<16xf32>
    %722 = vector.shape_cast %721 : vector<16xf32> to vector<16x1xf32>
    %723 = vector.broadcast %722 : vector<16x1xf32> to vector<16x128xf32>
    %724 = arith.cmpf ole, %720, %723 : vector<16x128xf32>
    %c128_i32_175 = arith.constant 128 : i32
    %725 = vector.broadcast %c128_i32_175 : i32 to vector<16x128xi32>
    %726 = arith.select %724, %6, %725 : vector<16x128xi1>, vector<16x128xi32>
    %cst_176 = arith.constant dense<2147483647> : vector<16xi32>
    %727 = vector.multi_reduction <minsi>, %726, %cst_176 [1] : vector<16x128xi32> to vector<16xi32>
    %728 = vector.shape_cast %727 : vector<16xi32> to vector<16x1xi32>
    %729 = vector.broadcast %728 : vector<16x1xi32> to vector<16x128xi32>
    %730 = arith.cmpi eq, %6, %729 : vector<16x128xi32>
    %cst_177 = arith.constant 0.000000e+00 : f32
    %731 = vector.shape_cast %2 : vector<1x128xf32> to vector<1x128xf32>
    %732 = vector.broadcast %731 : vector<1x128xf32> to vector<16x128xf32>
    %733 = vector.broadcast %cst_177 : f32 to vector<16x128xf32>
    %734 = arith.select %730, %732, %733 : vector<16x128xi1>, vector<16x128xf32>
    %cst_178 = arith.constant dense<0.000000e+00> : vector<16xf32>
    %735 = vector.multi_reduction <add>, %734, %cst_178 [1] : vector<16x128xf32> to vector<16xf32>
    %736 = vector.shape_cast %735 : vector<16xf32> to vector<16x1xf32>
    %cst_179 = arith.constant 0.000000e+00 : f32
    %737 = vector.shape_cast %3 : vector<1x128xf32> to vector<1x128xf32>
    %738 = vector.broadcast %737 : vector<1x128xf32> to vector<16x128xf32>
    %739 = vector.broadcast %cst_179 : f32 to vector<16x128xf32>
    %740 = arith.select %730, %738, %739 : vector<16x128xi1>, vector<16x128xf32>
    %cst_180 = arith.constant dense<0.000000e+00> : vector<16xf32>
    %741 = vector.multi_reduction <add>, %740, %cst_180 [1] : vector<16x128xf32> to vector<16xf32>
    %742 = vector.shape_cast %741 : vector<16xf32> to vector<16x1xf32>
    %cst_181 = arith.constant 0.000000e+00 : f32
    %743 = vector.shape_cast %4 : vector<1x128xf32> to vector<1x128xf32>
    %744 = vector.broadcast %743 : vector<1x128xf32> to vector<16x128xf32>
    %745 = vector.broadcast %cst_181 : f32 to vector<16x128xf32>
    %746 = arith.select %730, %744, %745 : vector<16x128xi1>, vector<16x128xf32>
    %cst_182 = arith.constant dense<0.000000e+00> : vector<16xf32>
    %747 = vector.multi_reduction <add>, %746, %cst_182 [1] : vector<16x128xf32> to vector<16xf32>
    %748 = vector.shape_cast %747 : vector<16xf32> to vector<16x1xf32>
    %749 = tpu.concatenate %736, %742, %748 in 1 : vector<16x1xf32>, vector<16x1xf32>, vector<16x1xf32> -> vector<16x3xf32>
    %750 = arith.subf %749, %582 : vector<16x3xf32>
    %c0_183 = arith.constant 0 : index
    %c0_184 = arith.constant 0 : index
    %c9 = arith.constant 9 : index
    %751 = vector.load %arg2[%c0_183, %c0_184, %c9] : memref<1x16x24xf32, #tpu.memory_space<vmem>>, vector<1x16x3xf32>
    %752 = vector.shape_cast %751 : vector<1x16x3xf32> to vector<16x3xf32>
    %753 = vector.shape_cast %750 : vector<16x3xf32> to vector<1x16x3xf32>
    tpu.vector_store %arg2[%c0_183, %c0_184, %c9], %753 {strides = array<i32>} : memref<1x16x24xf32, #tpu.memory_space<vmem>>, vector<1x16x3xf32>,
    %cst_185 = arith.constant 0x7F800000 : f32
    %754 = vector.broadcast %cst_185 : f32 to vector<16x128xf32>
    %755 = arith.select %730, %754, %720 : vector<16x128xi1>, vector<16x128xf32>
    %cst_186 = arith.constant dense<0x7F800000> : vector<16xf32>
    %756 = vector.multi_reduction <minimumf>, %755, %cst_186 [1] : vector<16x128xf32> to vector<16xf32>
    %757 = vector.shape_cast %756 : vector<16xf32> to vector<16x1xf32>
    %758 = vector.broadcast %757 : vector<16x1xf32> to vector<16x128xf32>
    %759 = arith.cmpf ole, %755, %758 : vector<16x128xf32>
    %c128_i32_187 = arith.constant 128 : i32
    %760 = vector.broadcast %c128_i32_187 : i32 to vector<16x128xi32>
    %761 = arith.select %759, %6, %760 : vector<16x128xi1>, vector<16x128xi32>
    %cst_188 = arith.constant dense<2147483647> : vector<16xi32>
    %762 = vector.multi_reduction <minsi>, %761, %cst_188 [1] : vector<16x128xi32> to vector<16xi32>
    %763 = vector.shape_cast %762 : vector<16xi32> to vector<16x1xi32>
    %764 = vector.broadcast %763 : vector<16x1xi32> to vector<16x128xi32>
    %765 = arith.cmpi eq, %6, %764 : vector<16x128xi32>
    %cst_189 = arith.constant 0.000000e+00 : f32
    %766 = vector.shape_cast %2 : vector<1x128xf32> to vector<1x128xf32>
    %767 = vector.broadcast %766 : vector<1x128xf32> to vector<16x128xf32>
    %768 = vector.broadcast %cst_189 : f32 to vector<16x128xf32>
    %769 = arith.select %765, %767, %768 : vector<16x128xi1>, vector<16x128xf32>
    %cst_190 = arith.constant dense<0.000000e+00> : vector<16xf32>
    %770 = vector.multi_reduction <add>, %769, %cst_190 [1] : vector<16x128xf32> to vector<16xf32>
    %771 = vector.shape_cast %770 : vector<16xf32> to vector<16x1xf32>
    %cst_191 = arith.constant 0.000000e+00 : f32
    %772 = vector.shape_cast %3 : vector<1x128xf32> to vector<1x128xf32>
    %773 = vector.broadcast %772 : vector<1x128xf32> to vector<16x128xf32>
    %774 = vector.broadcast %cst_191 : f32 to vector<16x128xf32>
    %775 = arith.select %765, %773, %774 : vector<16x128xi1>, vector<16x128xf32>
    %cst_192 = arith.constant dense<0.000000e+00> : vector<16xf32>
    %776 = vector.multi_reduction <add>, %775, %cst_192 [1] : vector<16x128xf32> to vector<16xf32>
    %777 = vector.shape_cast %776 : vector<16xf32> to vector<16x1xf32>
    %cst_193 = arith.constant 0.000000e+00 : f32
    %778 = vector.shape_cast %4 : vector<1x128xf32> to vector<1x128xf32>
    %779 = vector.broadcast %778 : vector<1x128xf32> to vector<16x128xf32>
    %780 = vector.broadcast %cst_193 : f32 to vector<16x128xf32>
    %781 = arith.select %765, %779, %780 : vector<16x128xi1>, vector<16x128xf32>
    %cst_194 = arith.constant dense<0.000000e+00> : vector<16xf32>
    %782 = vector.multi_reduction <add>, %781, %cst_194 [1] : vector<16x128xf32> to vector<16xf32>
    %783 = vector.shape_cast %782 : vector<16xf32> to vector<16x1xf32>
    %784 = tpu.concatenate %771, %777, %783 in 1 : vector<16x1xf32>, vector<16x1xf32>, vector<16x1xf32> -> vector<16x3xf32>
    %785 = arith.subf %784, %582 : vector<16x3xf32>
    %c0_195 = arith.constant 0 : index
    %c0_196 = arith.constant 0 : index
    %c12 = arith.constant 12 : index
    %786 = vector.load %arg2[%c0_195, %c0_196, %c12] : memref<1x16x24xf32, #tpu.memory_space<vmem>>, vector<1x16x3xf32>
    %787 = vector.shape_cast %786 : vector<1x16x3xf32> to vector<16x3xf32>
    %788 = vector.shape_cast %785 : vector<16x3xf32> to vector<1x16x3xf32>
    tpu.vector_store %arg2[%c0_195, %c0_196, %c12], %788 {strides = array<i32>} : memref<1x16x24xf32, #tpu.memory_space<vmem>>, vector<1x16x3xf32>,
    %cst_197 = arith.constant 0x7F800000 : f32
    %789 = vector.broadcast %cst_197 : f32 to vector<16x128xf32>
    %790 = arith.select %765, %789, %755 : vector<16x128xi1>, vector<16x128xf32>
    %cst_198 = arith.constant dense<0x7F800000> : vector<16xf32>
    %791 = vector.multi_reduction <minimumf>, %790, %cst_198 [1] : vector<16x128xf32> to vector<16xf32>
    %792 = vector.shape_cast %791 : vector<16xf32> to vector<16x1xf32>
    %793 = vector.broadcast %792 : vector<16x1xf32> to vector<16x128xf32>
    %794 = arith.cmpf ole, %790, %793 : vector<16x128xf32>
    %c128_i32_199 = arith.constant 128 : i32
    %795 = vector.broadcast %c128_i32_199 : i32 to vector<16x128xi32>
    %796 = arith.select %794, %6, %795 : vector<16x128xi1>, vector<16x128xi32>
    %cst_200 = arith.constant dense<2147483647> : vector<16xi32>
    %797 = vector.multi_reduction <minsi>, %796, %cst_200 [1] : vector<16x128xi32> to vector<16xi32>
    %798 = vector.shape_cast %797 : vector<16xi32> to vector<16x1xi32>
    %799 = vector.broadcast %798 : vector<16x1xi32> to vector<16x128xi32>
    %800 = arith.cmpi eq, %6, %799 : vector<16x128xi32>
    %cst_201 = arith.constant 0.000000e+00 : f32
    %801 = vector.shape_cast %2 : vector<1x128xf32> to vector<1x128xf32>
    %802 = vector.broadcast %801 : vector<1x128xf32> to vector<16x128xf32>
    %803 = vector.broadcast %cst_201 : f32 to vector<16x128xf32>
    %804 = arith.select %800, %802, %803 : vector<16x128xi1>, vector<16x128xf32>
    %cst_202 = arith.constant dense<0.000000e+00> : vector<16xf32>
    %805 = vector.multi_reduction <add>, %804, %cst_202 [1] : vector<16x128xf32> to vector<16xf32>
    %806 = vector.shape_cast %805 : vector<16xf32> to vector<16x1xf32>
    %cst_203 = arith.constant 0.000000e+00 : f32
    %807 = vector.shape_cast %3 : vector<1x128xf32> to vector<1x128xf32>
    %808 = vector.broadcast %807 : vector<1x128xf32> to vector<16x128xf32>
    %809 = vector.broadcast %cst_203 : f32 to vector<16x128xf32>
    %810 = arith.select %800, %808, %809 : vector<16x128xi1>, vector<16x128xf32>
    %cst_204 = arith.constant dense<0.000000e+00> : vector<16xf32>
    %811 = vector.multi_reduction <add>, %810, %cst_204 [1] : vector<16x128xf32> to vector<16xf32>
    %812 = vector.shape_cast %811 : vector<16xf32> to vector<16x1xf32>
    %cst_205 = arith.constant 0.000000e+00 : f32
    %813 = vector.shape_cast %4 : vector<1x128xf32> to vector<1x128xf32>
    %814 = vector.broadcast %813 : vector<1x128xf32> to vector<16x128xf32>
    %815 = vector.broadcast %cst_205 : f32 to vector<16x128xf32>
    %816 = arith.select %800, %814, %815 : vector<16x128xi1>, vector<16x128xf32>
    %cst_206 = arith.constant dense<0.000000e+00> : vector<16xf32>
    %817 = vector.multi_reduction <add>, %816, %cst_206 [1] : vector<16x128xf32> to vector<16xf32>
    %818 = vector.shape_cast %817 : vector<16xf32> to vector<16x1xf32>
    %819 = tpu.concatenate %806, %812, %818 in 1 : vector<16x1xf32>, vector<16x1xf32>, vector<16x1xf32> -> vector<16x3xf32>
    %820 = arith.subf %819, %582 : vector<16x3xf32>
    %c0_207 = arith.constant 0 : index
    %c0_208 = arith.constant 0 : index
    %c15 = arith.constant 15 : index
    %821 = vector.load %arg2[%c0_207, %c0_208, %c15] : memref<1x16x24xf32, #tpu.memory_space<vmem>>, vector<1x16x3xf32>
    %822 = vector.shape_cast %821 : vector<1x16x3xf32> to vector<16x3xf32>
    %823 = vector.shape_cast %820 : vector<16x3xf32> to vector<1x16x3xf32>
    tpu.vector_store %arg2[%c0_207, %c0_208, %c15], %823 {strides = array<i32>} : memref<1x16x24xf32, #tpu.memory_space<vmem>>, vector<1x16x3xf32>,
    %cst_209 = arith.constant 0x7F800000 : f32
    %824 = vector.broadcast %cst_209 : f32 to vector<16x128xf32>
    %825 = arith.select %800, %824, %790 : vector<16x128xi1>, vector<16x128xf32>
    %cst_210 = arith.constant dense<0x7F800000> : vector<16xf32>
    %826 = vector.multi_reduction <minimumf>, %825, %cst_210 [1] : vector<16x128xf32> to vector<16xf32>
    %827 = vector.shape_cast %826 : vector<16xf32> to vector<16x1xf32>
    %828 = vector.broadcast %827 : vector<16x1xf32> to vector<16x128xf32>
    %829 = arith.cmpf ole, %825, %828 : vector<16x128xf32>
    %c128_i32_211 = arith.constant 128 : i32
    %830 = vector.broadcast %c128_i32_211 : i32 to vector<16x128xi32>
    %831 = arith.select %829, %6, %830 : vector<16x128xi1>, vector<16x128xi32>
    %cst_212 = arith.constant dense<2147483647> : vector<16xi32>
    %832 = vector.multi_reduction <minsi>, %831, %cst_212 [1] : vector<16x128xi32> to vector<16xi32>
    %833 = vector.shape_cast %832 : vector<16xi32> to vector<16x1xi32>
    %834 = vector.broadcast %833 : vector<16x1xi32> to vector<16x128xi32>
    %835 = arith.cmpi eq, %6, %834 : vector<16x128xi32>
    %cst_213 = arith.constant 0.000000e+00 : f32
    %836 = vector.shape_cast %2 : vector<1x128xf32> to vector<1x128xf32>
    %837 = vector.broadcast %836 : vector<1x128xf32> to vector<16x128xf32>
    %838 = vector.broadcast %cst_213 : f32 to vector<16x128xf32>
    %839 = arith.select %835, %837, %838 : vector<16x128xi1>, vector<16x128xf32>
    %cst_214 = arith.constant dense<0.000000e+00> : vector<16xf32>
    %840 = vector.multi_reduction <add>, %839, %cst_214 [1] : vector<16x128xf32> to vector<16xf32>
    %841 = vector.shape_cast %840 : vector<16xf32> to vector<16x1xf32>
    %cst_215 = arith.constant 0.000000e+00 : f32
    %842 = vector.shape_cast %3 : vector<1x128xf32> to vector<1x128xf32>
    %843 = vector.broadcast %842 : vector<1x128xf32> to vector<16x128xf32>
    %844 = vector.broadcast %cst_215 : f32 to vector<16x128xf32>
    %845 = arith.select %835, %843, %844 : vector<16x128xi1>, vector<16x128xf32>
    %cst_216 = arith.constant dense<0.000000e+00> : vector<16xf32>
    %846 = vector.multi_reduction <add>, %845, %cst_216 [1] : vector<16x128xf32> to vector<16xf32>
    %847 = vector.shape_cast %846 : vector<16xf32> to vector<16x1xf32>
    %cst_217 = arith.constant 0.000000e+00 : f32
    %848 = vector.shape_cast %4 : vector<1x128xf32> to vector<1x128xf32>
    %849 = vector.broadcast %848 : vector<1x128xf32> to vector<16x128xf32>
    %850 = vector.broadcast %cst_217 : f32 to vector<16x128xf32>
    %851 = arith.select %835, %849, %850 : vector<16x128xi1>, vector<16x128xf32>
    %cst_218 = arith.constant dense<0.000000e+00> : vector<16xf32>
    %852 = vector.multi_reduction <add>, %851, %cst_218 [1] : vector<16x128xf32> to vector<16xf32>
    %853 = vector.shape_cast %852 : vector<16xf32> to vector<16x1xf32>
    %854 = tpu.concatenate %841, %847, %853 in 1 : vector<16x1xf32>, vector<16x1xf32>, vector<16x1xf32> -> vector<16x3xf32>
    %855 = arith.subf %854, %582 : vector<16x3xf32>
    %c0_219 = arith.constant 0 : index
    %c0_220 = arith.constant 0 : index
    %c18 = arith.constant 18 : index
    %856 = vector.load %arg2[%c0_219, %c0_220, %c18] : memref<1x16x24xf32, #tpu.memory_space<vmem>>, vector<1x16x3xf32>
    %857 = vector.shape_cast %856 : vector<1x16x3xf32> to vector<16x3xf32>
    %858 = vector.shape_cast %855 : vector<16x3xf32> to vector<1x16x3xf32>
    tpu.vector_store %arg2[%c0_219, %c0_220, %c18], %858 {strides = array<i32>} : memref<1x16x24xf32, #tpu.memory_space<vmem>>, vector<1x16x3xf32>,
    %cst_221 = arith.constant 0x7F800000 : f32
    %859 = vector.broadcast %cst_221 : f32 to vector<16x128xf32>
    %860 = arith.select %835, %859, %825 : vector<16x128xi1>, vector<16x128xf32>
    %cst_222 = arith.constant dense<0x7F800000> : vector<16xf32>
    %861 = vector.multi_reduction <minimumf>, %860, %cst_222 [1] : vector<16x128xf32> to vector<16xf32>
    %862 = vector.shape_cast %861 : vector<16xf32> to vector<16x1xf32>
    %863 = vector.broadcast %862 : vector<16x1xf32> to vector<16x128xf32>
    %864 = arith.cmpf ole, %860, %863 : vector<16x128xf32>
    %c128_i32_223 = arith.constant 128 : i32
    %865 = vector.broadcast %c128_i32_223 : i32 to vector<16x128xi32>
    %866 = arith.select %864, %6, %865 : vector<16x128xi1>, vector<16x128xi32>
    %cst_224 = arith.constant dense<2147483647> : vector<16xi32>
    %867 = vector.multi_reduction <minsi>, %866, %cst_224 [1] : vector<16x128xi32> to vector<16xi32>
    %868 = vector.shape_cast %867 : vector<16xi32> to vector<16x1xi32>
    %869 = vector.broadcast %868 : vector<16x1xi32> to vector<16x128xi32>
    %870 = arith.cmpi eq, %6, %869 : vector<16x128xi32>
    %cst_225 = arith.constant 0.000000e+00 : f32
    %871 = vector.shape_cast %2 : vector<1x128xf32> to vector<1x128xf32>
    %872 = vector.broadcast %871 : vector<1x128xf32> to vector<16x128xf32>
    %873 = vector.broadcast %cst_225 : f32 to vector<16x128xf32>
    %874 = arith.select %870, %872, %873 : vector<16x128xi1>, vector<16x128xf32>
    %cst_226 = arith.constant dense<0.000000e+00> : vector<16xf32>
    %875 = vector.multi_reduction <add>, %874, %cst_226 [1] : vector<16x128xf32> to vector<16xf32>
    %876 = vector.shape_cast %875 : vector<16xf32> to vector<16x1xf32>
    %cst_227 = arith.constant 0.000000e+00 : f32
    %877 = vector.shape_cast %3 : vector<1x128xf32> to vector<1x128xf32>
    %878 = vector.broadcast %877 : vector<1x128xf32> to vector<16x128xf32>
    %879 = vector.broadcast %cst_227 : f32 to vector<16x128xf32>
    %880 = arith.select %870, %878, %879 : vector<16x128xi1>, vector<16x128xf32>
    %cst_228 = arith.constant dense<0.000000e+00> : vector<16xf32>
    %881 = vector.multi_reduction <add>, %880, %cst_228 [1] : vector<16x128xf32> to vector<16xf32>
    %882 = vector.shape_cast %881 : vector<16xf32> to vector<16x1xf32>
    %cst_229 = arith.constant 0.000000e+00 : f32
    %883 = vector.shape_cast %4 : vector<1x128xf32> to vector<1x128xf32>
    %884 = vector.broadcast %883 : vector<1x128xf32> to vector<16x128xf32>
    %885 = vector.broadcast %cst_229 : f32 to vector<16x128xf32>
    %886 = arith.select %870, %884, %885 : vector<16x128xi1>, vector<16x128xf32>
    %cst_230 = arith.constant dense<0.000000e+00> : vector<16xf32>
    %887 = vector.multi_reduction <add>, %886, %cst_230 [1] : vector<16x128xf32> to vector<16xf32>
    %888 = vector.shape_cast %887 : vector<16xf32> to vector<16x1xf32>
    %889 = tpu.concatenate %876, %882, %888 in 1 : vector<16x1xf32>, vector<16x1xf32>, vector<16x1xf32> -> vector<16x3xf32>
    %890 = arith.subf %889, %582 : vector<16x3xf32>
    %c0_231 = arith.constant 0 : index
    %c0_232 = arith.constant 0 : index
    %c21 = arith.constant 21 : index
    %891 = vector.load %arg2[%c0_231, %c0_232, %c21] : memref<1x16x24xf32, #tpu.memory_space<vmem>>, vector<1x16x3xf32>
    %892 = vector.shape_cast %891 : vector<1x16x3xf32> to vector<16x3xf32>
    %893 = vector.shape_cast %890 : vector<16x3xf32> to vector<1x16x3xf32>
    tpu.vector_store %arg2[%c0_231, %c0_232, %c21], %893 {strides = array<i32>} : memref<1x16x24xf32, #tpu.memory_space<vmem>>, vector<1x16x3xf32>,
    %c0_233 = arith.constant 0 : index
    %c0_234 = arith.constant 0 : index
    %c0_235 = arith.constant 0 : index
    %894 = vector.load %arg3[%c0_233, %c0_234, %c0_235] : memref<1x16x3xf32, #tpu.memory_space<vmem>>, vector<1x16x3xf32>
    %895 = vector.shape_cast %894 : vector<1x16x3xf32> to vector<16x3xf32>
    %896 = vector.shape_cast %582 : vector<16x3xf32> to vector<1x16x3xf32>
    tpu.vector_store %arg3[%c0_233, %c0_234, %c0_235], %896 {strides = array<i32>} : memref<1x16x3xf32, #tpu.memory_space<vmem>>, vector<1x16x3xf32>,
    return
  }
  func.func @transform_0(%arg0: i32) -> (i32, i32, i32) {
    %c0_i32 = arith.constant 0 : i32
    %c0_i32_0 = arith.constant 0 : i32
    %c0_i32_1 = arith.constant 0 : i32
    return %arg0, %c0_i32, %c0_i32_0 : i32, i32, i32
  }
  func.func @transform_1(%arg0: i32) -> (i32, i32, i32) {
    %c0_i32 = arith.constant 0 : i32
    %c0_i32_0 = arith.constant 0 : i32
    %c0_i32_1 = arith.constant 0 : i32
    return %arg0, %c0_i32, %c0_i32_0 : i32, i32, i32
  }
  func.func @transform_2(%arg0: i32) -> (i32, i32, i32) {
    %c0_i32 = arith.constant 0 : i32
    %c0_i32_0 = arith.constant 0 : i32
    %c0_i32_1 = arith.constant 0 : i32
    return %arg0, %c0_i32, %c0_i32_0 : i32, i32, i32
  }
}

</mosaic_0001>

<llo_original>
// kernel: tpu_custom_call.1
$region0: #{tpu_custom_call.1}
  #allocation0 [shape = 'u32[]', space=smem, size = 0x4, offset = 0x4, fixed_abs, tag = 'smem constant byte address 0x4 - core index']
  #allocation1 [shape = 'u32[144,128]{1,0:T(1,128)}', space=vmem, size = 0x12000, scoped, tag = 'internal scratch']
  %s0 = inlined_call_operand.vmem [shape: f32[2,3,128], index: 0, kind: input, shape index: {}]
  %s1 = inlined_call_operand.hbm [shape: f32[2,16,24], index: 1, kind: output, shape index: {0}]
  %s2 = inlined_call_operand.vmem [shape: f32[2,16,3], index: 2, kind: output, shape index: {1}]
  %3 = xla_tuple %s1, %s2
  %s4 = sld [smem:[#allocation0]]
  $region45: #{tpu_custom_call.1} parent=0
    _
  %s6 = ssub.s32 1, %s4
  %s7 = scalar_select 0, %s6, %s4
  $region1: #{tpu_custom_call.1} parent=0
    #allocation2 [shape = 'u8[16384]{0}', space=vmem, size = 0x4000, scoped, tag = 'output window, operand 0']
    #allocation3 [shape = 's32[2]{0}', space=sflag, size = 0x8, scoped, tag = 'scoped memory for tpu_custom_call.1']
    %8 = vsyncpa [#allocation3], 0
    %s9 = scalar_lea.sflag [#allocation3], 1
    %10 = vsyncpa %s9, 0
    loop: start=0, step=1, limit=4
    $region2: #{tpu_custom_call.1} parent=1 // loop_pre_header
      _
    $region3: #{tpu_custom_call.1} parent=1 // loop_header
      %s12 = sphi 0, %s16
      %p13 = scmp.ge.s32.totalorder %s12, 4
      %s22 = sphi 0, %s24
      %s25 = sphi 0, %s22
      %s26 = sphi 0, %s25
      %s42 = sphi 0, %s26
      %s48 = sphi 0, %s50
      %s51 = sphi 0, %s48
      %s52 = sphi 0, %s51
      %s68 = sphi 0, %s52
      %s74 = sphi 0, %s76
      %s77 = sphi 0, %s74
      %s78 = sphi 0, %s77
      %s94 = sphi 0, %s78
    $region4: #{tpu_custom_call.1} parent=1 // loop_header_branch
      %15 = sbr.rel (%p13) target = $region8
    $region5: #{tpu_custom_call.1} parent=1 // loop_body
      %s17 = ssub.s32 %s12, 1
      %s18 = ssub.s32 %s12, 2
      %s19 = sadd.s32 %s12, 1
      %s20 = ssub.s32 %s12, %s19
      %p21 = scmp.eq.s32.totalorder %s20, 0
      %s23 = sadd.s32 %s22, 1
      %s24 = scalar_select %p21, %s22, %s23
      %p27 = pneg %p21
      %p28 = scmp.eq.s32.totalorder %s12, 1
      %p29 = por %p27, %p28
      %p30 = scmp.ne.s32.totalorder %s22, %s25
      %p31 = scmp.eq.s32.totalorder %s12, 0
      %p32 = por %p30, %p31
      %p33 = scmp.ne.s32.totalorder %s22, %s25
      %p34 = scmp.eq.s32.totalorder %s17, 1
      %p35 = por %p33, %p34
      %p36 = scmp.ne.s32.totalorder %s25, %s26
      %p37 = scmp.eq.s32.totalorder %s17, 0
      %p38 = por %p36, %p37
      %p39 = scmp.ne.s32.totalorder %s25, %s26
      %p40 = scmp.eq.s32.totalorder %s18, 1
      %p41 = por %p39, %p40
      %p43 = scmp.ne.s32.totalorder %s26, %s42
      %p44 = scmp.eq.s32.totalorder %s18, 0
      %p45 = por %p43, %p44
      %s46 = ssub.s32 %s12, %s19
      %p47 = scmp.eq.s32.totalorder %s46, 0
      %s49 = sadd.s32 %s48, 1
      %s50 = scalar_select %p47, %s48, %s49
      %p53 = pneg %p47
      %p54 = scmp.eq.s32.totalorder %s12, 1
      %p55 = por %p53, %p54
      %p56 = scmp.ne.s32.totalorder %s48, %s51
      %p57 = scmp.eq.s32.totalorder %s12, 0
      %p58 = por %p56, %p57
      %p59 = scmp.ne.s32.totalorder %s48, %s51
      %p60 = scmp.eq.s32.totalorder %s17, 1
      %p61 = por %p59, %p60
      %p62 = scmp.ne.s32.totalorder %s51, %s52
      %p63 = scmp.eq.s32.totalorder %s17, 0
      %p64 = por %p62, %p63
      %p65 = scmp.ne.s32.totalorder %s51, %s52
      %p66 = scmp.eq.s32.totalorder %s18, 1
      %p67 = por %p65, %p66
      %p69 = scmp.ne.s32.totalorder %s52, %s68
      %p70 = scmp.eq.s32.totalorder %s18, 0
      %p71 = por %p69, %p70
      %s72 = ssub.s32 %s12, %s19
      %p73 = scmp.eq.s32.totalorder %s72, 0
      %s75 = sadd.s32 %s74, 1
      %s76 = scalar_select %p73, %s74, %s75
      %p79 = pneg %p73
      %p80 = scmp.eq.s32.totalorder %s12, 1
      %p81 = por %p79, %p80
      %p82 = scmp.ne.s32.totalorder %s74, %s77
      %p83 = scmp.eq.s32.totalorder %s12, 0
      %p84 = por %p82, %p83
      %p85 = scmp.ne.s32.totalorder %s74, %s77
      %p86 = scmp.eq.s32.totalorder %s17, 1
      %p87 = por %p85, %p86
      %p88 = scmp.ne.s32.totalorder %s77, %s78
      %p89 = scmp.eq.s32.totalorder %s17, 0
      %p90 = por %p88, %p89
      %p91 = scmp.ne.s32.totalorder %s77, %s78
      %p92 = scmp.eq.s32.totalorder %s18, 1
      %p93 = por %p91, %p92
      %p95 = scmp.ne.s32.totalorder %s78, %s94
      %p96 = scmp.eq.s32.totalorder %s18, 0
      %p97 = por %p95, %p96
      %p98 = scmp.le.s32.totalorder 1, %s12
      %p99 = scmp.lt.s32.totalorder %s12, 3
      %p100 = pnand %p98, %p99
      %p101 = pneg %p100
      // Predicated region
      $region9: #{tpu_custom_call.1} parent=5 // pred_check
        _
      $region10: #{tpu_custom_call.1} parent=5 // pred_check_branch
        %103 = sbr.rel (%p100) target = $region12
      $region11: #{tpu_custom_call.1} parent=5 // pred_region
        %s104 = ssub.s32 %s12, 1
      $region12: #{tpu_custom_call.1} parent=5 // pred_fallthru
        _
      %p105 = scmp.lt.s32.totalorder %s12, 2
      // Predicated region
      $region13: #{tpu_custom_call.1} parent=5 // pred_check
        %p106 = pneg %p105
      $region14: #{tpu_custom_call.1} parent=5 // pred_check_branch
        %108 = sbr.rel (%p106) target = $region16
      $region15: #{tpu_custom_call.1} parent=5 // pred_region
        // Predicated region
        $region17: #{tpu_custom_call.1} parent=15 // pred_check
          %p109 = pneg %p32
        $region18: #{tpu_custom_call.1} parent=15 // pred_check_branch
          %111 = sbr.rel (%p109) target = $region20
        $region19: #{tpu_custom_call.1} parent=15 // pred_region
          %p112 = scmp.lt.s32.totalorder %s12, 1
          %s113 = scalar_select %p112, %s12, 1
          %s114 = smul.addr %s113, 4
          %s115 = scalar_lea.vmem %s0, %s114
        $region20: #{tpu_custom_call.1} parent=15 // pred_fallthru
          _
      $region16: #{tpu_custom_call.1} parent=5 // pred_fallthru
        _
      %p116 = scmp.le.s32.totalorder 1, %s12
      %p117 = scmp.lt.s32.totalorder %s12, 3
      %p118 = pnand %p116, %p117
      %p119 = pneg %p118
      // Predicated region
      $region21: #{tpu_custom_call.1} parent=5 // pred_check
        _
      $region22: #{tpu_custom_call.1} parent=5 // pred_check_branch
        %121 = sbr.rel (%p118) target = $region24
      $region23: #{tpu_custom_call.1} parent=5 // pred_region
        %s122 = ssub.s32 %s12, 1
        %p123 = scmp.lt.s32.totalorder %s17, 1
        %s124 = scalar_select %p123, %s17, 1
        %s125 = smul.addr %s124, 4
        %s126 = scalar_lea.vmem %s0, %s125
        %p127 = pneg %p38
        %p128 = pneg %p35
        %p129 = pneg %p64
        %p130 = pneg %p61
        %s131 = sand.u32 %s51, 1
        %s132 = scalar_lea.sflag [#allocation3], %s131
        %s133 = sand.u32 %s51, 1
        %s134 = smul.addr %s133, 16
        %s135 = scalar_lea.vmem [#allocation2], %s134
        %p136 = pneg %p90
        %p137 = pneg %p87
        %p138 = scmp.lt.s32.totalorder %s17, 1
        %s139 = scalar_select %p138, %s17, 1
        %s140 = smul.addr %s139, 2
        %s141 = smul.addr %s140, 8
        %s142 = scalar_lea.vmem %s2, %s141
        %p143 = scmp.lt.s32.totalorder %s17, 1
        %s144 = scalar_select %p143, %s17, 1
        %s145 = smul.addr %s144, 4
        %s146 = scalar_lea.vmem %s0, %s145
        %p147 = scmp.lt.s32.totalorder %s17, 1
        %s148 = scalar_select %p147, %s17, 1
        %s149 = smul.addr %s148, 2
        %s150 = smul.addr %s149, 8
        %s151 = scalar_lea.vmem %s2, %s150
        %v152 = vld [vmem:[%s146] sm:$0x7]
        %v153 = vlaneseq
        %v154 = vand.u32 %v153, 127
        %v156 = vrot.slane %v152, 1
        %157 = vrot.lane.b32.xlu0 %v156, 1
        %v158 = vpop.permute.xlu0 %157
        %v160 = vrot.slane %v152, 2
        %161 = vrot.lane.b32.xlu0 %v160, 2
        %v162 = vpop.permute.xlu0 %161
        %vm164 = vcmask 7168
        %v165 = vsel %vm164, %v152, %v158
        %vm166 = vcmask 15360
        %v167 = vsel %vm166, %v165, %v162
        %169 = vset.pattern.permute.xlu0 0
        %170 = vperm.xlu0 %169, %v167
        %v171 = vpop.permute.xlu0 %170
        %v173 = vsub.f32 %v152, %v171
        %v174 = vmul.f32 %v173, %v173
        %175 = vset.pattern.permute.xlu0 1
        %176 = vperm.xlu0 %175, %v167
        %v177 = vpop.permute.xlu0 %176
        %v178 = vrot.slane %v177, 7
        %v180 = vsub.f32 %v152, %v178
        %v181 = vmul.f32 %v180, %v180
        %v183 = vrot.slane %v181, 1
        %v185 = vadd.f32 %v174, %v183
        %186 = vset.pattern.permute.xlu0 2
        %187 = vperm.xlu0 %186, %v167
        %v188 = vpop.permute.xlu0 %187
        %v189 = vrot.slane %v188, 6
        %v191 = vsub.f32 %v152, %v189
        %v192 = vmul.f32 %v191, %v191
        %v194 = vrot.slane %v192, 2
        %v196 = vadd.f32 %v185, %v194
        %vm197 = vcmask 1040384
        %v198 = vsel %vm197, %v196, -inf
        %199 = vmax.xlane.f32.xlu0 %v198
        %v200 = vpop.xlane.xlu0 %199
        %vm201 = vcmp.ge.f32.partialorder %v196, %v200
        %v202 = vsel %vm201, %v154, 128
        %v203 = vsel %vm197, %v202, 2147483647
        %v204 = vand.u32 %v203, 65535
        %v205 = vshra.s32 %v203, 16
        %v206 = vcvt.s32.f32 %v204
        %v207 = vcvt.s32.f32 %v205
        %208 = vmin.xlane.f32.xlu0 %v207
        %v209 = vpop.xlane.xlu0 %208
        %vm210 = vcmp.eq.f32.partialorder %v207, %v209
        %v211 = vsel %vm210, %v206, inf
        %212 = vmin.xlane.f32.xlu0 %v211
        %v213 = vpop.xlane.xlu0 %212
        %v214 = vcvt.f32.s32 %v213
        %v215 = vcvt.f32.s32 %v209
        %v216 = vshll.u32 %v215, 16
        %v217 = vadd.s32 %v216, %v214
        %vm218 = vcmp.eq.s32.totalorder %v154, %v217
        %v219 = vsel %vm218, %v152, 0.0
        %v220 = vsel %vm197, %v219, 0.0
        %221 = vadd.xlane.f32.xlu0 %v220
        %v222 = vpop.xlane.xlu0 %221
        %v224 = vsel %vm218, %v156, 0.0
        %v225 = vsel %vm197, %v224, 0.0
        %226 = vadd.xlane.f32.xlu0 %v225
        %v227 = vpop.xlane.xlu0 %226
        %v229 = vsel %vm218, %v160, 0.0
        %v230 = vsel %vm197, %v229, 0.0
        %231 = vadd.xlane.f32.xlu0 %v230
        %v232 = vpop.xlane.xlu0 %231
        %v233 = vsel %vm164, %v222, %v227
        %v234 = vsel %vm166, %v233, %v232
        %236 = vset.pattern.permute.xlu0 0
        %237 = vperm.xlu0 %236, %v234
        %v238 = vpop.permute.xlu0 %237
        %v240 = vsub.f32 %v152, %v238
        %v241 = vmul.f32 %v240, %v240
        %242 = vset.pattern.permute.xlu0 1
        %243 = vperm.xlu0 %242, %v234
        %v244 = vpop.permute.xlu0 %243
        %v245 = vrot.slane %v244, 7
        %v247 = vsub.f32 %v152, %v245
        %v248 = vmul.f32 %v247, %v247
        %v250 = vrot.slane %v248, 1
        %v252 = vadd.f32 %v241, %v250
        %253 = vset.pattern.permute.xlu0 2
        %254 = vperm.xlu0 %253, %v234
        %v255 = vpop.permute.xlu0 %254
        %v256 = vrot.slane %v255, 6
        %v258 = vsub.f32 %v152, %v256
        %v259 = vmul.f32 %v258, %v258
        %v261 = vrot.slane %v259, 2
        %v263 = vadd.f32 %v252, %v261
        %v264 = vmin.f32 %v196, %v263
        %v265 = vsel %vm197, %v264, -inf
        %266 = vmax.xlane.f32.xlu0 %v265
        %v267 = vpop.xlane.xlu0 %266
        %vm268 = vcmp.ge.f32.partialorder %v264, %v267
        %v269 = vsel %vm268, %v154, 128
        %v270 = vsel %vm197, %v269, 2147483647
        %v271 = vand.u32 %v270, 65535
        %v272 = vshra.s32 %v270, 16
        %v273 = vcvt.s32.f32 %v271
        %v274 = vcvt.s32.f32 %v272
        %275 = vmin.xlane.f32.xlu0 %v274
        %v276 = vpop.xlane.xlu0 %275
        %vm277 = vcmp.eq.f32.partialorder %v274, %v276
        %v278 = vsel %vm277, %v273, inf
        %279 = vmin.xlane.f32.xlu0 %v278
        %v280 = vpop.xlane.xlu0 %279
        %v281 = vcvt.f32.s32 %v280
        %v282 = vcvt.f32.s32 %v276
        %v283 = vshll.u32 %v282, 16
        %v284 = vadd.s32 %v283, %v281
        %vm285 = vcmp.eq.s32.totalorder %v154, %v284
        %v286 = vsel %vm285, %v152, 0.0
        %v287 = vsel %vm197, %v286, 0.0
        %288 = vadd.xlane.f32.xlu0 %v287
        %v289 = vpop.xlane.xlu0 %288
        %v290 = vsel %vm285, %v156, 0.0
        %v291 = vsel %vm197, %v290, 0.0
        %292 = vadd.xlane.f32.xlu0 %v291
        %v293 = vpop.xlane.xlu0 %292
        %v294 = vsel %vm285, %v160, 0.0
        %v295 = vsel %vm197, %v294, 0.0
        %296 = vadd.xlane.f32.xlu0 %v295
        %v297 = vpop.xlane.xlu0 %296
        %v298 = vsel %vm164, %v289, %v293
        %v299 = vsel %vm166, %v298, %v297
        %301 = vset.pattern.permute.xlu0 0
        %302 = vperm.xlu0 %301, %v299
        %v303 = vpop.permute.xlu0 %302
        %v305 = vsub.f32 %v152, %v303
        %v306 = vmul.f32 %v305, %v305
        %307 = vset.pattern.permute.xlu0 1
        %308 = vperm.xlu0 %307, %v299
        %v309 = vpop.permute.xlu0 %308
        %v310 = vrot.slane %v309, 7
        %v312 = vsub.f32 %v152, %v310
        %v313 = vmul.f32 %v312, %v312
        %v315 = vrot.slane %v313, 1
        %v317 = vadd.f32 %v306, %v315
        %318 = vset.pattern.permute.xlu0 2
        %319 = vperm.xlu0 %318, %v299
        %v320 = vpop.permute.xlu0 %319
        %v321 = vrot.slane %v320, 6
        %v323 = vsub.f32 %v152, %v321
        %v324 = vmul.f32 %v323, %v323
        %v326 = vrot.slane %v324, 2
        %v328 = vadd.f32 %v317, %v326
        %v329 = vmin.f32 %v264, %v328
        %v330 = vsel %vm197, %v329, -inf
        %331 = vmax.xlane.f32.xlu0 %v330
        %v332 = vpop.xlane.xlu0 %331
        %vm333 = vcmp.ge.f32.partialorder %v329, %v332
        %v334 = vsel %vm333, %v154, 128
        %v335 = vsel %vm197, %v334, 2147483647
        %v336 = vand.u32 %v335, 65535
        %v337 = vshra.s32 %v335, 16
        %v338 = vcvt.s32.f32 %v336
        %v339 = vcvt.s32.f32 %v337
        %340 = vmin.xlane.f32.xlu0 %v339
        %v341 = vpop.xlane.xlu0 %340
        %vm342 = vcmp.eq.f32.partialorder %v339, %v341
        %v343 = vsel %vm342, %v338, inf
        %344 = vmin.xlane.f32.xlu0 %v343
        %v345 = vpop.xlane.xlu0 %344
        %v346 = vcvt.f32.s32 %v345
        %v347 = vcvt.f32.s32 %v341
        %v348 = vshll.u32 %v347, 16
        %v349 = vadd.s32 %v348, %v346
        %vm350 = vcmp.eq.s32.totalorder %v154, %v349
        %v351 = vsel %vm350, %v152, 0.0
        %v352 = vsel %vm197, %v351, 0.0
        %353 = vadd.xlane.f32.xlu0 %v352
        %v354 = vpop.xlane.xlu0 %353
        %v355 = vsel %vm350, %v156, 0.0
        %v356 = vsel %vm197, %v355, 0.0
        %357 = vadd.xlane.f32.xlu0 %v356
        %v358 = vpop.xlane.xlu0 %357
        %v359 = vsel %vm350, %v160, 0.0
        %v360 = vsel %vm197, %v359, 0.0
        %361 = vadd.xlane.f32.xlu0 %v360
        %v362 = vpop.xlane.xlu0 %361
        %v363 = vsel %vm164, %v354, %v358
        %v364 = vsel %vm166, %v363, %v362
        %366 = vset.pattern.permute.xlu0 0
        %367 = vperm.xlu0 %366, %v364
        %v368 = vpop.permute.xlu0 %367
        %v370 = vsub.f32 %v152, %v368
        %v371 = vmul.f32 %v370, %v370
        %372 = vset.pattern.permute.xlu0 1
        %373 = vperm.xlu0 %372, %v364
        %v374 = vpop.permute.xlu0 %373
        %v375 = vrot.slane %v374, 7
        %v377 = vsub.f32 %v152, %v375
        %v378 = vmul.f32 %v377, %v377
        %v380 = vrot.slane %v378, 1
        %v382 = vadd.f32 %v371, %v380
        %383 = vset.pattern.permute.xlu0 2
        %384 = vperm.xlu0 %383, %v364
        %v385 = vpop.permute.xlu0 %384
        %v386 = vrot.slane %v385, 6
        %v388 = vsub.f32 %v152, %v386
        %v389 = vmul.f32 %v388, %v388
        %v391 = vrot.slane %v389, 2
        %v393 = vadd.f32 %v382, %v391
        %v394 = vmin.f32 %v329, %v393
        %v395 = vsel %vm197, %v394, -inf
        %396 = vmax.xlane.f32.xlu0 %v395
        %v397 = vpop.xlane.xlu0 %396
        %vm398 = vcmp.ge.f32.partialorder %v394, %v397
        %v399 = vsel %vm398, %v154, 128
        %v400 = vsel %vm197, %v399, 2147483647
        %v401 = vand.u32 %v400, 65535
        %v402 = vshra.s32 %v400, 16
        %v403 = vcvt.s32.f32 %v401
        %v404 = vcvt.s32.f32 %v402
        %405 = vmin.xlane.f32.xlu0 %v404
        %v406 = vpop.xlane.xlu0 %405
        %vm407 = vcmp.eq.f32.partialorder %v404, %v406
        %v408 = vsel %vm407, %v403, inf
        %409 = vmin.xlane.f32.xlu0 %v408
        %v410 = vpop.xlane.xlu0 %409
        %v411 = vcvt.f32.s32 %v410
        %v412 = vcvt.f32.s32 %v406
        %v413 = vshll.u32 %v412, 16
        %v414 = vadd.s32 %v413, %v411
        %vm415 = vcmp.eq.s32.totalorder %v154, %v414
        %v416 = vsel %vm415, %v152, 0.0
        %v417 = vsel %vm197, %v416, 0.0
        %418 = vadd.xlane.f32.xlu0 %v417
        %v419 = vpop.xlane.xlu0 %418
        %v420 = vsel %vm415, %v156, 0.0
        %v421 = vsel %vm197, %v420, 0.0
        %422 = vadd.xlane.f32.xlu0 %v421
        %v423 = vpop.xlane.xlu0 %422
        %v424 = vsel %vm415, %v160, 0.0
        %v425 = vsel %vm197, %v424, 0.0
        %426 = vadd.xlane.f32.xlu0 %v425
        %v427 = vpop.xlane.xlu0 %426
        %v428 = vsel %vm164, %v419, %v423
        %v429 = vsel %vm166, %v428, %v427
        %431 = vset.pattern.permute.xlu0 0
        %432 = vperm.xlu0 %431, %v429
        %v433 = vpop.permute.xlu0 %432
        %v435 = vsub.f32 %v152, %v433
        %v436 = vmul.f32 %v435, %v435
        %437 = vset.pattern.permute.xlu0 1
        %438 = vperm.xlu0 %437, %v429
        %v439 = vpop.permute.xlu0 %438
        %v440 = vrot.slane %v439, 7
        %v442 = vsub.f32 %v152, %v440
        %v443 = vmul.f32 %v442, %v442
        %v445 = vrot.slane %v443, 1
        %v447 = vadd.f32 %v436, %v445
        %448 = vset.pattern.permute.xlu0 2
        %449 = vperm.xlu0 %448, %v429
        %v450 = vpop.permute.xlu0 %449
        %v451 = vrot.slane %v450, 6
        %v453 = vsub.f32 %v152, %v451
        %v454 = vmul.f32 %v453, %v453
        %v456 = vrot.slane %v454, 2
        %v458 = vadd.f32 %v447, %v456
        %v459 = vmin.f32 %v394, %v458
        %v460 = vsel %vm197, %v459, -inf
        %461 = vmax.xlane.f32.xlu0 %v460
        %v462 = vpop.xlane.xlu0 %461
        %vm463 = vcmp.ge.f32.partialorder %v459, %v462
        %v464 = vsel %vm463, %v154, 128
        %v465 = vsel %vm197, %v464, 2147483647
        %v466 = vand.u32 %v465, 65535
        %v467 = vshra.s32 %v465, 16
        %v468 = vcvt.s32.f32 %v466
        %v469 = vcvt.s32.f32 %v467
        %470 = vmin.xlane.f32.xlu0 %v469
        %v471 = vpop.xlane.xlu0 %470
        %vm472 = vcmp.eq.f32.partialorder %v469, %v471
        %v473 = vsel %vm472, %v468, inf
        %474 = vmin.xlane.f32.xlu0 %v473
        %v475 = vpop.xlane.xlu0 %474
        %v476 = vcvt.f32.s32 %v475
        %v477 = vcvt.f32.s32 %v471
        %v478 = vshll.u32 %v477, 16
        %v479 = vadd.s32 %v478, %v476
        %vm480 = vcmp.eq.s32.totalorder %v154, %v479
        %v481 = vsel %vm480, %v152, 0.0
        %v482 = vsel %vm197, %v481, 0.0
        %483 = vadd.xlane.f32.xlu0 %v482
        %v484 = vpop.xlane.xlu0 %483
        %v485 = vsel %vm480, %v156, 0.0
        %v486 = vsel %vm197, %v485, 0.0
        %487 = vadd.xlane.f32.xlu0 %v486
        %v488 = vpop.xlane.xlu0 %487
        %v489 = vsel %vm480, %v160, 0.0
        %v490 = vsel %vm197, %v489, 0.0
        %491 = vadd.xlane.f32.xlu0 %v490
        %v492 = vpop.xlane.xlu0 %491
        %v493 = vsel %vm164, %v484, %v488
        %v494 = vsel %vm166, %v493, %v492
        %496 = vset.pattern.permute.xlu0 0
        %497 = vperm.xlu0 %496, %v494
        %v498 = vpop.permute.xlu0 %497
        %v500 = vsub.f32 %v152, %v498
        %v501 = vmul.f32 %v500, %v500
        %502 = vset.pattern.permute.xlu0 1
        %503 = vperm.xlu0 %502, %v494
        %v504 = vpop.permute.xlu0 %503
        %v505 = vrot.slane %v504, 7
        %v507 = vsub.f32 %v152, %v505
        %v508 = vmul.f32 %v507, %v507
        %v510 = vrot.slane %v508, 1
        %v512 = vadd.f32 %v501, %v510
        %513 = vset.pattern.permute.xlu0 2
        %514 = vperm.xlu0 %513, %v494
        %v515 = vpop.permute.xlu0 %514
        %v516 = vrot.slane %v515, 6
        %v518 = vsub.f32 %v152, %v516
        %v519 = vmul.f32 %v518, %v518
        %v521 = vrot.slane %v519, 2
        %v523 = vadd.f32 %v512, %v521
        %v524 = vmin.f32 %v459, %v523
        %v525 = vsel %vm197, %v524, -inf
        %526 = vmax.xlane.f32.xlu0 %v525
        %v527 = vpop.xlane.xlu0 %526
        %vm528 = vcmp.ge.f32.partialorder %v524, %v527
        %v529 = vsel %vm528, %v154, 128
        %v530 = vsel %vm197, %v529, 2147483647
        %v531 = vand.u32 %v530, 65535
        %v532 = vshra.s32 %v530, 16
        %v533 = vcvt.s32.f32 %v531
        %v534 = vcvt.s32.f32 %v532
        %535 = vmin.xlane.f32.xlu0 %v534
        %v536 = vpop.xlane.xlu0 %535
        %vm537 = vcmp.eq.f32.partialorder %v534, %v536
        %v538 = vsel %vm537, %v533, inf
        %539 = vmin.xlane.f32.xlu0 %v538
        %v540 = vpop.xlane.xlu0 %539
        %v541 = vcvt.f32.s32 %v540
        %v542 = vcvt.f32.s32 %v536
        %v543 = vshll.u32 %v542, 16
        %v544 = vadd.s32 %v543, %v541
        %vm545 = vcmp.eq.s32.totalorder %v154, %v544
        %v546 = vsel %vm545, %v152, 0.0
        %v547 = vsel %vm197, %v546, 0.0
        %548 = vadd.xlane.f32.xlu0 %v547
        %v549 = vpop.xlane.xlu0 %548
        %v550 = vsel %vm545, %v156, 0.0
        %v551 = vsel %vm197, %v550, 0.0
        %552 = vadd.xlane.f32.xlu0 %v551
        %v553 = vpop.xlane.xlu0 %552
        %v554 = vsel %vm545, %v160, 0.0
        %v555 = vsel %vm197, %v554, 0.0
        %556 = vadd.xlane.f32.xlu0 %v555
        %v557 = vpop.xlane.xlu0 %556
        %v558 = vsel %vm164, %v549, %v553
        %v559 = vsel %vm166, %v558, %v557
        %561 = vset.pattern.permute.xlu0 0
        %562 = vperm.xlu0 %561, %v559
        %v563 = vpop.permute.xlu0 %562
        %v565 = vsub.f32 %v152, %v563
        %v566 = vmul.f32 %v565, %v565
        %567 = vset.pattern.permute.xlu0 1
        %568 = vperm.xlu0 %567, %v559
        %v569 = vpop.permute.xlu0 %568
        %v570 = vrot.slane %v569, 7
        %v572 = vsub.f32 %v152, %v570
        %v573 = vmul.f32 %v572, %v572
        %v575 = vrot.slane %v573, 1
        %v577 = vadd.f32 %v566, %v575
        %578 = vset.pattern.permute.xlu0 2
        %579 = vperm.xlu0 %578, %v559
        %v580 = vpop.permute.xlu0 %579
        %v581 = vrot.slane %v580, 6
        %v583 = vsub.f32 %v152, %v581
        %v584 = vmul.f32 %v583, %v583
        %v586 = vrot.slane %v584, 2
        %v588 = vadd.f32 %v577, %v586
        %v589 = vmin.f32 %v524, %v588
        %v590 = vsel %vm197, %v589, -inf
        %591 = vmax.xlane.f32.xlu0 %v590
        %v592 = vpop.xlane.xlu0 %591
        %vm593 = vcmp.ge.f32.partialorder %v589, %v592
        %v594 = vsel %vm593, %v154, 128
        %v595 = vsel %vm197, %v594, 2147483647
        %v596 = vand.u32 %v595, 65535
        %v597 = vshra.s32 %v595, 16
        %v598 = vcvt.s32.f32 %v596
        %v599 = vcvt.s32.f32 %v597
        %600 = vmin.xlane.f32.xlu0 %v599
        %v601 = vpop.xlane.xlu0 %600
        %vm602 = vcmp.eq.f32.partialorder %v599, %v601
        %v603 = vsel %vm602, %v598, inf
        %604 = vmin.xlane.f32.xlu0 %v603
        %v605 = vpop.xlane.xlu0 %604
        %v606 = vcvt.f32.s32 %v605
        %v607 = vcvt.f32.s32 %v601
        %v608 = vshll.u32 %v607, 16
        %v609 = vadd.s32 %v608, %v606
        %vm610 = vcmp.eq.s32.totalorder %v154, %v609
        %v611 = vsel %vm610, %v152, 0.0
        %v612 = vsel %vm197, %v611, 0.0
        %613 = vadd.xlane.f32.xlu0 %v612
        %v614 = vpop.xlane.xlu0 %613
        %v615 = vsel %vm610, %v156, 0.0
        %v616 = vsel %vm197, %v615, 0.0
        %617 = vadd.xlane.f32.xlu0 %v616
        %v618 = vpop.xlane.xlu0 %617
        %v619 = vsel %vm610, %v160, 0.0
        %v620 = vsel %vm197, %v619, 0.0
        %621 = vadd.xlane.f32.xlu0 %v620
        %v622 = vpop.xlane.xlu0 %621
        %v623 = vsel %vm164, %v614, %v618
        %v624 = vsel %vm166, %v623, %v622
        %626 = vset.pattern.permute.xlu0 0
        %627 = vperm.xlu0 %626, %v624
        %v628 = vpop.permute.xlu0 %627
        %v630 = vsub.f32 %v152, %v628
        %v631 = vmul.f32 %v630, %v630
        %632 = vset.pattern.permute.xlu0 1
        %633 = vperm.xlu0 %632, %v624
        %v634 = vpop.permute.xlu0 %633
        %v635 = vrot.slane %v634, 7
        %v637 = vsub.f32 %v152, %v635
        %v638 = vmul.f32 %v637, %v637
        %v640 = vrot.slane %v638, 1
        %v642 = vadd.f32 %v631, %v640
        %643 = vset.pattern.permute.xlu0 2
        %644 = vperm.xlu0 %643, %v624
        %v645 = vpop.permute.xlu0 %644
        %v646 = vrot.slane %v645, 6
        %v648 = vsub.f32 %v152, %v646
        %v649 = vmul.f32 %v648, %v648
        %v651 = vrot.slane %v649, 2
        %v653 = vadd.f32 %v642, %v651
        %v654 = vmin.f32 %v589, %v653
        %v655 = vsel %vm197, %v654, -inf
        %656 = vmax.xlane.f32.xlu0 %v655
        %v657 = vpop.xlane.xlu0 %656
        %vm658 = vcmp.ge.f32.partialorder %v654, %v657
        %v659 = vsel %vm658, %v154, 128
        %v660 = vsel %vm197, %v659, 2147483647
        %v661 = vand.u32 %v660, 65535
        %v662 = vshra.s32 %v660, 16
        %v663 = vcvt.s32.f32 %v661
        %v664 = vcvt.s32.f32 %v662
        %665 = vmin.xlane.f32.xlu0 %v664
        %v666 = vpop.xlane.xlu0 %665
        %vm667 = vcmp.eq.f32.partialorder %v664, %v666
        %v668 = vsel %vm667, %v663, inf
        %669 = vmin.xlane.f32.xlu0 %v668
        %v670 = vpop.xlane.xlu0 %669
        %v671 = vcvt.f32.s32 %v670
        %v672 = vcvt.f32.s32 %v666
        %v673 = vshll.u32 %v672, 16
        %v674 = vadd.s32 %v673, %v671
        %vm675 = vcmp.eq.s32.totalorder %v154, %v674
        %v676 = vsel %vm675, %v152, 0.0
        %v677 = vsel %vm197, %v676, 0.0
        %678 = vadd.xlane.f32.xlu0 %v677
        %v679 = vpop.xlane.xlu0 %678
        %v680 = vsel %vm675, %v156, 0.0
        %v681 = vsel %vm197, %v680, 0.0
        %682 = vadd.xlane.f32.xlu0 %v681
        %v683 = vpop.xlane.xlu0 %682
        %v684 = vsel %vm675, %v160, 0.0
        %v685 = vsel %vm197, %v684, 0.0
        %686 = vadd.xlane.f32.xlu0 %v685
        %v687 = vpop.xlane.xlu0 %686
        %v688 = vsel %vm164, %v679, %v683
        %v689 = vsel %vm166, %v688, %v687
        %691 = vset.pattern.permute.xlu0 0
        %692 = vperm.xlu0 %691, %v689
        %v693 = vpop.permute.xlu0 %692
        %v695 = vsub.f32 %v152, %v693
        %v696 = vmul.f32 %v695, %v695
        %697 = vset.pattern.permute.xlu0 1
        %698 = vperm.xlu0 %697, %v689
        %v699 = vpop.permute.xlu0 %698
        %v700 = vrot.slane %v699, 7
        %v702 = vsub.f32 %v152, %v700
        %v703 = vmul.f32 %v702, %v702
        %v705 = vrot.slane %v703, 1
        %v707 = vadd.f32 %v696, %v705
        %708 = vset.pattern.permute.xlu0 2
        %709 = vperm.xlu0 %708, %v689
        %v710 = vpop.permute.xlu0 %709
        %v711 = vrot.slane %v710, 6
        %v713 = vsub.f32 %v152, %v711
        %v714 = vmul.f32 %v713, %v713
        %v716 = vrot.slane %v714, 2
        %v718 = vadd.f32 %v707, %v716
        %v719 = vmin.f32 %v654, %v718
        %v720 = vsel %vm197, %v719, -inf
        %721 = vmax.xlane.f32.xlu0 %v720
        %v722 = vpop.xlane.xlu0 %721
        %vm723 = vcmp.ge.f32.partialorder %v719, %v722
        %v724 = vsel %vm723, %v154, 128
        %v725 = vsel %vm197, %v724, 2147483647
        %v726 = vand.u32 %v725, 65535
        %v727 = vshra.s32 %v725, 16
        %v728 = vcvt.s32.f32 %v726
        %v729 = vcvt.s32.f32 %v727
        %730 = vmin.xlane.f32.xlu0 %v729
        %v731 = vpop.xlane.xlu0 %730
        %vm732 = vcmp.eq.f32.partialorder %v729, %v731
        %v733 = vsel %vm732, %v728, inf
        %734 = vmin.xlane.f32.xlu0 %v733
        %v735 = vpop.xlane.xlu0 %734
        %v736 = vcvt.f32.s32 %v735
        %v737 = vcvt.f32.s32 %v731
        %v738 = vshll.u32 %v737, 16
        %v739 = vadd.s32 %v738, %v736
        %vm740 = vcmp.eq.s32.totalorder %v154, %v739
        %v741 = vsel %vm740, %v152, 0.0
        %v742 = vsel %vm197, %v741, 0.0
        %743 = vadd.xlane.f32.xlu0 %v742
        %v744 = vpop.xlane.xlu0 %743
        %v745 = vsel %vm740, %v156, 0.0
        %v746 = vsel %vm197, %v745, 0.0
        %747 = vadd.xlane.f32.xlu0 %v746
        %v748 = vpop.xlane.xlu0 %747
        %v749 = vsel %vm740, %v160, 0.0
        %v750 = vsel %vm197, %v749, 0.0
        %751 = vadd.xlane.f32.xlu0 %v750
        %v752 = vpop.xlane.xlu0 %751
        %v753 = vsel %vm164, %v744, %v748
        %v754 = vsel %vm166, %v753, %v752
        %756 = vset.pattern.permute.xlu0 0
        %757 = vperm.xlu0 %756, %v754
        %v758 = vpop.permute.xlu0 %757
        %v760 = vsub.f32 %v152, %v758
        %v761 = vmul.f32 %v760, %v760
        %762 = vset.pattern.permute.xlu0 1
        %763 = vperm.xlu0 %762, %v754
        %v764 = vpop.permute.xlu0 %763
        %v765 = vrot.slane %v764, 7
        %v767 = vsub.f32 %v152, %v765
        %v768 = vmul.f32 %v767, %v767
        %v770 = vrot.slane %v768, 1
        %v772 = vadd.f32 %v761, %v770
        %773 = vset.pattern.permute.xlu0 2
        %774 = vperm.xlu0 %773, %v754
        %v775 = vpop.permute.xlu0 %774
        %v776 = vrot.slane %v775, 6
        %v778 = vsub.f32 %v152, %v776
        %v779 = vmul.f32 %v778, %v778
        %v781 = vrot.slane %v779, 2
        %v783 = vadd.f32 %v772, %v781
        %v784 = vmin.f32 %v719, %v783
        %v785 = vsel %vm197, %v784, -inf
        %786 = vmax.xlane.f32.xlu0 %v785
        %v787 = vpop.xlane.xlu0 %786
        %vm788 = vcmp.ge.f32.partialorder %v784, %v787
        %v789 = vsel %vm788, %v154, 128
        %v790 = vsel %vm197, %v789, 2147483647
        %v791 = vand.u32 %v790, 65535
        %v792 = vshra.s32 %v790, 16
        %v793 = vcvt.s32.f32 %v791
        %v794 = vcvt.s32.f32 %v792
        %795 = vmin.xlane.f32.xlu0 %v794
        %v796 = vpop.xlane.xlu0 %795
        %vm797 = vcmp.eq.f32.partialorder %v794, %v796
        %v798 = vsel %vm797, %v793, inf
        %799 = vmin.xlane.f32.xlu0 %v798
        %v800 = vpop.xlane.xlu0 %799
        %v801 = vcvt.f32.s32 %v800
        %v802 = vcvt.f32.s32 %v796
        %v803 = vshll.u32 %v802, 16
        %v804 = vadd.s32 %v803, %v801
        %vm805 = vcmp.eq.s32.totalorder %v154, %v804
        %v806 = vsel %vm805, %v152, 0.0
        %v807 = vsel %vm197, %v806, 0.0
        %808 = vadd.xlane.f32.xlu0 %v807
        %v809 = vpop.xlane.xlu0 %808
        %v810 = vsel %vm805, %v156, 0.0
        %v811 = vsel %vm197, %v810, 0.0
        %812 = vadd.xlane.f32.xlu0 %v811
        %v813 = vpop.xlane.xlu0 %812
        %v814 = vsel %vm805, %v160, 0.0
        %v815 = vsel %vm197, %v814, 0.0
        %816 = vadd.xlane.f32.xlu0 %v815
        %v817 = vpop.xlane.xlu0 %816
        %v818 = vsel %vm164, %v809, %v813
        %v819 = vsel %vm166, %v818, %v817
        %821 = vset.pattern.permute.xlu0 0
        %822 = vperm.xlu0 %821, %v819
        %v823 = vpop.permute.xlu0 %822
        %v825 = vsub.f32 %v152, %v823
        %v826 = vmul.f32 %v825, %v825
        %827 = vset.pattern.permute.xlu0 1
        %828 = vperm.xlu0 %827, %v819
        %v829 = vpop.permute.xlu0 %828
        %v830 = vrot.slane %v829, 7
        %v832 = vsub.f32 %v152, %v830
        %v833 = vmul.f32 %v832, %v832
        %v835 = vrot.slane %v833, 1
        %v837 = vadd.f32 %v826, %v835
        %838 = vset.pattern.permute.xlu0 2
        %839 = vperm.xlu0 %838, %v819
        %v840 = vpop.permute.xlu0 %839
        %v841 = vrot.slane %v840, 6
        %v843 = vsub.f32 %v152, %v841
        %v844 = vmul.f32 %v843, %v843
        %v846 = vrot.slane %v844, 2
        %v848 = vadd.f32 %v837, %v846
        %v849 = vmin.f32 %v784, %v848
        %v850 = vsel %vm197, %v849, -inf
        %851 = vmax.xlane.f32.xlu0 %v850
        %v852 = vpop.xlane.xlu0 %851
        %vm853 = vcmp.ge.f32.partialorder %v849, %v852
        %v854 = vsel %vm853, %v154, 128
        %v855 = vsel %vm197, %v854, 2147483647
        %v856 = vand.u32 %v855, 65535
        %v857 = vshra.s32 %v855, 16
        %v858 = vcvt.s32.f32 %v856
        %v859 = vcvt.s32.f32 %v857
        %860 = vmin.xlane.f32.xlu0 %v859
        %v861 = vpop.xlane.xlu0 %860
        %vm862 = vcmp.eq.f32.partialorder %v859, %v861
        %v863 = vsel %vm862, %v858, inf
        %864 = vmin.xlane.f32.xlu0 %v863
        %v865 = vpop.xlane.xlu0 %864
        %v866 = vcvt.f32.s32 %v865
        %v867 = vcvt.f32.s32 %v861
        %v868 = vshll.u32 %v867, 16
        %v869 = vadd.s32 %v868, %v866
        %vm870 = vcmp.eq.s32.totalorder %v154, %v869
        %v871 = vsel %vm870, %v152, 0.0
        %v872 = vsel %vm197, %v871, 0.0
        %873 = vadd.xlane.f32.xlu0 %v872
        %v874 = vpop.xlane.xlu0 %873
        %v875 = vsel %vm870, %v156, 0.0
        %v876 = vsel %vm197, %v875, 0.0
        %877 = vadd.xlane.f32.xlu0 %v876
        %v878 = vpop.xlane.xlu0 %877
        %v879 = vsel %vm870, %v160, 0.0
        %v880 = vsel %vm197, %v879, 0.0
        %881 = vadd.xlane.f32.xlu0 %v880
        %v882 = vpop.xlane.xlu0 %881
        %v883 = vsel %vm164, %v874, %v878
        %v884 = vsel %vm166, %v883, %v882
        %886 = vset.pattern.permute.xlu0 0
        %887 = vperm.xlu0 %886, %v884
        %v888 = vpop.permute.xlu0 %887
        %v890 = vsub.f32 %v152, %v888
        %v891 = vmul.f32 %v890, %v890
        %892 = vset.pattern.permute.xlu0 1
        %893 = vperm.xlu0 %892, %v884
        %v894 = vpop.permute.xlu0 %893
        %v895 = vrot.slane %v894, 7
        %v897 = vsub.f32 %v152, %v895
        %v898 = vmul.f32 %v897, %v897
        %v900 = vrot.slane %v898, 1
        %v902 = vadd.f32 %v891, %v900
        %903 = vset.pattern.permute.xlu0 2
        %904 = vperm.xlu0 %903, %v884
        %v905 = vpop.permute.xlu0 %904
        %v906 = vrot.slane %v905, 6
        %v908 = vsub.f32 %v152, %v906
        %v909 = vmul.f32 %v908, %v908
        %v911 = vrot.slane %v909, 2
        %v913 = vadd.f32 %v902, %v911
        %v914 = vmin.f32 %v849, %v913
        %v915 = vsel %vm197, %v914, -inf
        %916 = vmax.xlane.f32.xlu0 %v915
        %v917 = vpop.xlane.xlu0 %916
        %vm918 = vcmp.ge.f32.partialorder %v914, %v917
        %v919 = vsel %vm918, %v154, 128
        %v920 = vsel %vm197, %v919, 2147483647
        %v921 = vand.u32 %v920, 65535
        %v922 = vshra.s32 %v920, 16
        %v923 = vcvt.s32.f32 %v921
        %v924 = vcvt.s32.f32 %v922
        %925 = vmin.xlane.f32.xlu0 %v924
        %v926 = vpop.xlane.xlu0 %925
        %vm927 = vcmp.eq.f32.partialorder %v924, %v926
        %v928 = vsel %vm927, %v923, inf
        %929 = vmin.xlane.f32.xlu0 %v928
        %v930 = vpop.xlane.xlu0 %929
        %v931 = vcvt.f32.s32 %v930
        %v932 = vcvt.f32.s32 %v926
        %v933 = vshll.u32 %v932, 16
        %v934 = vadd.s32 %v933, %v931
        %vm935 = vcmp.eq.s32.totalorder %v154, %v934
        %v936 = vsel %vm935, %v152, 0.0
        %v937 = vsel %vm197, %v936, 0.0
        %938 = vadd.xlane.f32.xlu0 %v937
        %v939 = vpop.xlane.xlu0 %938
        %v940 = vsel %vm935, %v156, 0.0
        %v941 = vsel %vm197, %v940, 0.0
        %942 = vadd.xlane.f32.xlu0 %v941
        %v943 = vpop.xlane.xlu0 %942
        %v944 = vsel %vm935, %v160, 0.0
        %v945 = vsel %vm197, %v944, 0.0
        %946 = vadd.xlane.f32.xlu0 %v945
        %v947 = vpop.xlane.xlu0 %946
        %v948 = vsel %vm164, %v939, %v943
        %v949 = vsel %vm166, %v948, %v947
        %951 = vset.pattern.permute.xlu0 0
        %952 = vperm.xlu0 %951, %v949
        %v953 = vpop.permute.xlu0 %952
        %v955 = vsub.f32 %v152, %v953
        %v956 = vmul.f32 %v955, %v955
        %957 = vset.pattern.permute.xlu0 1
        %958 = vperm.xlu0 %957, %v949
        %v959 = vpop.permute.xlu0 %958
        %v960 = vrot.slane %v959, 7
        %v962 = vsub.f32 %v152, %v960
        %v963 = vmul.f32 %v962, %v962
        %v965 = vrot.slane %v963, 1
        %v967 = vadd.f32 %v956, %v965
        %968 = vset.pattern.permute.xlu0 2
        %969 = vperm.xlu0 %968, %v949
        %v970 = vpop.permute.xlu0 %969
        %v971 = vrot.slane %v970, 6
        %v973 = vsub.f32 %v152, %v971
        %v974 = vmul.f32 %v973, %v973
        %v976 = vrot.slane %v974, 2
        %v978 = vadd.f32 %v967, %v976
        %v979 = vmin.f32 %v914, %v978
        %v980 = vsel %vm197, %v979, -inf
        %981 = vmax.xlane.f32.xlu0 %v980
        %v982 = vpop.xlane.xlu0 %981
        %vm983 = vcmp.ge.f32.partialorder %v979, %v982
        %v984 = vsel %vm983, %v154, 128
        %v985 = vsel %vm197, %v984, 2147483647
        %v986 = vand.u32 %v985, 65535
        %v987 = vshra.s32 %v985, 16
        %v988 = vcvt.s32.f32 %v986
        %v989 = vcvt.s32.f32 %v987
        %990 = vmin.xlane.f32.xlu0 %v989
        %v991 = vpop.xlane.xlu0 %990
        %vm992 = vcmp.eq.f32.partialorder %v989, %v991
        %v993 = vsel %vm992, %v988, inf
        %994 = vmin.xlane.f32.xlu0 %v993
        %v995 = vpop.xlane.xlu0 %994
        %v996 = vcvt.f32.s32 %v995
        %v997 = vcvt.f32.s32 %v991
        %v998 = vshll.u32 %v997, 16
        %v999 = vadd.s32 %v998, %v996
        %vm1000 = vcmp.eq.s32.totalorder %v154, %v999
        %v1001 = vsel %vm1000, %v152, 0.0
        %v1002 = vsel %vm197, %v1001, 0.0
        %1003 = vadd.xlane.f32.xlu0 %v1002
        %v1004 = vpop.xlane.xlu0 %1003
        %v1005 = vsel %vm1000, %v156, 0.0
        %v1006 = vsel %vm197, %v1005, 0.0
        %1007 = vadd.xlane.f32.xlu0 %v1006
        %v1008 = vpop.xlane.xlu0 %1007
        %v1009 = vsel %vm1000, %v160, 0.0
        %v1010 = vsel %vm197, %v1009, 0.0
        %1011 = vadd.xlane.f32.xlu0 %v1010
        %v1012 = vpop.xlane.xlu0 %1011
        %v1013 = vsel %vm164, %v1004, %v1008
        %v1014 = vsel %vm166, %v1013, %v1012
        %1016 = vset.pattern.permute.xlu0 0
        %1017 = vperm.xlu0 %1016, %v1014
        %v1018 = vpop.permute.xlu0 %1017
        %v1020 = vsub.f32 %v152, %v1018
        %v1021 = vmul.f32 %v1020, %v1020
        %1022 = vset.pattern.permute.xlu0 1
        %1023 = vperm.xlu0 %1022, %v1014
        %v1024 = vpop.permute.xlu0 %1023
        %v1025 = vrot.slane %v1024, 7
        %v1027 = vsub.f32 %v152, %v1025
        %v1028 = vmul.f32 %v1027, %v1027
        %v1030 = vrot.slane %v1028, 1
        %v1032 = vadd.f32 %v1021, %v1030
        %1033 = vset.pattern.permute.xlu0 2
        %1034 = vperm.xlu0 %1033, %v1014
        %v1035 = vpop.permute.xlu0 %1034
        %v1036 = vrot.slane %v1035, 6
        %v1038 = vsub.f32 %v152, %v1036
        %v1039 = vmul.f32 %v1038, %v1038
        %v1041 = vrot.slane %v1039, 2
        %v1043 = vadd.f32 %v1032, %v1041
        %v1044 = vmin.f32 %v979, %v1043
        %v1045 = vsel %vm197, %v1044, -inf
        %1046 = vmax.xlane.f32.xlu0 %v1045
        %v1047 = vpop.xlane.xlu0 %1046
        %vm1048 = vcmp.ge.f32.partialorder %v1044, %v1047
        %v1049 = vsel %vm1048, %v154, 128
        %v1050 = vsel %vm197, %v1049, 2147483647
        %v1051 = vand.u32 %v1050, 65535
        %v1052 = vshra.s32 %v1050, 16
        %v1053 = vcvt.s32.f32 %v1051
        %v1054 = vcvt.s32.f32 %v1052
        %1055 = vmin.xlane.f32.xlu0 %v1054
        %v1056 = vpop.xlane.xlu0 %1055
        %vm1057 = vcmp.eq.f32.partialorder %v1054, %v1056
        %v1058 = vsel %vm1057, %v1053, inf
        %1059 = vmin.xlane.f32.xlu0 %v1058
        %v1060 = vpop.xlane.xlu0 %1059
        %v1061 = vcvt.f32.s32 %v1060
        %v1062 = vcvt.f32.s32 %v1056
        %v1063 = vshll.u32 %v1062, 16
        %v1064 = vadd.s32 %v1063, %v1061
        %vm1065 = vcmp.eq.s32.totalorder %v154, %v1064
        %v1066 = vsel %vm1065, %v152, 0.0
        %v1067 = vsel %vm197, %v1066, 0.0
        %1068 = vadd.xlane.f32.xlu0 %v1067
        %v1069 = vpop.xlane.xlu0 %1068
        %v1070 = vsel %vm1065, %v156, 0.0
        %v1071 = vsel %vm197, %v1070, 0.0
        %1072 = vadd.xlane.f32.xlu0 %v1071
        %v1073 = vpop.xlane.xlu0 %1072
        %v1074 = vsel %vm1065, %v160, 0.0
        %v1075 = vsel %vm197, %v1074, 0.0
        %1076 = vadd.xlane.f32.xlu0 %v1075
        %v1077 = vpop.xlane.xlu0 %1076
        %v1078 = vsel %vm164, %v1069, %v1073
        %v1079 = vsel %vm166, %v1078, %v1077
        %1081 = vset.pattern.permute.xlu0 0
        %1082 = vperm.xlu0 %1081, %v1079
        %v1083 = vpop.permute.xlu0 %1082
        %v1085 = vsub.f32 %v152, %v1083
        %v1086 = vmul.f32 %v1085, %v1085
        %1087 = vset.pattern.permute.xlu0 1
        %1088 = vperm.xlu0 %1087, %v1079
        %v1089 = vpop.permute.xlu0 %1088
        %v1090 = vrot.slane %v1089, 7
        %v1092 = vsub.f32 %v152, %v1090
        %v1093 = vmul.f32 %v1092, %v1092
        %v1095 = vrot.slane %v1093, 1
        %v1097 = vadd.f32 %v1086, %v1095
        %1098 = vset.pattern.permute.xlu0 2
        %1099 = vperm.xlu0 %1098, %v1079
        %v1100 = vpop.permute.xlu0 %1099
        %v1101 = vrot.slane %v1100, 6
        %v1103 = vsub.f32 %v152, %v1101
        %v1104 = vmul.f32 %v1103, %v1103
        %v1106 = vrot.slane %v1104, 2
        %v1108 = vadd.f32 %v1097, %v1106
        %v1109 = vmin.f32 %v1044, %v1108
        %v1110 = vsel %vm197, %v1109, -inf
        %1111 = vmax.xlane.f32.xlu0 %v1110
        %v1112 = vpop.xlane.xlu0 %1111
        %vm1113 = vcmp.ge.f32.partialorder %v1109, %v1112
        %v1114 = vsel %vm1113, %v154, 128
        %v1115 = vsel %vm197, %v1114, 2147483647
        %v1116 = vand.u32 %v1115, 65535
        %v1117 = vshra.s32 %v1115, 16
        %v1118 = vcvt.s32.f32 %v1116
        %v1119 = vcvt.s32.f32 %v1117
        %1120 = vmin.xlane.f32.xlu0 %v1119
        %v1121 = vpop.xlane.xlu0 %1120
        %vm1122 = vcmp.eq.f32.partialorder %v1119, %v1121
        %v1123 = vsel %vm1122, %v1118, inf
        %1124 = vmin.xlane.f32.xlu0 %v1123
        %v1125 = vpop.xlane.xlu0 %1124
        %v1126 = vcvt.f32.s32 %v1125
        %v1127 = vcvt.f32.s32 %v1121
        %v1128 = vshll.u32 %v1127, 16
        %v1129 = vadd.s32 %v1128, %v1126
        %vm1130 = vcmp.eq.s32.totalorder %v154, %v1129
        %v1131 = vsel %vm1130, %v152, 0.0
        %v1132 = vsel %vm197, %v1131, 0.0
        %1133 = vadd.xlane.f32.xlu0 %v1132
        %v1134 = vpop.xlane.xlu0 %1133
        %v1135 = vsel %vm1130, %v156, 0.0
        %v1136 = vsel %vm197, %v1135, 0.0
        %1137 = vadd.xlane.f32.xlu0 %v1136
        %v1138 = vpop.xlane.xlu0 %1137
        %v1139 = vsel %vm1130, %v160, 0.0
        %v1140 = vsel %vm197, %v1139, 0.0
        %1141 = vadd.xlane.f32.xlu0 %v1140
        %v1142 = vpop.xlane.xlu0 %1141
        %v1143 = vsel %vm164, %v1134, %v1138
        %v1144 = vsel %vm166, %v1143, %v1142
        %v1145 = vrot.slane %v234, 7
        %v1147 = vrot.slane %v299, 6
        %v1149 = vrot.slane %v364, 5
        %v1151 = vrot.slane %v429, 4
        %v1153 = vrot.slane %v494, 3
        %v1155 = vrot.slane %v559, 2
        %v1157 = vrot.slane %v624, 1
        %v1159 = vrot.slane %v754, 7
        %v1161 = vrot.slane %v819, 6
        %v1163 = vrot.slane %v884, 5
        %v1165 = vrot.slane %v949, 4
        %v1167 = vrot.slane %v1014, 3
        %v1169 = vrot.slane %v1079, 2
        %v1172 = vrot.slane %v1144, 1
        %v1174 = vsel %vm197, %v167, %v1145
        %vm1175 = vcmask 1041408
        %v1176 = vsel %vm1175, %v1174, %v1147
        %vm1177 = vcmask 1042432
        %v1178 = vsel %vm1177, %v1176, %v1149
        %vm1179 = vcmask 1043456
        %v1180 = vsel %vm1179, %v1178, %v1151
        %vm1181 = vcmask 1044480
        %v1182 = vsel %vm1181, %v1180, %v1153
        %vm1183 = vcmask 1045504
        %v1184 = vsel %vm1183, %v1182, %v1155
        %vm1185 = vcmask 1046528
        %v1186 = vsel %vm1185, %v1184, %v1157
        %v1187 = vsel %vm197, %v689, %v1159
        %v1188 = vsel %vm1175, %v1187, %v1161
        %v1189 = vsel %vm1177, %v1188, %v1163
        %v1190 = vsel %vm1179, %v1189, %v1165
        %v1191 = vsel %vm1181, %v1190, %v1167
        %v1192 = vsel %vm1183, %v1191, %v1169
        %v1193 = vsel %vm1185, %v1192, %v1172
        %v1194 = vmul.f32 %v152, %v152
        %v1196 = vrot.slane %v1194, 1
        %v1198 = vadd.f32 %v1194, %v1196
        %v1199 = vrot.slane %v1194, 2
        %v1201 = vadd.f32 %v1198, %v1199
        %v1202 = vmul.f32 %v1186, %v1186
        %v1203 = vmul.f32 %v1193, %v1193
        %1206 = vrot.lane.b32.xlu0 %v1202, 127
        %v1207 = vpop.permute.xlu0 %1206
        %1208 = vrot.lane.b32.xlu0 %v1203, 127
        %v1209 = vpop.permute.xlu0 %1208
        %v1212 = vadd.f32 %v1202, %v1207
        %v1213 = vadd.f32 %v1203, %v1209
        %1214 = vrot.lane.b32.xlu0 %v1202, 126
        %v1215 = vpop.permute.xlu0 %1214
        %1216 = vrot.lane.b32.xlu0 %v1203, 126
        %v1217 = vpop.permute.xlu0 %1216
        %v1220 = vadd.f32 %v1212, %v1215
        %v1221 = vadd.f32 %v1213, %v1217
        %1223 = vset.pattern.permute.xlu0 0
        %1224 = vperm.xlu0 %1223, %v1186
        %v1225 = vpop.permute.xlu0 %1224
        %1228 = vset.pattern.permute.xlu0 0
        %1229 = vperm.xlu0 %1228, %v1193
        %v1230 = vpop.permute.xlu0 %1229
        %v1232 = vlaneseq
        %v1233 = vshrl.u32 %v1232, 7
        %v1234 = vsub.s32 0, %v1233
        %v1235 = vrot.slane %v152, %v1234
        %v1236 = vmul.f32 %v1225, %v1235
        %v1237 = vmul.f32 %v1230, %v1235
        %1238 = vset.pattern.permute.xlu0 1
        %1239 = vperm.xlu0 %1238, %v1186
        %v1240 = vpop.permute.xlu0 %1239
        %1242 = vset.pattern.permute.xlu0 1
        %1243 = vperm.xlu0 %1242, %v1193
        %v1244 = vpop.permute.xlu0 %1243
        %v1246 = vlaneseq
        %v1247 = vshrl.u32 %v1246, 7
        %v1248 = vsub.s32 1, %v1247
        %v1249 = vrot.slane %v152, %v1248
        %v1250 = vmul.f32 %v1240, %v1249
        %v1251 = vmul.f32 %v1244, %v1249
        %v1252 = vadd.f32 %v1236, %v1250
        %v1253 = vadd.f32 %v1237, %v1251
        %1254 = vset.pattern.permute.xlu0 2
        %1255 = vperm.xlu0 %1254, %v1186
        %v1256 = vpop.permute.xlu0 %1255
        %1258 = vset.pattern.permute.xlu0 2
        %1259 = vperm.xlu0 %1258, %v1193
        %v1260 = vpop.permute.xlu0 %1259
        %v1262 = vlaneseq
        %v1263 = vshrl.u32 %v1262, 7
        %v1264 = vsub.s32 2, %v1263
        %v1265 = vrot.slane %v152, %v1264
        %v1266 = vmul.f32 %v1256, %v1265
        %v1267 = vmul.f32 %v1260, %v1265
        %v1268 = vadd.f32 %v1252, %v1266
        %v1269 = vadd.f32 %v1253, %v1267
        %1271 = vset.pattern.permute.xlu0 0
        %1272 = vperm.xlu0 %1271, %v1220
        %v1273 = vpop.permute.xlu0 %1272
        %1276 = vset.pattern.permute.xlu0 0
        %1277 = vperm.xlu0 %1276, %v1221
        %v1278 = vpop.permute.xlu0 %1277
        %v1280 = vlaneseq
        %v1281 = vshrl.u32 %v1280, 7
        %v1282 = vsub.s32 0, %v1281
        %v1283 = vrot.slane %v1201, %v1282
        %v1284 = vadd.f32 %v1273, %v1283
        %v1285 = vadd.f32 %v1278, %v1283
        %v1286 = vmul.f32 %v1268, 2.0
        %v1287 = vmul.f32 %v1269, 2.0
        %v1288 = vsub.f32 %v1284, %v1286
        %v1289 = vsub.f32 %v1285, %v1287
        %1290 = vmin.xlane.f32.xlu0 %v1288
        %v1291 = vpop.xlane.xlu0 %1290
        %1292 = vmin.xlane.f32.xlu0 %v1289
        %v1293 = vpop.xlane.xlu0 %1292
        %vm1294 = vcmp.le.f32.partialorder %v1288, %v1291
        %vm1295 = vcmp.le.f32.partialorder %v1289, %v1293
        %v1296 = vsel %vm1294, %v154, 128
        %v1297 = vsel %vm1295, %v154, 128
        %v1298 = vand.u32 %v1296, 65535
        %v1299 = vshra.s32 %v1296, 16
        %v1300 = vcvt.s32.f32 %v1298
        %v1301 = vcvt.s32.f32 %v1299
        %1302 = vmin.xlane.f32.xlu0 %v1301
        %v1303 = vpop.xlane.xlu0 %1302
        %vm1304 = vcmp.eq.f32.partialorder %v1301, %v1303
        %v1305 = vsel %vm1304, %v1300, inf
        %1306 = vmin.xlane.f32.xlu0 %v1305
        %v1307 = vpop.xlane.xlu0 %1306
        %v1308 = vcvt.f32.s32 %v1307
        %v1309 = vcvt.f32.s32 %v1303
        %v1310 = vshll.u32 %v1309, 16
        %v1311 = vadd.s32 %v1310, %v1308
        %v1312 = vand.u32 %v1297, 65535
        %v1313 = vshra.s32 %v1297, 16
        %v1314 = vcvt.s32.f32 %v1312
        %v1315 = vcvt.s32.f32 %v1313
        %1316 = vmin.xlane.f32.xlu0 %v1315
        %v1317 = vpop.xlane.xlu0 %1316
        %vm1318 = vcmp.eq.f32.partialorder %v1315, %v1317
        %v1319 = vsel %vm1318, %v1314, inf
        %1320 = vmin.xlane.f32.xlu0 %v1319
        %v1321 = vpop.xlane.xlu0 %1320
        %v1322 = vcvt.f32.s32 %v1321
        %v1323 = vcvt.f32.s32 %v1317
        %v1324 = vshll.u32 %v1323, 16
        %v1325 = vadd.s32 %v1324, %v1322
        %vm1326 = vcmp.eq.s32.totalorder %v154, %v1311
        %vm1327 = vcmp.eq.s32.totalorder %v154, %v1325
        %v1328 = vsel %vm1326, %v1235, 0.0
        %v1329 = vsel %vm1327, %v1235, 0.0
        %1330 = vadd.xlane.f32.xlu0 %v1328
        %v1331 = vpop.xlane.xlu0 %1330
        %1332 = vadd.xlane.f32.xlu0 %v1329
        %v1333 = vpop.xlane.xlu0 %1332
        %v1334 = vsel %vm1326, %v1249, 0.0
        %v1335 = vsel %vm1327, %v1249, 0.0
        %1336 = vadd.xlane.f32.xlu0 %v1334
        %v1337 = vpop.xlane.xlu0 %1336
        %1338 = vadd.xlane.f32.xlu0 %v1335
        %v1339 = vpop.xlane.xlu0 %1338
        %v1340 = vsel %vm1326, %v1265, 0.0
        %v1341 = vsel %vm1327, %v1265, 0.0
        %1342 = vadd.xlane.f32.xlu0 %v1340
        %v1343 = vpop.xlane.xlu0 %1342
        %1344 = vadd.xlane.f32.xlu0 %v1341
        %v1345 = vpop.xlane.xlu0 %1344
        %v1346 = vsel %vm164, %v1331, %v1337
        %v1347 = vsel %vm164, %v1333, %v1339
        %v1348 = vsel %vm166, %v1346, %v1343
        %v1349 = vsel %vm166, %v1347, %v1345
        %v1350 = vsub.f32 %v1348, %v1186
        %v1351 = vsub.f32 %v1349, %v1193
        %vm1352 = vcmask 23552
        %1353 = vst.msk [vmem:[%s135] sm:$0xff] %vm1352, %v1350
        %1354 = vst.msk [vmem:[%s135 + $0x8] sm:$0xff] %vm1352, %v1351
        %v1355 = vsel %vm1326, inf, %v1288
        %v1356 = vsel %vm1327, inf, %v1289
        %1357 = vmin.xlane.f32.xlu0 %v1355
        %v1358 = vpop.xlane.xlu0 %1357
        %1359 = vmin.xlane.f32.xlu0 %v1356
        %v1360 = vpop.xlane.xlu0 %1359
        %vm1361 = vcmp.le.f32.partialorder %v1355, %v1358
        %vm1362 = vcmp.le.f32.partialorder %v1356, %v1360
        %v1363 = vsel %vm1361, %v154, 128
        %v1364 = vsel %vm1362, %v154, 128
        %v1365 = vand.u32 %v1363, 65535
        %v1366 = vshra.s32 %v1363, 16
        %v1367 = vcvt.s32.f32 %v1365
        %v1368 = vcvt.s32.f32 %v1366
        %1369 = vmin.xlane.f32.xlu0 %v1368
        %v1370 = vpop.xlane.xlu0 %1369
        %vm1371 = vcmp.eq.f32.partialorder %v1368, %v1370
        %v1372 = vsel %vm1371, %v1367, inf
        %1373 = vmin.xlane.f32.xlu0 %v1372
        %v1374 = vpop.xlane.xlu0 %1373
        %v1375 = vcvt.f32.s32 %v1374
        %v1376 = vcvt.f32.s32 %v1370
        %v1377 = vshll.u32 %v1376, 16
        %v1378 = vadd.s32 %v1377, %v1375
        %v1379 = vand.u32 %v1364, 65535
        %v1380 = vshra.s32 %v1364, 16
        %v1381 = vcvt.s32.f32 %v1379
        %v1382 = vcvt.s32.f32 %v1380
        %1383 = vmin.xlane.f32.xlu0 %v1382
        %v1384 = vpop.xlane.xlu0 %1383
        %vm1385 = vcmp.eq.f32.partialorder %v1382, %v1384
        %v1386 = vsel %vm1385, %v1381, inf
        %1387 = vmin.xlane.f32.xlu0 %v1386
        %v1388 = vpop.xlane.xlu0 %1387
        %v1389 = vcvt.f32.s32 %v1388
        %v1390 = vcvt.f32.s32 %v1384
        %v1391 = vshll.u32 %v1390, 16
        %v1392 = vadd.s32 %v1391, %v1389
        %vm1393 = vcmp.eq.s32.totalorder %v154, %v1378
        %vm1394 = vcmp.eq.s32.totalorder %v154, %v1392
        %v1395 = vsel %vm1393, %v1235, 0.0
        %v1396 = vsel %vm1394, %v1235, 0.0
        %1397 = vadd.xlane.f32.xlu0 %v1395
        %v1398 = vpop.xlane.xlu0 %1397
        %1399 = vadd.xlane.f32.xlu0 %v1396
        %v1400 = vpop.xlane.xlu0 %1399
        %v1401 = vsel %vm1393, %v1249, 0.0
        %v1402 = vsel %vm1394, %v1249, 0.0
        %1403 = vadd.xlane.f32.xlu0 %v1401
        %v1404 = vpop.xlane.xlu0 %1403
        %1405 = vadd.xlane.f32.xlu0 %v1402
        %v1406 = vpop.xlane.xlu0 %1405
        %v1407 = vsel %vm1393, %v1265, 0.0
        %v1408 = vsel %vm1394, %v1265, 0.0
        %1409 = vadd.xlane.f32.xlu0 %v1407
        %v1410 = vpop.xlane.xlu0 %1409
        %1411 = vadd.xlane.f32.xlu0 %v1408
        %v1412 = vpop.xlane.xlu0 %1411
        %v1413 = vsel %vm164, %v1398, %v1404
        %v1414 = vsel %vm164, %v1400, %v1406
        %v1415 = vsel %vm166, %v1413, %v1410
        %v1416 = vsel %vm166, %v1414, %v1412
        %v1417 = vsub.f32 %v1415, %v1186
        %v1418 = vsub.f32 %v1416, %v1193
        %1421 = vrot.lane.b32.xlu0 %v1417, 3
        %v1422 = vpop.permute.xlu0 %1421
        %1423 = vrot.lane.b32.xlu0 %v1418, 3
        %v1424 = vpop.permute.xlu0 %1423
        %vm1427 = vcmask 48152
        %1428 = vst.msk [vmem:[%s135] sm:$0xff] %vm1427, %v1422
        %1429 = vst.msk [vmem:[%s135 + $0x8] sm:$0xff] %vm1427, %v1424
        %v1430 = vsel %vm1393, inf, %v1355
        %v1431 = vsel %vm1394, inf, %v1356
        %1432 = vmin.xlane.f32.xlu0 %v1430
        %v1433 = vpop.xlane.xlu0 %1432
        %1434 = vmin.xlane.f32.xlu0 %v1431
        %v1435 = vpop.xlane.xlu0 %1434
        %vm1436 = vcmp.le.f32.partialorder %v1430, %v1433
        %vm1437 = vcmp.le.f32.partialorder %v1431, %v1435
        %v1438 = vsel %vm1436, %v154, 128
        %v1439 = vsel %vm1437, %v154, 128
        %v1440 = vand.u32 %v1438, 65535
        %v1441 = vshra.s32 %v1438, 16
        %v1442 = vcvt.s32.f32 %v1440
        %v1443 = vcvt.s32.f32 %v1441
        %1444 = vmin.xlane.f32.xlu0 %v1443
        %v1445 = vpop.xlane.xlu0 %1444
        %vm1446 = vcmp.eq.f32.partialorder %v1443, %v1445
        %v1447 = vsel %vm1446, %v1442, inf
        %1448 = vmin.xlane.f32.xlu0 %v1447
        %v1449 = vpop.xlane.xlu0 %1448
        %v1450 = vcvt.f32.s32 %v1449
        %v1451 = vcvt.f32.s32 %v1445
        %v1452 = vshll.u32 %v1451, 16
        %v1453 = vadd.s32 %v1452, %v1450
        %v1454 = vand.u32 %v1439, 65535
        %v1455 = vshra.s32 %v1439, 16
        %v1456 = vcvt.s32.f32 %v1454
        %v1457 = vcvt.s32.f32 %v1455
        %1458 = vmin.xlane.f32.xlu0 %v1457
        %v1459 = vpop.xlane.xlu0 %1458
        %vm1460 = vcmp.eq.f32.partialorder %v1457, %v1459
        %v1461 = vsel %vm1460, %v1456, inf
        %1462 = vmin.xlane.f32.xlu0 %v1461
        %v1463 = vpop.xlane.xlu0 %1462
        %v1464 = vcvt.f32.s32 %v1463
        %v1465 = vcvt.f32.s32 %v1459
        %v1466 = vshll.u32 %v1465, 16
        %v1467 = vadd.s32 %v1466, %v1464
        %vm1468 = vcmp.eq.s32.totalorder %v154, %v1453
        %vm1469 = vcmp.eq.s32.totalorder %v154, %v1467
        %v1470 = vsel %vm1468, %v1235, 0.0
        %v1471 = vsel %vm1469, %v1235, 0.0
        %1472 = vadd.xlane.f32.xlu0 %v1470
        %v1473 = vpop.xlane.xlu0 %1472
        %1474 = vadd.xlane.f32.xlu0 %v1471
        %v1475 = vpop.xlane.xlu0 %1474
        %v1476 = vsel %vm1468, %v1249, 0.0
        %v1477 = vsel %vm1469, %v1249, 0.0
        %1478 = vadd.xlane.f32.xlu0 %v1476
        %v1479 = vpop.xlane.xlu0 %1478
        %1480 = vadd.xlane.f32.xlu0 %v1477
        %v1481 = vpop.xlane.xlu0 %1480
        %v1482 = vsel %vm1468, %v1265, 0.0
        %v1483 = vsel %vm1469, %v1265, 0.0
        %1484 = vadd.xlane.f32.xlu0 %v1482
        %v1485 = vpop.xlane.xlu0 %1484
        %1486 = vadd.xlane.f32.xlu0 %v1483
        %v1487 = vpop.xlane.xlu0 %1486
        %v1488 = vsel %vm164, %v1473, %v1479
        %v1489 = vsel %vm164, %v1475, %v1481
        %v1490 = vsel %vm166, %v1488, %v1485
        %v1491 = vsel %vm166, %v1489, %v1487
        %v1492 = vsub.f32 %v1490, %v1186
        %v1493 = vsub.f32 %v1491, %v1193
        %1496 = vrot.lane.b32.xlu0 %v1492, 6
        %v1497 = vpop.permute.xlu0 %1496
        %1498 = vrot.lane.b32.xlu0 %v1493, 6
        %v1499 = vpop.permute.xlu0 %1498
        %vm1502 = vcmask 72752
        %1503 = vst.msk [vmem:[%s135] sm:$0xff] %vm1502, %v1497
        %1504 = vst.msk [vmem:[%s135 + $0x8] sm:$0xff] %vm1502, %v1499
        %v1505 = vsel %vm1468, inf, %v1430
        %v1506 = vsel %vm1469, inf, %v1431
        %1507 = vmin.xlane.f32.xlu0 %v1505
        %v1508 = vpop.xlane.xlu0 %1507
        %1509 = vmin.xlane.f32.xlu0 %v1506
        %v1510 = vpop.xlane.xlu0 %1509
        %vm1511 = vcmp.le.f32.partialorder %v1505, %v1508
        %vm1512 = vcmp.le.f32.partialorder %v1506, %v1510
        %v1513 = vsel %vm1511, %v154, 128
        %v1514 = vsel %vm1512, %v154, 128
        %v1515 = vand.u32 %v1513, 65535
        %v1516 = vshra.s32 %v1513, 16
        %v1517 = vcvt.s32.f32 %v1515
        %v1518 = vcvt.s32.f32 %v1516
        %1519 = vmin.xlane.f32.xlu0 %v1518
        %v1520 = vpop.xlane.xlu0 %1519
        %vm1521 = vcmp.eq.f32.partialorder %v1518, %v1520
        %v1522 = vsel %vm1521, %v1517, inf
        %1523 = vmin.xlane.f32.xlu0 %v1522
        %v1524 = vpop.xlane.xlu0 %1523
        %v1525 = vcvt.f32.s32 %v1524
        %v1526 = vcvt.f32.s32 %v1520
        %v1527 = vshll.u32 %v1526, 16
        %v1528 = vadd.s32 %v1527, %v1525
        %v1529 = vand.u32 %v1514, 65535
        %v1530 = vshra.s32 %v1514, 16
        %v1531 = vcvt.s32.f32 %v1529
        %v1532 = vcvt.s32.f32 %v1530
        %1533 = vmin.xlane.f32.xlu0 %v1532
        %v1534 = vpop.xlane.xlu0 %1533
        %vm1535 = vcmp.eq.f32.partialorder %v1532, %v1534
        %v1536 = vsel %vm1535, %v1531, inf
        %1537 = vmin.xlane.f32.xlu0 %v1536
        %v1538 = vpop.xlane.xlu0 %1537
        %v1539 = vcvt.f32.s32 %v1538
        %v1540 = vcvt.f32.s32 %v1534
        %v1541 = vshll.u32 %v1540, 16
        %v1542 = vadd.s32 %v1541, %v1539
        %vm1543 = vcmp.eq.s32.totalorder %v154, %v1528
        %vm1544 = vcmp.eq.s32.totalorder %v154, %v1542
        %v1545 = vsel %vm1543, %v1235, 0.0
        %v1546 = vsel %vm1544, %v1235, 0.0
        %1547 = vadd.xlane.f32.xlu0 %v1545
        %v1548 = vpop.xlane.xlu0 %1547
        %1549 = vadd.xlane.f32.xlu0 %v1546
        %v1550 = vpop.xlane.xlu0 %1549
        %v1551 = vsel %vm1543, %v1249, 0.0
        %v1552 = vsel %vm1544, %v1249, 0.0
        %1553 = vadd.xlane.f32.xlu0 %v1551
        %v1554 = vpop.xlane.xlu0 %1553
        %1555 = vadd.xlane.f32.xlu0 %v1552
        %v1556 = vpop.xlane.xlu0 %1555
        %v1557 = vsel %vm1543, %v1265, 0.0
        %v1558 = vsel %vm1544, %v1265, 0.0
        %1559 = vadd.xlane.f32.xlu0 %v1557
        %v1560 = vpop.xlane.xlu0 %1559
        %1561 = vadd.xlane.f32.xlu0 %v1558
        %v1562 = vpop.xlane.xlu0 %1561
        %v1563 = vsel %vm164, %v1548, %v1554
        %v1564 = vsel %vm164, %v1550, %v1556
        %v1565 = vsel %vm166, %v1563, %v1560
        %v1566 = vsel %vm166, %v1564, %v1562
        %v1567 = vsub.f32 %v1565, %v1186
        %v1568 = vsub.f32 %v1566, %v1193
        %1571 = vrot.lane.b32.xlu0 %v1567, 9
        %v1572 = vpop.permute.xlu0 %1571
        %1573 = vrot.lane.b32.xlu0 %v1568, 9
        %v1574 = vpop.permute.xlu0 %1573
        %vm1577 = vcmask 97352
        %1578 = vst.msk [vmem:[%s135] sm:$0xff] %vm1577, %v1572
        %1579 = vst.msk [vmem:[%s135 + $0x8] sm:$0xff] %vm1577, %v1574
        %v1580 = vsel %vm1543, inf, %v1505
        %v1581 = vsel %vm1544, inf, %v1506
        %1582 = vmin.xlane.f32.xlu0 %v1580
        %v1583 = vpop.xlane.xlu0 %1582
        %1584 = vmin.xlane.f32.xlu0 %v1581
        %v1585 = vpop.xlane.xlu0 %1584
        %vm1586 = vcmp.le.f32.partialorder %v1580, %v1583
        %vm1587 = vcmp.le.f32.partialorder %v1581, %v1585
        %v1588 = vsel %vm1586, %v154, 128
        %v1589 = vsel %vm1587, %v154, 128
        %v1590 = vand.u32 %v1588, 65535
        %v1591 = vshra.s32 %v1588, 16
        %v1592 = vcvt.s32.f32 %v1590
        %v1593 = vcvt.s32.f32 %v1591
        %1594 = vmin.xlane.f32.xlu0 %v1593
        %v1595 = vpop.xlane.xlu0 %1594
        %vm1596 = vcmp.eq.f32.partialorder %v1593, %v1595
        %v1597 = vsel %vm1596, %v1592, inf
        %1598 = vmin.xlane.f32.xlu0 %v1597
        %v1599 = vpop.xlane.xlu0 %1598
        %v1600 = vcvt.f32.s32 %v1599
        %v1601 = vcvt.f32.s32 %v1595
        %v1602 = vshll.u32 %v1601, 16
        %v1603 = vadd.s32 %v1602, %v1600
        %v1604 = vand.u32 %v1589, 65535
        %v1605 = vshra.s32 %v1589, 16
        %v1606 = vcvt.s32.f32 %v1604
        %v1607 = vcvt.s32.f32 %v1605
        %1608 = vmin.xlane.f32.xlu0 %v1607
        %v1609 = vpop.xlane.xlu0 %1608
        %vm1610 = vcmp.eq.f32.partialorder %v1607, %v1609
        %v1611 = vsel %vm1610, %v1606, inf
        %1612 = vmin.xlane.f32.xlu0 %v1611
        %v1613 = vpop.xlane.xlu0 %1612
        %v1614 = vcvt.f32.s32 %v1613
        %v1615 = vcvt.f32.s32 %v1609
        %v1616 = vshll.u32 %v1615, 16
        %v1617 = vadd.s32 %v1616, %v1614
        %vm1618 = vcmp.eq.s32.totalorder %v154, %v1603
        %vm1619 = vcmp.eq.s32.totalorder %v154, %v1617
        %v1620 = vsel %vm1618, %v1235, 0.0
        %v1621 = vsel %vm1619, %v1235, 0.0
        %1622 = vadd.xlane.f32.xlu0 %v1620
        %v1623 = vpop.xlane.xlu0 %1622
        %1624 = vadd.xlane.f32.xlu0 %v1621
        %v1625 = vpop.xlane.xlu0 %1624
        %v1626 = vsel %vm1618, %v1249, 0.0
        %v1627 = vsel %vm1619, %v1249, 0.0
        %1628 = vadd.xlane.f32.xlu0 %v1626
        %v1629 = vpop.xlane.xlu0 %1628
        %1630 = vadd.xlane.f32.xlu0 %v1627
        %v1631 = vpop.xlane.xlu0 %1630
        %v1632 = vsel %vm1618, %v1265, 0.0
        %v1633 = vsel %vm1619, %v1265, 0.0
        %1634 = vadd.xlane.f32.xlu0 %v1632
        %v1635 = vpop.xlane.xlu0 %1634
        %1636 = vadd.xlane.f32.xlu0 %v1633
        %v1637 = vpop.xlane.xlu0 %1636
        %v1638 = vsel %vm164, %v1623, %v1629
        %v1639 = vsel %vm164, %v1625, %v1631
        %v1640 = vsel %vm166, %v1638, %v1635
        %v1641 = vsel %vm166, %v1639, %v1637
        %v1642 = vsub.f32 %v1640, %v1186
        %v1643 = vsub.f32 %v1641, %v1193
        %1646 = vrot.lane.b32.xlu0 %v1642, 12
        %v1647 = vpop.permute.xlu0 %1646
        %1648 = vrot.lane.b32.xlu0 %v1643, 12
        %v1649 = vpop.permute.xlu0 %1648
        %vm1652 = vcmask 121952
        %1653 = vst.msk [vmem:[%s135] sm:$0xff] %vm1652, %v1647
        %1654 = vst.msk [vmem:[%s135 + $0x8] sm:$0xff] %vm1652, %v1649
        %v1655 = vsel %vm1618, inf, %v1580
        %v1656 = vsel %vm1619, inf, %v1581
        %1657 = vmin.xlane.f32.xlu0 %v1655
        %v1658 = vpop.xlane.xlu0 %1657
        %1659 = vmin.xlane.f32.xlu0 %v1656
        %v1660 = vpop.xlane.xlu0 %1659
        %vm1661 = vcmp.le.f32.partialorder %v1655, %v1658
        %vm1662 = vcmp.le.f32.partialorder %v1656, %v1660
        %v1663 = vsel %vm1661, %v154, 128
        %v1664 = vsel %vm1662, %v154, 128
        %v1665 = vand.u32 %v1663, 65535
        %v1666 = vshra.s32 %v1663, 16
        %v1667 = vcvt.s32.f32 %v1665
        %v1668 = vcvt.s32.f32 %v1666
        %1669 = vmin.xlane.f32.xlu0 %v1668
        %v1670 = vpop.xlane.xlu0 %1669
        %vm1671 = vcmp.eq.f32.partialorder %v1668, %v1670
        %v1672 = vsel %vm1671, %v1667, inf
        %1673 = vmin.xlane.f32.xlu0 %v1672
        %v1674 = vpop.xlane.xlu0 %1673
        %v1675 = vcvt.f32.s32 %v1674
        %v1676 = vcvt.f32.s32 %v1670
        %v1677 = vshll.u32 %v1676, 16
        %v1678 = vadd.s32 %v1677, %v1675
        %v1679 = vand.u32 %v1664, 65535
        %v1680 = vshra.s32 %v1664, 16
        %v1681 = vcvt.s32.f32 %v1679
        %v1682 = vcvt.s32.f32 %v1680
        %1683 = vmin.xlane.f32.xlu0 %v1682
        %v1684 = vpop.xlane.xlu0 %1683
        %vm1685 = vcmp.eq.f32.partialorder %v1682, %v1684
        %v1686 = vsel %vm1685, %v1681, inf
        %1687 = vmin.xlane.f32.xlu0 %v1686
        %v1688 = vpop.xlane.xlu0 %1687
        %v1689 = vcvt.f32.s32 %v1688
        %v1690 = vcvt.f32.s32 %v1684
        %v1691 = vshll.u32 %v1690, 16
        %v1692 = vadd.s32 %v1691, %v1689
        %vm1693 = vcmp.eq.s32.totalorder %v154, %v1678
        %vm1694 = vcmp.eq.s32.totalorder %v154, %v1692
        %v1695 = vsel %vm1693, %v1235, 0.0
        %v1696 = vsel %vm1694, %v1235, 0.0
        %1697 = vadd.xlane.f32.xlu0 %v1695
        %v1698 = vpop.xlane.xlu0 %1697
        %1699 = vadd.xlane.f32.xlu0 %v1696
        %v1700 = vpop.xlane.xlu0 %1699
        %v1701 = vsel %vm1693, %v1249, 0.0
        %v1702 = vsel %vm1694, %v1249, 0.0
        %1703 = vadd.xlane.f32.xlu0 %v1701
        %v1704 = vpop.xlane.xlu0 %1703
        %1705 = vadd.xlane.f32.xlu0 %v1702
        %v1706 = vpop.xlane.xlu0 %1705
        %v1707 = vsel %vm1693, %v1265, 0.0
        %v1708 = vsel %vm1694, %v1265, 0.0
        %1709 = vadd.xlane.f32.xlu0 %v1707
        %v1710 = vpop.xlane.xlu0 %1709
        %1711 = vadd.xlane.f32.xlu0 %v1708
        %v1712 = vpop.xlane.xlu0 %1711
        %v1713 = vsel %vm164, %v1698, %v1704
        %v1714 = vsel %vm164, %v1700, %v1706
        %v1715 = vsel %vm166, %v1713, %v1710
        %v1716 = vsel %vm166, %v1714, %v1712
        %v1717 = vsub.f32 %v1715, %v1186
        %v1718 = vsub.f32 %v1716, %v1193
        %1721 = vrot.lane.b32.xlu0 %v1717, 15
        %v1722 = vpop.permute.xlu0 %1721
        %1723 = vrot.lane.b32.xlu0 %v1718, 15
        %v1724 = vpop.permute.xlu0 %1723
        %vm1727 = vcmask 146552
        %1728 = vst.msk [vmem:[%s135] sm:$0xff] %vm1727, %v1722
        %1729 = vst.msk [vmem:[%s135 + $0x8] sm:$0xff] %vm1727, %v1724
        %v1730 = vsel %vm1693, inf, %v1655
        %v1731 = vsel %vm1694, inf, %v1656
        %1732 = vmin.xlane.f32.xlu0 %v1730
        %v1733 = vpop.xlane.xlu0 %1732
        %1734 = vmin.xlane.f32.xlu0 %v1731
        %v1735 = vpop.xlane.xlu0 %1734
        %vm1736 = vcmp.le.f32.partialorder %v1730, %v1733
        %vm1737 = vcmp.le.f32.partialorder %v1731, %v1735
        %v1738 = vsel %vm1736, %v154, 128
        %v1739 = vsel %vm1737, %v154, 128
        %v1740 = vand.u32 %v1738, 65535
        %v1741 = vshra.s32 %v1738, 16
        %v1742 = vcvt.s32.f32 %v1740
        %v1743 = vcvt.s32.f32 %v1741
        %1744 = vmin.xlane.f32.xlu0 %v1743
        %v1745 = vpop.xlane.xlu0 %1744
        %vm1746 = vcmp.eq.f32.partialorder %v1743, %v1745
        %v1747 = vsel %vm1746, %v1742, inf
        %1748 = vmin.xlane.f32.xlu0 %v1747
        %v1749 = vpop.xlane.xlu0 %1748
        %v1750 = vcvt.f32.s32 %v1749
        %v1751 = vcvt.f32.s32 %v1745
        %v1752 = vshll.u32 %v1751, 16
        %v1753 = vadd.s32 %v1752, %v1750
        %v1754 = vand.u32 %v1739, 65535
        %v1755 = vshra.s32 %v1739, 16
        %v1756 = vcvt.s32.f32 %v1754
        %v1757 = vcvt.s32.f32 %v1755
        %1758 = vmin.xlane.f32.xlu0 %v1757
        %v1759 = vpop.xlane.xlu0 %1758
        %vm1760 = vcmp.eq.f32.partialorder %v1757, %v1759
        %v1761 = vsel %vm1760, %v1756, inf
        %1762 = vmin.xlane.f32.xlu0 %v1761
        %v1763 = vpop.xlane.xlu0 %1762
        %v1764 = vcvt.f32.s32 %v1763
        %v1765 = vcvt.f32.s32 %v1759
        %v1766 = vshll.u32 %v1765, 16
        %v1767 = vadd.s32 %v1766, %v1764
        %vm1768 = vcmp.eq.s32.totalorder %v154, %v1753
        %vm1769 = vcmp.eq.s32.totalorder %v154, %v1767
        %v1770 = vsel %vm1768, %v1235, 0.0
        %v1771 = vsel %vm1769, %v1235, 0.0
        %1772 = vadd.xlane.f32.xlu0 %v1770
        %v1773 = vpop.xlane.xlu0 %1772
        %1774 = vadd.xlane.f32.xlu0 %v1771
        %v1775 = vpop.xlane.xlu0 %1774
        %v1776 = vsel %vm1768, %v1249, 0.0
        %v1777 = vsel %vm1769, %v1249, 0.0
        %1778 = vadd.xlane.f32.xlu0 %v1776
        %v1779 = vpop.xlane.xlu0 %1778
        %1780 = vadd.xlane.f32.xlu0 %v1777
        %v1781 = vpop.xlane.xlu0 %1780
        %v1782 = vsel %vm1768, %v1265, 0.0
        %v1783 = vsel %vm1769, %v1265, 0.0
        %1784 = vadd.xlane.f32.xlu0 %v1782
        %v1785 = vpop.xlane.xlu0 %1784
        %1786 = vadd.xlane.f32.xlu0 %v1783
        %v1787 = vpop.xlane.xlu0 %1786
        %v1788 = vsel %vm164, %v1773, %v1779
        %v1789 = vsel %vm164, %v1775, %v1781
        %v1790 = vsel %vm166, %v1788, %v1785
        %v1791 = vsel %vm166, %v1789, %v1787
        %v1792 = vsub.f32 %v1790, %v1186
        %v1793 = vsub.f32 %v1791, %v1193
        %1796 = vrot.lane.b32.xlu0 %v1792, 18
        %v1797 = vpop.permute.xlu0 %1796
        %1798 = vrot.lane.b32.xlu0 %v1793, 18
        %v1799 = vpop.permute.xlu0 %1798
        %vm1802 = vcmask 171152
        %1803 = vst.msk [vmem:[%s135] sm:$0xff] %vm1802, %v1797
        %1804 = vst.msk [vmem:[%s135 + $0x8] sm:$0xff] %vm1802, %v1799
        %v1805 = vsel %vm1768, inf, %v1730
        %v1806 = vsel %vm1769, inf, %v1731
        %1807 = vmin.xlane.f32.xlu0 %v1805
        %v1808 = vpop.xlane.xlu0 %1807
        %1809 = vmin.xlane.f32.xlu0 %v1806
        %v1810 = vpop.xlane.xlu0 %1809
        %vm1811 = vcmp.le.f32.partialorder %v1805, %v1808
        %vm1812 = vcmp.le.f32.partialorder %v1806, %v1810
        %v1813 = vsel %vm1811, %v154, 128
        %v1814 = vsel %vm1812, %v154, 128
        %v1815 = vand.u32 %v1813, 65535
        %v1816 = vshra.s32 %v1813, 16
        %v1817 = vcvt.s32.f32 %v1815
        %v1818 = vcvt.s32.f32 %v1816
        %1819 = vmin.xlane.f32.xlu0 %v1818
        %v1820 = vpop.xlane.xlu0 %1819
        %vm1821 = vcmp.eq.f32.partialorder %v1818, %v1820
        %v1822 = vsel %vm1821, %v1817, inf
        %1823 = vmin.xlane.f32.xlu0 %v1822
        %v1824 = vpop.xlane.xlu0 %1823
        %v1825 = vcvt.f32.s32 %v1824
        %v1826 = vcvt.f32.s32 %v1820
        %v1827 = vshll.u32 %v1826, 16
        %v1828 = vadd.s32 %v1827, %v1825
        %v1829 = vand.u32 %v1814, 65535
        %v1830 = vshra.s32 %v1814, 16
        %v1831 = vcvt.s32.f32 %v1829
        %v1832 = vcvt.s32.f32 %v1830
        %1833 = vmin.xlane.f32.xlu0 %v1832
        %v1834 = vpop.xlane.xlu0 %1833
        %vm1835 = vcmp.eq.f32.partialorder %v1832, %v1834
        %v1836 = vsel %vm1835, %v1831, inf
        %1837 = vmin.xlane.f32.xlu0 %v1836
        %v1838 = vpop.xlane.xlu0 %1837
        %v1839 = vcvt.f32.s32 %v1838
        %v1840 = vcvt.f32.s32 %v1834
        %v1841 = vshll.u32 %v1840, 16
        %v1842 = vadd.s32 %v1841, %v1839
        %vm1843 = vcmp.eq.s32.totalorder %v154, %v1828
        %vm1844 = vcmp.eq.s32.totalorder %v154, %v1842
        %v1845 = vsel %vm1843, %v1235, 0.0
        %v1846 = vsel %vm1844, %v1235, 0.0
        %1847 = vadd.xlane.f32.xlu0 %v1845
        %v1848 = vpop.xlane.xlu0 %1847
        %1849 = vadd.xlane.f32.xlu0 %v1846
        %v1850 = vpop.xlane.xlu0 %1849
        %v1851 = vsel %vm1843, %v1249, 0.0
        %v1852 = vsel %vm1844, %v1249, 0.0
        %1853 = vadd.xlane.f32.xlu0 %v1851
        %v1854 = vpop.xlane.xlu0 %1853
        %1855 = vadd.xlane.f32.xlu0 %v1852
        %v1856 = vpop.xlane.xlu0 %1855
        %v1857 = vsel %vm1843, %v1265, 0.0
        %v1858 = vsel %vm1844, %v1265, 0.0
        %1859 = vadd.xlane.f32.xlu0 %v1857
        %v1860 = vpop.xlane.xlu0 %1859
        %1861 = vadd.xlane.f32.xlu0 %v1858
        %v1862 = vpop.xlane.xlu0 %1861
        %v1863 = vsel %vm164, %v1848, %v1854
        %v1864 = vsel %vm164, %v1850, %v1856
        %v1865 = vsel %vm166, %v1863, %v1860
        %v1866 = vsel %vm166, %v1864, %v1862
        %v1867 = vsub.f32 %v1865, %v1186
        %v1868 = vsub.f32 %v1866, %v1193
        %1871 = vrot.lane.b32.xlu0 %v1867, 21
        %v1872 = vpop.permute.xlu0 %1871
        %1873 = vrot.lane.b32.xlu0 %v1868, 21
        %v1874 = vpop.permute.xlu0 %1873
        %vm1877 = vcmask 195752
        %1878 = vst.msk [vmem:[%s135] sm:$0xff] %vm1877, %v1872
        %1879 = vst.msk [vmem:[%s135 + $0x8] sm:$0xff] %vm1877, %v1874
        %1880 = vst.msk [vmem:[%s151] sm:$0xff] %vm1352, %v1186
        %1881 = vst.msk [vmem:[%s151 + $0x8] sm:$0xff] %vm1352, %v1193
        %s1882 = sand.u32 %s51, 1
        %s1883 = scalar_lea.sflag [#allocation3], %s1882
        %s1884 = sand.u32 %s51, 1
        %s1885 = smul.addr %s1884, 16
        %s1886 = scalar_lea.vmem [#allocation2], %s1885
        %p1887 = scmp.lt.s32.totalorder %s17, 1
        %s1888 = scalar_select %p1887, %s17, 1
        %s1889 = smul.addr %s1888, 2
        %s1890 = smul.addr %s1889, 8
        %s1891 = scalar_lea.vmem %s2, %s1890
        // Predicated region
        $region25: #{tpu_custom_call.1} parent=23 // pred_check
          %p1892 = pneg %p61
        $region26: #{tpu_custom_call.1} parent=23 // pred_check_branch
          %1894 = sbr.rel (%p1892) target = $region28
        $region27: #{tpu_custom_call.1} parent=23 // pred_region
          %s1896 = ssub.s32 256, 256
          %1897 = vsyncadd %s1883, %s1896
          %s1898 = smul.addr %s17, 2
          %s1899 = smul.addr %s1898, 128
          %s1900 = scalar_lea.hbm %s1, %s1899
          %s1901 = sshll.u32 %s1886, 4
          %s1902 = int_to_ptr.vmem [resolvable:$true] %s1901
          %1907 = dma.vmem_to_hbm [thread:$0]  %s1902, 256, %s1900, %s1883, 128, 128, 8
        $region28: #{tpu_custom_call.1} parent=23 // pred_fallthru
          _
        // Predicated region
        $region29: #{tpu_custom_call.1} parent=23 // pred_check
          %p1908 = pneg %p87
        $region30: #{tpu_custom_call.1} parent=23 // pred_check_branch
          %1910 = sbr.rel (%p1908) target = $region32
        $region31: #{tpu_custom_call.1} parent=23 // pred_region
          _
        $region32: #{tpu_custom_call.1} parent=23 // pred_fallthru
          _
      $region24: #{tpu_custom_call.1} parent=5 // pred_fallthru
        _
      %p1911 = scmp.le.s32.totalorder 2, %s12
      // Predicated region
      $region33: #{tpu_custom_call.1} parent=5 // pred_check
        %p1912 = pneg %p1911
      $region34: #{tpu_custom_call.1} parent=5 // pred_check_branch
        %1914 = sbr.rel (%p1912) target = $region36
      $region35: #{tpu_custom_call.1} parent=5 // pred_region
        %s1915 = ssub.s32 %s12, 2
        // Predicated region
        $region37: #{tpu_custom_call.1} parent=35 // pred_check
          %p1916 = pneg %p67
        $region38: #{tpu_custom_call.1} parent=35 // pred_check_branch
          %1918 = sbr.rel (%p1916) target = $region40
        $region39: #{tpu_custom_call.1} parent=35 // pred_region
          %s1919 = sand.u32 %s52, 1
          %s1920 = scalar_lea.sflag [#allocation3], %s1919
          %s1921 = sand.u32 %s52, 1
          %s1922 = smul.addr %s1921, 16
          %s1923 = scalar_lea.vmem [#allocation2], %s1922
          %1924 = dma.done %s1920, 256
        $region40: #{tpu_custom_call.1} parent=35 // pred_fallthru
          _
        // Predicated region
        $region41: #{tpu_custom_call.1} parent=35 // pred_check
          %p1925 = pneg %p93
        $region42: #{tpu_custom_call.1} parent=35 // pred_check_branch
          %1927 = sbr.rel (%p1925) target = $region44
        $region43: #{tpu_custom_call.1} parent=35 // pred_region
          %p1928 = scmp.lt.s32.totalorder %s18, 1
          %s1929 = scalar_select %p1928, %s18, 1
          %s1930 = smul.addr %s1929, 2
          %s1931 = smul.addr %s1930, 8
          %s1932 = scalar_lea.vmem %s2, %s1931
        $region44: #{tpu_custom_call.1} parent=35 // pred_fallthru
          _
      $region36: #{tpu_custom_call.1} parent=5 // pred_fallthru
        _
    $region6: #{tpu_custom_call.1} parent=1 // loop_footer
      %s16 = sadd.s32 1, %s12
    $region7: #{tpu_custom_call.1} parent=1 // loop_footer_branch
      %11 = sbr.rel target = $region3
    $region8: #{tpu_custom_call.1} parent=1 // loop_exit
      _
    %1933 = vsyncpa [#allocation3], 1
    %s1934 = scalar_lea.sflag [#allocation3], 1
    %1935 = vsyncpa %s1934, 1

</llo_original>
